<compile_context>
chip_gen: v7x
topology: tpu7x:2x2x1
jax: 0.10.0
libtpu: 0.0.40
codegen_flags: <defaults>
</compile_context>

<pallas_src>
import functools
import math

import jax
import jax.numpy as jnp
from jax.experimental import pallas as pl
from jax.experimental.pallas import tpu as pltpu

letter2index = {'<sos>': 0, '<eos>': 1}


# ----------------------------------------------------------------------------
# Fused Pallas kernel: the entire greedy decode loop (one grid step = one time
# step of the decoder).
# ----------------------------------------------------------------------------
def fused_decoder_kernel(
    # resident inputs (DMA'd once, constant index_maps)
    key_ref,      # (B, T, K)   key pre-scaled by 1/sqrt(K)
    value_ref,    # (B, T, K)
    maskb_ref,    # (B, 1, T)   additive mask bias (-1e9/sqrt(K) on padded frames)
    emb_ref,      # (Vp, E)     padded embedding (padded rows = 0)
    w1x_ref,      # (4, E, H)   LSTM1 char-embed path, per-gate blocks (i, f, g, o)
    w1c_ref,      # (4, K, H)   LSTM1 context path
    w1h_ref,      # (4, H, H)   LSTM1 hidden path
    b1_ref,       # (4, 1, H)   bias_ih + bias_hh
    w2x_ref,      # (4, H, K)   LSTM2 input path
    w2h_ref,      # (4, K, K)   LSTM2 hidden path
    b2_ref,       # (4, 1, K)
    woq_ref,      # (K, Vp)     tied output projection, query half
    woc_ref,      # (K, Vp)     tied output projection, context half
    bo_ref,       # (1, Vp)     output bias (padded columns = -1e9)
    # per-step outputs
    pred_out_ref,  # (1, B, Vp)  logits for this step
    attn_out_ref,  # (1, 1, T)   attention of batch element 0 (attention_plot)
    # VMEM scratch carried across grid steps
    h1_s, c1_s,    # (B, H)
    h2_s, c2_s,    # (B, K)
    ctx_s,         # (B, K)
    prob_s,        # (B, Vp)    previous-step logits (for greedy argmax)
):
    t = pl.program_id(0)
    B, Vp = prob_s.shape

    @pl.when(t == 0)
    def _init():
        h1_s[...] = jnp.zeros_like(h1_s)
        c1_s[...] = jnp.zeros_like(c1_s)
        h2_s[...] = jnp.zeros_like(h2_s)
        c2_s[...] = jnp.zeros_like(c2_s)
        ctx_s[...] = jnp.zeros_like(ctx_s)
        prob_s[...] = jnp.zeros_like(prob_s)  # argmax(zeros) == 0 == <sos>

    # ---- greedy char selection (lowest-index argmax) + embedding lookup ----
    prev = prob_s[...]
    col = jax.lax.broadcasted_iota(jnp.int32, (B, Vp), 1)
    row_max = jnp.max(prev, axis=-1, keepdims=True)
    sel = jnp.min(jnp.where(prev == row_max, col, Vp), axis=-1, keepdims=True)
    onehot = (col == sel).astype(jnp.float32)                       # (B, Vp)
    char_embed = jnp.dot(onehot, emb_ref[...],
                         preferred_element_type=jnp.float32)        # (B, E)

    # ---- LSTMCell 1: input = [char_embed ; context] (split weights) --------
    h1 = h1_s[...]
    c1 = c1_s[...]
    ctx = ctx_s[...]
    z1 = []
    for g in range(4):   # PyTorch gate order: i, f, g, o
        z1.append(
            jnp.dot(char_embed, w1x_ref[g], preferred_element_type=jnp.float32)
            + jnp.dot(ctx, w1c_ref[g], preferred_element_type=jnp.float32)
            + jnp.dot(h1, w1h_ref[g], preferred_element_type=jnp.float32)
            + b1_ref[g]
        )
    i1 = jax.nn.sigmoid(z1[0])
    f1 = jax.nn.sigmoid(z1[1])
    g1 = jnp.tanh(z1[2])
    o1 = jax.nn.sigmoid(z1[3])
    c1_new = f1 * c1 + i1 * g1
    h1_new = o1 * jnp.tanh(c1_new)

    # ---- LSTMCell 2: input = h1_new -----------------------------------------
    h2 = h2_s[...]
    c2 = c2_s[...]
    z2 = []
    for g in range(4):
        z2.append(
            jnp.dot(h1_new, w2x_ref[g], preferred_element_type=jnp.float32)
            + jnp.dot(h2, w2h_ref[g], preferred_element_type=jnp.float32)
            + b2_ref[g]
        )
    i2 = jax.nn.sigmoid(z2[0])
    f2 = jax.nn.sigmoid(z2[1])
    g2 = jnp.tanh(z2[2])
    o2 = jax.nn.sigmoid(z2[3])
    c2_new = f2 * c2 + i2 * g2
    h2_new = o2 * jnp.tanh(c2_new)
    query = h2_new                                                   # (B, K)

    # ---- Attention (scaled dot-product, additive mask, softmax) on MXU -----
    q3 = query[:, None, :]                                           # (B, 1, K)
    energy = jnp.einsum('bqk,btk->bqt', q3, key_ref[...],
                        preferred_element_type=jnp.float32)          # (B, 1, T)
    energy = energy + maskb_ref[...]
    attn = jax.nn.softmax(energy, axis=-1)                           # (B, 1, T)
    ctx3 = jnp.einsum('bqt,btk->bqk', attn, value_ref[...],
                      preferred_element_type=jnp.float32)            # (B, 1, K)
    ctx_new = ctx3[:, 0, :]                                          # (B, K)

    # ---- Tied output projection (split: query half + context half) ---------
    pred = (
        jnp.dot(query, woq_ref[...], preferred_element_type=jnp.float32)
        + jnp.dot(ctx_new, woc_ref[...], preferred_element_type=jnp.float32)
        + bo_ref[...]
    )                                                                # (B, Vp)

    # ---- outputs + carried state --------------------------------------------
    pred_out_ref[0] = pred
    attn_out_ref[...] = attn[0:1, :, :]

    h1_s[...] = h1_new
    c1_s[...] = c1_new
    h2_s[...] = h2_new
    c2_s[...] = c2_new
    ctx_s[...] = ctx_new
    prob_s[...] = pred


# ----------------------------------------------------------------------------
# Wrapper: Decoder.forward(key, value, encoder_len, mode='eval')
# ----------------------------------------------------------------------------
def decoder_forward(key, value, encoder_len, params, *, max_len, vocab_size):
    B, T, K = key.shape
    Vp, E = params['emb_pad'].shape
    H = params['w1h'].shape[2]
    V = vocab_size

    scale = 1.0 / math.sqrt(K)
    key_scaled = key.astype(jnp.float32) * jnp.float32(scale)
    value = value.astype(jnp.float32)
    # PyTorch masks energy with -1e9 *before* the /sqrt(K); fold both in once.
    mask = jnp.arange(T, dtype=jnp.int32)[None, :] >= encoder_len[:, None]
    mask_bias = jnp.where(mask, jnp.float32(-1e9 * scale),
                          jnp.float32(0.0))[:, None, :]              # (B, 1, T)

    inputs = (
        key_scaled, value, mask_bias, params['emb_pad'],
        params['w1x'], params['w1c'], params['w1h'], params['b1'],
        params['w2x'], params['w2h'], params['b2'],
        params['w_out_q'], params['w_out_c'], params['b_out'],
    )

    def resident_spec(arr):
        nd = arr.ndim
        return pl.BlockSpec(arr.shape, lambda t, _nd=nd: (0,) * _nd)

    in_specs = [resident_spec(a) for a in inputs]
    out_specs = [
        pl.BlockSpec((1, B, Vp), lambda t: (t, 0, 0)),   # lane-dense logits slab
        pl.BlockSpec((1, 1, T), lambda t: (t, 0, 0)),    # attention row 0 only
    ]
    out_shape = (
        jax.ShapeDtypeStruct((max_len, B, Vp), jnp.float32),
        jax.ShapeDtypeStruct((max_len, 1, T), jnp.float32),
    )
    scratch_shapes = [
        pltpu.VMEM((B, H), jnp.float32),   # h1
        pltpu.VMEM((B, H), jnp.float32),   # c1
        pltpu.VMEM((B, K), jnp.float32),   # h2
        pltpu.VMEM((B, K), jnp.float32),   # c2
        pltpu.VMEM((B, K), jnp.float32),   # context
        pltpu.VMEM((B, Vp), jnp.float32),  # previous logits
    ]

    grid_spec = pltpu.PrefetchScalarGridSpec(
        num_scalar_prefetch=0,
        grid=(max_len,),
        in_specs=in_specs,
        out_specs=out_specs,
        scratch_shapes=scratch_shapes,
    )

    # Rough advisory cost for the XLA scheduler.
    flops_step = 2 * B * (
        Vp * E                               # one-hot embedding gather
        + 4 * (E * H + K * H + H * H)        # LSTM1
        + 4 * (H * K + K * K)                # LSTM2
        + 2 * T * K                          # attention energy + context
        + 2 * K * Vp                         # output projection
    )
    trans_step = B * (5 * H + 5 * K + T)     # sigmoids/tanhs + softmax exp
    bytes_in = sum(int(a.size) * a.dtype.itemsize for a in inputs)
    bytes_out = max_len * (B * Vp + T) * 4
    cost = pl.CostEstimate(flops=int(max_len * flops_step),
                           transcendentals=int(max_len * trans_step),
                           bytes_accessed=int(bytes_in + bytes_out))

    preds_raw, attn_raw = pl.pallas_call(
        fused_decoder_kernel,
        out_shape=out_shape,
        grid_spec=grid_spec,
        compiler_params=pltpu.CompilerParams(
            dimension_semantics=("arbitrary",),     # sequential time axis
            vmem_limit_bytes=32 * 1024 * 1024,
        ),
        cost_estimate=cost,
    )(*inputs)

    predictions = jnp.transpose(preds_raw[:, :, :V], (1, 0, 2))      # (B, max_len, V)
    attentions = attn_raw[:, 0, :]                                   # (max_len, T)
    return predictions, attentions


# ----------------------------------------------------------------------------
# Deterministic parameter construction (matches nn.Module __init__ shapes),
# converted into the kernel's lane-aligned / split layout.
# ----------------------------------------------------------------------------
def make_params(rng, vocab_size, decoder_hidden_dim, embed_dim, key_value_size):
    assert embed_dim == 2 * key_value_size, \
        "weight tying (character_prob.weight = embedding.weight) requires embed_dim == 2*key_value_size"
    H, K, E, V = decoder_hidden_dim, key_value_size, embed_dim, vocab_size
    Vp = max(128, ((V + 127) // 128) * 128)    # lane-dense padded vocab
    ks = jax.random.split(rng, 10)
    s = 0.1

    embedding = s * jax.random.normal(ks[0], (V, E), jnp.float32)
    # padding_idx = letter2index['<eos>'] -> that embedding row is zero.
    embedding = embedding.at[letter2index['<eos>']].set(0.0)

    w_ih1 = s * jax.random.normal(ks[1], (4 * H, E + K), jnp.float32)
    w_hh1 = s * jax.random.normal(ks[2], (4 * H, H), jnp.float32)
    b1 = (s * jax.random.normal(ks[3], (4 * H,), jnp.float32)
          + s * jax.random.normal(ks[4], (4 * H,), jnp.float32))      # bias_ih + bias_hh
    w_ih2 = s * jax.random.normal(ks[5], (4 * K, H), jnp.float32)
    w_hh2 = s * jax.random.normal(ks[6], (4 * K, K), jnp.float32)
    b2 = (s * jax.random.normal(ks[7], (4 * K,), jnp.float32)
          + s * jax.random.normal(ks[8], (4 * K,), jnp.float32))
    b_out = s * jax.random.normal(ks[9], (V,), jnp.float32)

    def split_gates(w, out_dim):
        # (4*out, in) -> (4, in, out): one lane-aligned block per gate (i,f,g,o)
        return jnp.stack([w[g * out_dim:(g + 1) * out_dim, :].T for g in range(4)], axis=0)

    w1_full = split_gates(w_ih1, H)            # (4, E+K, H)
    w1x = w1_full[:, :E, :]                    # (4, E, H)  char-embed path
    w1c = w1_full[:, E:, :]                    # (4, K, H)  context path
    w1h = split_gates(w_hh1, H)                # (4, H, H)
    b1g = jnp.stack([b1[g * H:(g + 1) * H][None, :] for g in range(4)], axis=0)  # (4,1,H)

    w2x = split_gates(w_ih2, K)                # (4, H, K)
    w2h = split_gates(w_hh2, K)                # (4, K, K)
    b2g = jnp.stack([b2[g * K:(g + 1) * K][None, :] for g in range(4)], axis=0)  # (4,1,K)

    emb_pad = jnp.zeros((Vp, E), jnp.float32).at[:V].set(embedding)
    # character_prob.weight tied to embedding.weight (V, 2K); split + transpose.
    w_out_q = emb_pad[:, :K].T                 # (K, Vp)
    w_out_c = emb_pad[:, K:].T                 # (K, Vp)
    # Padded vocab columns get a -1e9 bias so in-kernel argmax never picks them.
    b_out_pad = jnp.full((1, Vp), -1e9, jnp.float32).at[0, :V].set(b_out)

    return {
        'emb_pad': emb_pad,
        'w1x': w1x, 'w1c': w1c, 'w1h': w1h, 'b1': b1g,
        'w2x': w2x, 'w2h': w2h, 'b2': b2g,
        'w_out_q': w_out_q, 'w_out_c': w_out_c, 'b_out': b_out_pad,
    }


if __name__ == "__main__":
    # Small shapes consistent with the module's forward.  Batch is a multiple
    # of 8 so every (B, .) tile fills all sublanes.
    B, T = 8, 8
    key_value_size = 32
    decoder_hidden_dim = 64
    embed_dim = 2 * key_value_size             # required by the weight tying
    vocab_size = 30
    # TODO(synk): original eval mode runs max_len=600 steps; the fused grid
    # makes that cheap (one pallas_call total), shortened here for the demo.
    max_len = 16

    root = jax.random.PRNGKey(0)
    k_par, k_key, k_val = jax.random.split(root, 3)

    params = make_params(k_par, vocab_size, decoder_hidden_dim, embed_dim,
                         key_value_size)

    key = jax.random.normal(k_key, (B, T, key_value_size), jnp.float32)
    value = jax.random.normal(k_val, (B, T, key_value_size), jnp.float32)
    encoder_len = jnp.array([6, 8, 7, 5, 8, 4, 6, 7], dtype=jnp.int32)

    fwd = jax.jit(functools.partial(decoder_forward, max_len=max_len,
                                    vocab_size=vocab_size))
    predictions, attentions = fwd(key, value, encoder_len, params)
    jax.block_until_ready((predictions, attentions))

    assert predictions.shape == (B, max_len, vocab_size)
    assert attentions.shape == (max_len, T)
    assert bool(jnp.all(jnp.isfinite(predictions)))
    assert bool(jnp.all(jnp.isfinite(attentions)))
    # masked encoder frames of the plotted batch element get ~zero attention
    assert float(attentions[:, int(encoder_len[0]):].sum()) < 1e-6
    # attention rows are a valid softmax
    assert float(jnp.abs(attentions.sum(axis=-1) - 1.0).max()) < 1e-4

    print("KERNEL_OK")
</pallas_src>

<mosaic_0001>
module attributes {stable_mosaic.version = 11 : i64} {
  func.func @fused_decoder_kernel(%arg0: i32, %arg1: memref<8x8x32xf32, #tpu.memory_space<vmem>>, %arg2: memref<8x8x32xf32, #tpu.memory_space<vmem>>, %arg3: memref<8x1x8xf32, #tpu.memory_space<vmem>>, %arg4: memref<128x64xf32, #tpu.memory_space<vmem>>, %arg5: memref<4x64x64xf32, #tpu.memory_space<vmem>>, %arg6: memref<4x32x64xf32, #tpu.memory_space<vmem>>, %arg7: memref<4x64x64xf32, #tpu.memory_space<vmem>>, %arg8: memref<4x1x64xf32, #tpu.memory_space<vmem>>, %arg9: memref<4x64x32xf32, #tpu.memory_space<vmem>>, %arg10: memref<4x32x32xf32, #tpu.memory_space<vmem>>, %arg11: memref<4x1x32xf32, #tpu.memory_space<vmem>>, %arg12: memref<32x128xf32, #tpu.memory_space<vmem>>, %arg13: memref<32x128xf32, #tpu.memory_space<vmem>>, %arg14: memref<1x128xf32, #tpu.memory_space<vmem>>, %arg15: memref<1x8x128xf32, #tpu.memory_space<vmem>>, %arg16: memref<1x1x8xf32, #tpu.memory_space<vmem>>, %arg17: memref<8x64xf32, #tpu.memory_space<vmem>>, %arg18: memref<8x64xf32, #tpu.memory_space<vmem>>, %arg19: memref<8x32xf32, #tpu.memory_space<vmem>>, %arg20: memref<8x32xf32, #tpu.memory_space<vmem>>, %arg21: memref<8x32xf32, #tpu.memory_space<vmem>>, %arg22: memref<8x128xf32, #tpu.memory_space<vmem>>) attributes {dimension_semantics = [#tpu.dimension_semantics<arbitrary>], iteration_bounds = array<i64: 16>, scalar_prefetch = 0 : i64, scratch_operands = 6 : i64, tpu.core_type = #tpu.core_type<tc>, window_params = [{pipeline_mode = #tpu.pipeline_mode<synchronous>, transform_indices = @transform_0, window_bounds = array<i64: 8, 8, 32>}, {pipeline_mode = #tpu.pipeline_mode<synchronous>, transform_indices = @transform_1, window_bounds = array<i64: 8, 8, 32>}, {pipeline_mode = #tpu.pipeline_mode<synchronous>, transform_indices = @transform_2, window_bounds = array<i64: 8, 1, 8>}, {pipeline_mode = #tpu.pipeline_mode<synchronous>, transform_indices = @transform_3, window_bounds = array<i64: 128, 64>}, {pipeline_mode = #tpu.pipeline_mode<synchronous>, transform_indices = @transform_4, window_bounds = array<i64: 4, 64, 64>}, {pipeline_mode = #tpu.pipeline_mode<synchronous>, transform_indices = @transform_5, window_bounds = array<i64: 4, 32, 64>}, {pipeline_mode = #tpu.pipeline_mode<synchronous>, transform_indices = @transform_6, window_bounds = array<i64: 4, 64, 64>}, {pipeline_mode = #tpu.pipeline_mode<synchronous>, transform_indices = @transform_7, window_bounds = array<i64: 4, 1, 64>}, {pipeline_mode = #tpu.pipeline_mode<synchronous>, transform_indices = @transform_8, window_bounds = array<i64: 4, 64, 32>}, {pipeline_mode = #tpu.pipeline_mode<synchronous>, transform_indices = @transform_9, window_bounds = array<i64: 4, 32, 32>}, {pipeline_mode = #tpu.pipeline_mode<synchronous>, transform_indices = @transform_10, window_bounds = array<i64: 4, 1, 32>}, {pipeline_mode = #tpu.pipeline_mode<synchronous>, transform_indices = @transform_11, window_bounds = array<i64: 32, 128>}, {pipeline_mode = #tpu.pipeline_mode<synchronous>, transform_indices = @transform_12, window_bounds = array<i64: 32, 128>}, {pipeline_mode = #tpu.pipeline_mode<synchronous>, transform_indices = @transform_13, window_bounds = array<i64: 1, 128>}, {transform_indices = @transform_14, window_bounds = array<i64: 1, 8, 128>}, {transform_indices = @transform_15, window_bounds = array<i64: 1, 1, 8>}]} {
    %c0_i32 = arith.constant 0 : i32
    %0 = arith.cmpi eq, %arg0, %c0_i32 : i32
    %1 = arith.extui %0 : i1 to i32
    %c0_i32_0 = arith.constant 0 : i32
    %2 = arith.cmpi ne, %1, %c0_i32_0 : i32
    scf.if %2 {
      %cst_163 = arith.constant 0.000000e+00 : f32
      %208 = vector.broadcast %cst_163 : f32 to vector<8x64xf32>
      %c0_164 = arith.constant 0 : index
      %c0_165 = arith.constant 0 : index
      %209 = vector.load %arg17[%c0_164, %c0_165] : memref<8x64xf32, #tpu.memory_space<vmem>>, vector<8x64xf32>
      tpu.vector_store %arg17[%c0_164, %c0_165], %208 {strides = array<i32>} : memref<8x64xf32, #tpu.memory_space<vmem>>, vector<8x64xf32>,
      %cst_166 = arith.constant 0.000000e+00 : f32
      %210 = vector.broadcast %cst_166 : f32 to vector<8x64xf32>
      %c0_167 = arith.constant 0 : index
      %c0_168 = arith.constant 0 : index
      %211 = vector.load %arg18[%c0_167, %c0_168] : memref<8x64xf32, #tpu.memory_space<vmem>>, vector<8x64xf32>
      tpu.vector_store %arg18[%c0_167, %c0_168], %210 {strides = array<i32>} : memref<8x64xf32, #tpu.memory_space<vmem>>, vector<8x64xf32>,
      %cst_169 = arith.constant 0.000000e+00 : f32
      %212 = vector.broadcast %cst_169 : f32 to vector<8x32xf32>
      %c0_170 = arith.constant 0 : index
      %c0_171 = arith.constant 0 : index
      %213 = vector.load %arg19[%c0_170, %c0_171] : memref<8x32xf32, #tpu.memory_space<vmem>>, vector<8x32xf32>
      tpu.vector_store %arg19[%c0_170, %c0_171], %212 {strides = array<i32>} : memref<8x32xf32, #tpu.memory_space<vmem>>, vector<8x32xf32>,
      %cst_172 = arith.constant 0.000000e+00 : f32
      %214 = vector.broadcast %cst_172 : f32 to vector<8x32xf32>
      %c0_173 = arith.constant 0 : index
      %c0_174 = arith.constant 0 : index
      %215 = vector.load %arg20[%c0_173, %c0_174] : memref<8x32xf32, #tpu.memory_space<vmem>>, vector<8x32xf32>
      tpu.vector_store %arg20[%c0_173, %c0_174], %214 {strides = array<i32>} : memref<8x32xf32, #tpu.memory_space<vmem>>, vector<8x32xf32>,
      %cst_175 = arith.constant 0.000000e+00 : f32
      %216 = vector.broadcast %cst_175 : f32 to vector<8x32xf32>
      %c0_176 = arith.constant 0 : index
      %c0_177 = arith.constant 0 : index
      %217 = vector.load %arg21[%c0_176, %c0_177] : memref<8x32xf32, #tpu.memory_space<vmem>>, vector<8x32xf32>
      tpu.vector_store %arg21[%c0_176, %c0_177], %216 {strides = array<i32>} : memref<8x32xf32, #tpu.memory_space<vmem>>, vector<8x32xf32>,
      %cst_178 = arith.constant 0.000000e+00 : f32
      %218 = vector.broadcast %cst_178 : f32 to vector<8x128xf32>
      %c0_179 = arith.constant 0 : index
      %c0_180 = arith.constant 0 : index
      %219 = vector.load %arg22[%c0_179, %c0_180] : memref<8x128xf32, #tpu.memory_space<vmem>>, vector<8x128xf32>
      tpu.vector_store %arg22[%c0_179, %c0_180], %218 {strides = array<i32>} : memref<8x128xf32, #tpu.memory_space<vmem>>, vector<8x128xf32>,
    } else {
    }
    %c0 = arith.constant 0 : index
    %c0_1 = arith.constant 0 : index
    %3 = vector.load %arg22[%c0, %c0_1] : memref<8x128xf32, #tpu.memory_space<vmem>>, vector<8x128xf32>
    %4 = tpu.iota {dimensions = array<i32: 1>} : vector<8x128xi32>
    %cst = arith.constant dense<0xFF800000> : vector<8xf32>
    %5 = vector.multi_reduction <maximumf>, %3, %cst [1] : vector<8x128xf32> to vector<8xf32>
    %6 = vector.shape_cast %5 : vector<8xf32> to vector<8x1xf32>
    %7 = vector.broadcast %6 : vector<8x1xf32> to vector<8x128xf32>
    %8 = arith.cmpf oeq, %3, %7 : vector<8x128xf32>
    %c128_i32 = arith.constant 128 : i32
    %9 = vector.broadcast %c128_i32 : i32 to vector<8x128xi32>
    %10 = arith.select %8, %4, %9 : vector<8x128xi1>, vector<8x128xi32>
    %cst_2 = arith.constant dense<2147483647> : vector<8xi32>
    %11 = vector.multi_reduction <minsi>, %10, %cst_2 [1] : vector<8x128xi32> to vector<8xi32>
    %12 = vector.shape_cast %11 : vector<8xi32> to vector<8x1xi32>
    %13 = vector.broadcast %12 : vector<8x1xi32> to vector<8x128xi32>
    %14 = arith.cmpi eq, %4, %13 : vector<8x128xi32>
    %15 = arith.extui %14 : vector<8x128xi1> to vector<8x128xi32>
    %16 = arith.sitofp %15 : vector<8x128xi32> to vector<8x128xf32>
    %c0_3 = arith.constant 0 : index
    %c0_4 = arith.constant 0 : index
    %17 = vector.load %arg4[%c0_3, %c0_4] : memref<128x64xf32, #tpu.memory_space<vmem>>, vector<128x64xf32>
    %cst_5 = arith.constant dense<0.000000e+00> : vector<8x64xf32>
    %18 = tpu.matmul %16, %17, %cst_5 {dimension_numbers = #tpu.dot_dimension_numbers<[1], [0], [0], [1], [0, 0, 1, 1], [], []>} : vector<8x128xf32>, vector<128x64xf32>, vector<8x64xf32> -> vector<8x64xf32>
    %c0_6 = arith.constant 0 : index
    %c0_7 = arith.constant 0 : index
    %19 = vector.load %arg17[%c0_6, %c0_7] : memref<8x64xf32, #tpu.memory_space<vmem>>, vector<8x64xf32>
    %c0_8 = arith.constant 0 : index
    %c0_9 = arith.constant 0 : index
    %20 = vector.load %arg18[%c0_8, %c0_9] : memref<8x64xf32, #tpu.memory_space<vmem>>, vector<8x64xf32>
    %c0_10 = arith.constant 0 : index
    %c0_11 = arith.constant 0 : index
    %21 = vector.load %arg21[%c0_10, %c0_11] : memref<8x32xf32, #tpu.memory_space<vmem>>, vector<8x32xf32>
    %c0_12 = arith.constant 0 : index
    %c0_13 = arith.constant 0 : index
    %c0_14 = arith.constant 0 : index
    %22 = vector.load %arg5[%c0_12, %c0_13, %c0_14] : memref<4x64x64xf32, #tpu.memory_space<vmem>>, vector<1x64x64xf32>
    %23 = vector.shape_cast %22 : vector<1x64x64xf32> to vector<64x64xf32>
    %cst_15 = arith.constant dense<0.000000e+00> : vector<8x64xf32>
    %24 = tpu.matmul %18, %23, %cst_15 {dimension_numbers = #tpu.dot_dimension_numbers<[1], [0], [0], [1], [0, 0, 1, 1], [], []>} : vector<8x64xf32>, vector<64x64xf32>, vector<8x64xf32> -> vector<8x64xf32>
    %c0_16 = arith.constant 0 : index
    %c0_17 = arith.constant 0 : index
    %c0_18 = arith.constant 0 : index
    %25 = vector.load %arg6[%c0_16, %c0_17, %c0_18] : memref<4x32x64xf32, #tpu.memory_space<vmem>>, vector<1x32x64xf32>
    %26 = vector.shape_cast %25 : vector<1x32x64xf32> to vector<32x64xf32>
    %cst_19 = arith.constant dense<0.000000e+00> : vector<8x64xf32>
    %27 = tpu.matmul %21, %26, %cst_19 {dimension_numbers = #tpu.dot_dimension_numbers<[1], [0], [0], [1], [0, 0, 1, 1], [], []>} : vector<8x32xf32>, vector<32x64xf32>, vector<8x64xf32> -> vector<8x64xf32>
    %28 = arith.addf %24, %27 : vector<8x64xf32>
    %c0_20 = arith.constant 0 : index
    %c0_21 = arith.constant 0 : index
    %c0_22 = arith.constant 0 : index
    %29 = vector.load %arg7[%c0_20, %c0_21, %c0_22] : memref<4x64x64xf32, #tpu.memory_space<vmem>>, vector<1x64x64xf32>
    %30 = vector.shape_cast %29 : vector<1x64x64xf32> to vector<64x64xf32>
    %cst_23 = arith.constant dense<0.000000e+00> : vector<8x64xf32>
    %31 = tpu.matmul %19, %30, %cst_23 {dimension_numbers = #tpu.dot_dimension_numbers<[1], [0], [0], [1], [0, 0, 1, 1], [], []>} : vector<8x64xf32>, vector<64x64xf32>, vector<8x64xf32> -> vector<8x64xf32>
    %32 = arith.addf %28, %31 : vector<8x64xf32>
    %c0_24 = arith.constant 0 : index
    %c0_25 = arith.constant 0 : index
    %c0_26 = arith.constant 0 : index
    %33 = vector.load %arg8[%c0_24, %c0_25, %c0_26] : memref<4x1x64xf32, #tpu.memory_space<vmem>>, vector<1x1x64xf32>
    %34 = vector.shape_cast %33 : vector<1x1x64xf32> to vector<1x64xf32>
    %35 = vector.broadcast %34 : vector<1x64xf32> to vector<8x64xf32>
    %36 = arith.addf %32, %35 : vector<8x64xf32>
    %c1 = arith.constant 1 : index
    %c0_27 = arith.constant 0 : index
    %c0_28 = arith.constant 0 : index
    %37 = vector.load %arg5[%c1, %c0_27, %c0_28] : memref<4x64x64xf32, #tpu.memory_space<vmem>>, vector<1x64x64xf32>
    %38 = vector.shape_cast %37 : vector<1x64x64xf32> to vector<64x64xf32>
    %cst_29 = arith.constant dense<0.000000e+00> : vector<8x64xf32>
    %39 = tpu.matmul %18, %38, %cst_29 {dimension_numbers = #tpu.dot_dimension_numbers<[1], [0], [0], [1], [0, 0, 1, 1], [], []>} : vector<8x64xf32>, vector<64x64xf32>, vector<8x64xf32> -> vector<8x64xf32>
    %c1_30 = arith.constant 1 : index
    %c0_31 = arith.constant 0 : index
    %c0_32 = arith.constant 0 : index
    %40 = vector.load %arg6[%c1_30, %c0_31, %c0_32] : memref<4x32x64xf32, #tpu.memory_space<vmem>>, vector<1x32x64xf32>
    %41 = vector.shape_cast %40 : vector<1x32x64xf32> to vector<32x64xf32>
    %cst_33 = arith.constant dense<0.000000e+00> : vector<8x64xf32>
    %42 = tpu.matmul %21, %41, %cst_33 {dimension_numbers = #tpu.dot_dimension_numbers<[1], [0], [0], [1], [0, 0, 1, 1], [], []>} : vector<8x32xf32>, vector<32x64xf32>, vector<8x64xf32> -> vector<8x64xf32>
    %43 = arith.addf %39, %42 : vector<8x64xf32>
    %c1_34 = arith.constant 1 : index
    %c0_35 = arith.constant 0 : index
    %c0_36 = arith.constant 0 : index
    %44 = vector.load %arg7[%c1_34, %c0_35, %c0_36] : memref<4x64x64xf32, #tpu.memory_space<vmem>>, vector<1x64x64xf32>
    %45 = vector.shape_cast %44 : vector<1x64x64xf32> to vector<64x64xf32>
    %cst_37 = arith.constant dense<0.000000e+00> : vector<8x64xf32>
    %46 = tpu.matmul %19, %45, %cst_37 {dimension_numbers = #tpu.dot_dimension_numbers<[1], [0], [0], [1], [0, 0, 1, 1], [], []>} : vector<8x64xf32>, vector<64x64xf32>, vector<8x64xf32> -> vector<8x64xf32>
    %47 = arith.addf %43, %46 : vector<8x64xf32>
    %c1_38 = arith.constant 1 : index
    %c0_39 = arith.constant 0 : index
    %c0_40 = arith.constant 0 : index
    %48 = vector.load %arg8[%c1_38, %c0_39, %c0_40] : memref<4x1x64xf32, #tpu.memory_space<vmem>>, vector<1x1x64xf32>
    %49 = vector.shape_cast %48 : vector<1x1x64xf32> to vector<1x64xf32>
    %50 = vector.broadcast %49 : vector<1x64xf32> to vector<8x64xf32>
    %51 = arith.addf %47, %50 : vector<8x64xf32>
    %c2 = arith.constant 2 : index
    %c0_41 = arith.constant 0 : index
    %c0_42 = arith.constant 0 : index
    %52 = vector.load %arg5[%c2, %c0_41, %c0_42] : memref<4x64x64xf32, #tpu.memory_space<vmem>>, vector<1x64x64xf32>
    %53 = vector.shape_cast %52 : vector<1x64x64xf32> to vector<64x64xf32>
    %cst_43 = arith.constant dense<0.000000e+00> : vector<8x64xf32>
    %54 = tpu.matmul %18, %53, %cst_43 {dimension_numbers = #tpu.dot_dimension_numbers<[1], [0], [0], [1], [0, 0, 1, 1], [], []>} : vector<8x64xf32>, vector<64x64xf32>, vector<8x64xf32> -> vector<8x64xf32>
    %c2_44 = arith.constant 2 : index
    %c0_45 = arith.constant 0 : index
    %c0_46 = arith.constant 0 : index
    %55 = vector.load %arg6[%c2_44, %c0_45, %c0_46] : memref<4x32x64xf32, #tpu.memory_space<vmem>>, vector<1x32x64xf32>
    %56 = vector.shape_cast %55 : vector<1x32x64xf32> to vector<32x64xf32>
    %cst_47 = arith.constant dense<0.000000e+00> : vector<8x64xf32>
    %57 = tpu.matmul %21, %56, %cst_47 {dimension_numbers = #tpu.dot_dimension_numbers<[1], [0], [0], [1], [0, 0, 1, 1], [], []>} : vector<8x32xf32>, vector<32x64xf32>, vector<8x64xf32> -> vector<8x64xf32>
    %58 = arith.addf %54, %57 : vector<8x64xf32>
    %c2_48 = arith.constant 2 : index
    %c0_49 = arith.constant 0 : index
    %c0_50 = arith.constant 0 : index
    %59 = vector.load %arg7[%c2_48, %c0_49, %c0_50] : memref<4x64x64xf32, #tpu.memory_space<vmem>>, vector<1x64x64xf32>
    %60 = vector.shape_cast %59 : vector<1x64x64xf32> to vector<64x64xf32>
    %cst_51 = arith.constant dense<0.000000e+00> : vector<8x64xf32>
    %61 = tpu.matmul %19, %60, %cst_51 {dimension_numbers = #tpu.dot_dimension_numbers<[1], [0], [0], [1], [0, 0, 1, 1], [], []>} : vector<8x64xf32>, vector<64x64xf32>, vector<8x64xf32> -> vector<8x64xf32>
    %62 = arith.addf %58, %61 : vector<8x64xf32>
    %c2_52 = arith.constant 2 : index
    %c0_53 = arith.constant 0 : index
    %c0_54 = arith.constant 0 : index
    %63 = vector.load %arg8[%c2_52, %c0_53, %c0_54] : memref<4x1x64xf32, #tpu.memory_space<vmem>>, vector<1x1x64xf32>
    %64 = vector.shape_cast %63 : vector<1x1x64xf32> to vector<1x64xf32>
    %65 = vector.broadcast %64 : vector<1x64xf32> to vector<8x64xf32>
    %66 = arith.addf %62, %65 : vector<8x64xf32>
    %c3 = arith.constant 3 : index
    %c0_55 = arith.constant 0 : index
    %c0_56 = arith.constant 0 : index
    %67 = vector.load %arg5[%c3, %c0_55, %c0_56] : memref<4x64x64xf32, #tpu.memory_space<vmem>>, vector<1x64x64xf32>
    %68 = vector.shape_cast %67 : vector<1x64x64xf32> to vector<64x64xf32>
    %cst_57 = arith.constant dense<0.000000e+00> : vector<8x64xf32>
    %69 = tpu.matmul %18, %68, %cst_57 {dimension_numbers = #tpu.dot_dimension_numbers<[1], [0], [0], [1], [0, 0, 1, 1], [], []>} : vector<8x64xf32>, vector<64x64xf32>, vector<8x64xf32> -> vector<8x64xf32>
    %c3_58 = arith.constant 3 : index
    %c0_59 = arith.constant 0 : index
    %c0_60 = arith.constant 0 : index
    %70 = vector.load %arg6[%c3_58, %c0_59, %c0_60] : memref<4x32x64xf32, #tpu.memory_space<vmem>>, vector<1x32x64xf32>
    %71 = vector.shape_cast %70 : vector<1x32x64xf32> to vector<32x64xf32>
    %cst_61 = arith.constant dense<0.000000e+00> : vector<8x64xf32>
    %72 = tpu.matmul %21, %71, %cst_61 {dimension_numbers = #tpu.dot_dimension_numbers<[1], [0], [0], [1], [0, 0, 1, 1], [], []>} : vector<8x32xf32>, vector<32x64xf32>, vector<8x64xf32> -> vector<8x64xf32>
    %73 = arith.addf %69, %72 : vector<8x64xf32>
    %c3_62 = arith.constant 3 : index
    %c0_63 = arith.constant 0 : index
    %c0_64 = arith.constant 0 : index
    %74 = vector.load %arg7[%c3_62, %c0_63, %c0_64] : memref<4x64x64xf32, #tpu.memory_space<vmem>>, vector<1x64x64xf32>
    %75 = vector.shape_cast %74 : vector<1x64x64xf32> to vector<64x64xf32>
    %cst_65 = arith.constant dense<0.000000e+00> : vector<8x64xf32>
    %76 = tpu.matmul %19, %75, %cst_65 {dimension_numbers = #tpu.dot_dimension_numbers<[1], [0], [0], [1], [0, 0, 1, 1], [], []>} : vector<8x64xf32>, vector<64x64xf32>, vector<8x64xf32> -> vector<8x64xf32>
    %77 = arith.addf %73, %76 : vector<8x64xf32>
    %c3_66 = arith.constant 3 : index
    %c0_67 = arith.constant 0 : index
    %c0_68 = arith.constant 0 : index
    %78 = vector.load %arg8[%c3_66, %c0_67, %c0_68] : memref<4x1x64xf32, #tpu.memory_space<vmem>>, vector<1x1x64xf32>
    %79 = vector.shape_cast %78 : vector<1x1x64xf32> to vector<1x64xf32>
    %80 = vector.broadcast %79 : vector<1x64xf32> to vector<8x64xf32>
    %81 = arith.addf %77, %80 : vector<8x64xf32>
    %82 = arith.negf %36 : vector<8x64xf32>
    %83 = math.exp %82 : vector<8x64xf32>
    %cst_69 = arith.constant 1.000000e+00 : f32
    %84 = vector.broadcast %cst_69 : f32 to vector<8x64xf32>
    %85 = arith.addf %84, %83 : vector<8x64xf32>
    %86 = arith.divf %84, %85 : vector<8x64xf32>
    %87 = arith.negf %51 : vector<8x64xf32>
    %88 = math.exp %87 : vector<8x64xf32>
    %cst_70 = arith.constant 1.000000e+00 : f32
    %89 = vector.broadcast %cst_70 : f32 to vector<8x64xf32>
    %90 = arith.addf %89, %88 : vector<8x64xf32>
    %91 = arith.divf %89, %90 : vector<8x64xf32>
    %92 = math.tanh %66 : vector<8x64xf32>
    %93 = arith.negf %81 : vector<8x64xf32>
    %94 = math.exp %93 : vector<8x64xf32>
    %cst_71 = arith.constant 1.000000e+00 : f32
    %95 = vector.broadcast %cst_71 : f32 to vector<8x64xf32>
    %96 = arith.addf %95, %94 : vector<8x64xf32>
    %97 = arith.divf %95, %96 : vector<8x64xf32>
    %98 = arith.mulf %91, %20 : vector<8x64xf32>
    %99 = arith.mulf %86, %92 : vector<8x64xf32>
    %100 = arith.addf %98, %99 : vector<8x64xf32>
    %101 = math.tanh %100 : vector<8x64xf32>
    %102 = arith.mulf %97, %101 : vector<8x64xf32>
    %c0_72 = arith.constant 0 : index
    %c0_73 = arith.constant 0 : index
    %103 = vector.load %arg19[%c0_72, %c0_73] : memref<8x32xf32, #tpu.memory_space<vmem>>, vector<8x32xf32>
    %c0_74 = arith.constant 0 : index
    %c0_75 = arith.constant 0 : index
    %104 = vector.load %arg20[%c0_74, %c0_75] : memref<8x32xf32, #tpu.memory_space<vmem>>, vector<8x32xf32>
    %c0_76 = arith.constant 0 : index
    %c0_77 = arith.constant 0 : index
    %c0_78 = arith.constant 0 : index
    %105 = vector.load %arg9[%c0_76, %c0_77, %c0_78] : memref<4x64x32xf32, #tpu.memory_space<vmem>>, vector<1x64x32xf32>
    %106 = vector.shape_cast %105 : vector<1x64x32xf32> to vector<64x32xf32>
    %cst_79 = arith.constant dense<0.000000e+00> : vector<8x32xf32>
    %107 = tpu.matmul %102, %106, %cst_79 {dimension_numbers = #tpu.dot_dimension_numbers<[1], [0], [0], [1], [0, 0, 1, 1], [], []>} : vector<8x64xf32>, vector<64x32xf32>, vector<8x32xf32> -> vector<8x32xf32>
    %c0_80 = arith.constant 0 : index
    %c0_81 = arith.constant 0 : index
    %c0_82 = arith.constant 0 : index
    %108 = vector.load %arg10[%c0_80, %c0_81, %c0_82] : memref<4x32x32xf32, #tpu.memory_space<vmem>>, vector<1x32x32xf32>
    %109 = vector.shape_cast %108 : vector<1x32x32xf32> to vector<32x32xf32>
    %cst_83 = arith.constant dense<0.000000e+00> : vector<8x32xf32>
    %110 = tpu.matmul %103, %109, %cst_83 {dimension_numbers = #tpu.dot_dimension_numbers<[1], [0], [0], [1], [0, 0, 1, 1], [], []>} : vector<8x32xf32>, vector<32x32xf32>, vector<8x32xf32> -> vector<8x32xf32>
    %111 = arith.addf %107, %110 : vector<8x32xf32>
    %c0_84 = arith.constant 0 : index
    %c0_85 = arith.constant 0 : index
    %c0_86 = arith.constant 0 : index
    %112 = vector.load %arg11[%c0_84, %c0_85, %c0_86] : memref<4x1x32xf32, #tpu.memory_space<vmem>>, vector<1x1x32xf32>
    %113 = vector.shape_cast %112 : vector<1x1x32xf32> to vector<1x32xf32>
    %114 = vector.broadcast %113 : vector<1x32xf32> to vector<8x32xf32>
    %115 = arith.addf %111, %114 : vector<8x32xf32>
    %c1_87 = arith.constant 1 : index
    %c0_88 = arith.constant 0 : index
    %c0_89 = arith.constant 0 : index
    %116 = vector.load %arg9[%c1_87, %c0_88, %c0_89] : memref<4x64x32xf32, #tpu.memory_space<vmem>>, vector<1x64x32xf32>
    %117 = vector.shape_cast %116 : vector<1x64x32xf32> to vector<64x32xf32>
    %cst_90 = arith.constant dense<0.000000e+00> : vector<8x32xf32>
    %118 = tpu.matmul %102, %117, %cst_90 {dimension_numbers = #tpu.dot_dimension_numbers<[1], [0], [0], [1], [0, 0, 1, 1], [], []>} : vector<8x64xf32>, vector<64x32xf32>, vector<8x32xf32> -> vector<8x32xf32>
    %c1_91 = arith.constant 1 : index
    %c0_92 = arith.constant 0 : index
    %c0_93 = arith.constant 0 : index
    %119 = vector.load %arg10[%c1_91, %c0_92, %c0_93] : memref<4x32x32xf32, #tpu.memory_space<vmem>>, vector<1x32x32xf32>
    %120 = vector.shape_cast %119 : vector<1x32x32xf32> to vector<32x32xf32>
    %cst_94 = arith.constant dense<0.000000e+00> : vector<8x32xf32>
    %121 = tpu.matmul %103, %120, %cst_94 {dimension_numbers = #tpu.dot_dimension_numbers<[1], [0], [0], [1], [0, 0, 1, 1], [], []>} : vector<8x32xf32>, vector<32x32xf32>, vector<8x32xf32> -> vector<8x32xf32>
    %122 = arith.addf %118, %121 : vector<8x32xf32>
    %c1_95 = arith.constant 1 : index
    %c0_96 = arith.constant 0 : index
    %c0_97 = arith.constant 0 : index
    %123 = vector.load %arg11[%c1_95, %c0_96, %c0_97] : memref<4x1x32xf32, #tpu.memory_space<vmem>>, vector<1x1x32xf32>
    %124 = vector.shape_cast %123 : vector<1x1x32xf32> to vector<1x32xf32>
    %125 = vector.broadcast %124 : vector<1x32xf32> to vector<8x32xf32>
    %126 = arith.addf %122, %125 : vector<8x32xf32>
    %c2_98 = arith.constant 2 : index
    %c0_99 = arith.constant 0 : index
    %c0_100 = arith.constant 0 : index
    %127 = vector.load %arg9[%c2_98, %c0_99, %c0_100] : memref<4x64x32xf32, #tpu.memory_space<vmem>>, vector<1x64x32xf32>
    %128 = vector.shape_cast %127 : vector<1x64x32xf32> to vector<64x32xf32>
    %cst_101 = arith.constant dense<0.000000e+00> : vector<8x32xf32>
    %129 = tpu.matmul %102, %128, %cst_101 {dimension_numbers = #tpu.dot_dimension_numbers<[1], [0], [0], [1], [0, 0, 1, 1], [], []>} : vector<8x64xf32>, vector<64x32xf32>, vector<8x32xf32> -> vector<8x32xf32>
    %c2_102 = arith.constant 2 : index
    %c0_103 = arith.constant 0 : index
    %c0_104 = arith.constant 0 : index
    %130 = vector.load %arg10[%c2_102, %c0_103, %c0_104] : memref<4x32x32xf32, #tpu.memory_space<vmem>>, vector<1x32x32xf32>
    %131 = vector.shape_cast %130 : vector<1x32x32xf32> to vector<32x32xf32>
    %cst_105 = arith.constant dense<0.000000e+00> : vector<8x32xf32>
    %132 = tpu.matmul %103, %131, %cst_105 {dimension_numbers = #tpu.dot_dimension_numbers<[1], [0], [0], [1], [0, 0, 1, 1], [], []>} : vector<8x32xf32>, vector<32x32xf32>, vector<8x32xf32> -> vector<8x32xf32>
    %133 = arith.addf %129, %132 : vector<8x32xf32>
    %c2_106 = arith.constant 2 : index
    %c0_107 = arith.constant 0 : index
    %c0_108 = arith.constant 0 : index
    %134 = vector.load %arg11[%c2_106, %c0_107, %c0_108] : memref<4x1x32xf32, #tpu.memory_space<vmem>>, vector<1x1x32xf32>
    %135 = vector.shape_cast %134 : vector<1x1x32xf32> to vector<1x32xf32>
    %136 = vector.broadcast %135 : vector<1x32xf32> to vector<8x32xf32>
    %137 = arith.addf %133, %136 : vector<8x32xf32>
    %c3_109 = arith.constant 3 : index
    %c0_110 = arith.constant 0 : index
    %c0_111 = arith.constant 0 : index
    %138 = vector.load %arg9[%c3_109, %c0_110, %c0_111] : memref<4x64x32xf32, #tpu.memory_space<vmem>>, vector<1x64x32xf32>
    %139 = vector.shape_cast %138 : vector<1x64x32xf32> to vector<64x32xf32>
    %cst_112 = arith.constant dense<0.000000e+00> : vector<8x32xf32>
    %140 = tpu.matmul %102, %139, %cst_112 {dimension_numbers = #tpu.dot_dimension_numbers<[1], [0], [0], [1], [0, 0, 1, 1], [], []>} : vector<8x64xf32>, vector<64x32xf32>, vector<8x32xf32> -> vector<8x32xf32>
    %c3_113 = arith.constant 3 : index
    %c0_114 = arith.constant 0 : index
    %c0_115 = arith.constant 0 : index
    %141 = vector.load %arg10[%c3_113, %c0_114, %c0_115] : memref<4x32x32xf32, #tpu.memory_space<vmem>>, vector<1x32x32xf32>
    %142 = vector.shape_cast %141 : vector<1x32x32xf32> to vector<32x32xf32>
    %cst_116 = arith.constant dense<0.000000e+00> : vector<8x32xf32>
    %143 = tpu.matmul %103, %142, %cst_116 {dimension_numbers = #tpu.dot_dimension_numbers<[1], [0], [0], [1], [0, 0, 1, 1], [], []>} : vector<8x32xf32>, vector<32x32xf32>, vector<8x32xf32> -> vector<8x32xf32>
    %144 = arith.addf %140, %143 : vector<8x32xf32>
    %c3_117 = arith.constant 3 : index
    %c0_118 = arith.constant 0 : index
    %c0_119 = arith.constant 0 : index
    %145 = vector.load %arg11[%c3_117, %c0_118, %c0_119] : memref<4x1x32xf32, #tpu.memory_space<vmem>>, vector<1x1x32xf32>
    %146 = vector.shape_cast %145 : vector<1x1x32xf32> to vector<1x32xf32>
    %147 = vector.broadcast %146 : vector<1x32xf32> to vector<8x32xf32>
    %148 = arith.addf %144, %147 : vector<8x32xf32>
    %149 = arith.negf %115 : vector<8x32xf32>
    %150 = math.exp %149 : vector<8x32xf32>
    %cst_120 = arith.constant 1.000000e+00 : f32
    %151 = vector.broadcast %cst_120 : f32 to vector<8x32xf32>
    %152 = arith.addf %151, %150 : vector<8x32xf32>
    %153 = arith.divf %151, %152 : vector<8x32xf32>
    %154 = arith.negf %126 : vector<8x32xf32>
    %155 = math.exp %154 : vector<8x32xf32>
    %cst_121 = arith.constant 1.000000e+00 : f32
    %156 = vector.broadcast %cst_121 : f32 to vector<8x32xf32>
    %157 = arith.addf %156, %155 : vector<8x32xf32>
    %158 = arith.divf %156, %157 : vector<8x32xf32>
    %159 = math.tanh %137 : vector<8x32xf32>
    %160 = arith.negf %148 : vector<8x32xf32>
    %161 = math.exp %160 : vector<8x32xf32>
    %cst_122 = arith.constant 1.000000e+00 : f32
    %162 = vector.broadcast %cst_122 : f32 to vector<8x32xf32>
    %163 = arith.addf %162, %161 : vector<8x32xf32>
    %164 = arith.divf %162, %163 : vector<8x32xf32>
    %165 = arith.mulf %158, %104 : vector<8x32xf32>
    %166 = arith.mulf %153, %159 : vector<8x32xf32>
    %167 = arith.addf %165, %166 : vector<8x32xf32>
    %168 = math.tanh %167 : vector<8x32xf32>
    %169 = arith.mulf %164, %168 : vector<8x32xf32>
    %170 = vector.shape_cast %169 : vector<8x32xf32> to vector<8x1x32xf32>
    %c0_123 = arith.constant 0 : index
    %c0_124 = arith.constant 0 : index
    %c0_125 = arith.constant 0 : index
    %171 = vector.load %arg1[%c0_123, %c0_124, %c0_125] : memref<8x8x32xf32, #tpu.memory_space<vmem>>, vector<8x8x32xf32>
    "tpu.trace_start"() <{level = 10 : i32, message = "bqk,btk->bqt"}> : () -> ()
    %cst_126 = arith.constant dense<0.000000e+00> : vector<8x1x8xf32>
    %172 = tpu.matmul %170, %171, %cst_126 {dimension_numbers = #tpu.dot_dimension_numbers<[2], [2], [1], [1], [0, 0, 0, 1, 1, 1], [0], [0]>} : vector<8x1x32xf32>, vector<8x8x32xf32>, vector<8x1x8xf32> -> vector<8x1x8xf32>
    "tpu.trace_stop"() : () -> ()
    %c0_127 = arith.constant 0 : index
    %c0_128 = arith.constant 0 : index
    %c0_129 = arith.constant 0 : index
    %173 = vector.load %arg3[%c0_127, %c0_128, %c0_129] : memref<8x1x8xf32, #tpu.memory_space<vmem>>, vector<8x1x8xf32>
    %174 = arith.addf %172, %173 : vector<8x1x8xf32>
    %cst_130 = arith.constant dense<0xFF800000> : vector<8x1xf32>
    %175 = vector.multi_reduction <maximumf>, %174, %cst_130 [2] : vector<8x1x8xf32> to vector<8x1xf32>
    %cst_131 = arith.constant 0xFF800000 : f32
    %176 = vector.broadcast %cst_131 : f32 to vector<8x1xf32>
    %177 = arith.maximumf %176, %175 : vector<8x1xf32>
    %178 = vector.shape_cast %177 : vector<8x1xf32> to vector<8x1x1xf32>
    %179 = vector.broadcast %178 : vector<8x1x1xf32> to vector<8x1x8xf32>
    %180 = arith.subf %174, %179 : vector<8x1x8xf32>
    %181 = math.exp %180 : vector<8x1x8xf32>
    %cst_132 = arith.constant dense<0.000000e+00> : vector<8x1xf32>
    %182 = vector.multi_reduction <add>, %181, %cst_132 [2] : vector<8x1x8xf32> to vector<8x1xf32>
    %183 = vector.shape_cast %182 : vector<8x1xf32> to vector<8x1x1xf32>
    %184 = vector.broadcast %183 : vector<8x1x1xf32> to vector<8x1x8xf32>
    %185 = arith.divf %181, %184 : vector<8x1x8xf32>
    %c0_133 = arith.constant 0 : index
    %c0_134 = arith.constant 0 : index
    %c0_135 = arith.constant 0 : index
    %186 = vector.load %arg2[%c0_133, %c0_134, %c0_135] : memref<8x8x32xf32, #tpu.memory_space<vmem>>, vector<8x8x32xf32>
    "tpu.trace_start"() <{level = 10 : i32, message = "bqt,btk->bqk"}> : () -> ()
    %cst_136 = arith.constant dense<0.000000e+00> : vector<8x1x32xf32>
    %187 = tpu.matmul %185, %186, %cst_136 {dimension_numbers = #tpu.dot_dimension_numbers<[2], [1], [1], [2], [0, 0, 0, 1, 1, 2], [0], [0]>} : vector<8x1x8xf32>, vector<8x8x32xf32>, vector<8x1x32xf32> -> vector<8x1x32xf32>
    "tpu.trace_stop"() : () -> ()
    %188 = vector.shape_cast %187 : vector<8x1x32xf32> to vector<8x32xf32>
    %c0_137 = arith.constant 0 : index
    %c0_138 = arith.constant 0 : index
    %189 = vector.load %arg12[%c0_137, %c0_138] : memref<32x128xf32, #tpu.memory_space<vmem>>, vector<32x128xf32>
    %cst_139 = arith.constant dense<0.000000e+00> : vector<8x128xf32>
    %190 = tpu.matmul %169, %189, %cst_139 {dimension_numbers = #tpu.dot_dimension_numbers<[1], [0], [0], [1], [0, 0, 1, 1], [], []>} : vector<8x32xf32>, vector<32x128xf32>, vector<8x128xf32> -> vector<8x128xf32>
    %c0_140 = arith.constant 0 : index
    %c0_141 = arith.constant 0 : index
    %191 = vector.load %arg13[%c0_140, %c0_141] : memref<32x128xf32, #tpu.memory_space<vmem>>, vector<32x128xf32>
    %cst_142 = arith.constant dense<0.000000e+00> : vector<8x128xf32>
    %192 = tpu.matmul %188, %191, %cst_142 {dimension_numbers = #tpu.dot_dimension_numbers<[1], [0], [0], [1], [0, 0, 1, 1], [], []>} : vector<8x32xf32>, vector<32x128xf32>, vector<8x128xf32> -> vector<8x128xf32>
    %193 = arith.addf %190, %192 : vector<8x128xf32>
    %c0_143 = arith.constant 0 : index
    %c0_144 = arith.constant 0 : index
    %194 = vector.load %arg14[%c0_143, %c0_144] : memref<1x128xf32, #tpu.memory_space<vmem>>, vector<1x128xf32>
    %195 = vector.broadcast %194 : vector<1x128xf32> to vector<8x128xf32>
    %196 = arith.addf %193, %195 : vector<8x128xf32>
    %c0_145 = arith.constant 0 : index
    %c0_146 = arith.constant 0 : index
    %c0_147 = arith.constant 0 : index
    %197 = vector.load %arg15[%c0_145, %c0_146, %c0_147] : memref<1x8x128xf32, #tpu.memory_space<vmem>>, vector<1x8x128xf32>
    %198 = vector.shape_cast %197 : vector<1x8x128xf32> to vector<8x128xf32>
    %199 = vector.shape_cast %196 : vector<8x128xf32> to vector<1x8x128xf32>
    tpu.vector_store %arg15[%c0_145, %c0_146, %c0_147], %199 {strides = array<i32>} : memref<1x8x128xf32, #tpu.memory_space<vmem>>, vector<1x8x128xf32>,
    %200 = vector.extract_strided_slice %185 {offsets = [0, 0, 0], sizes = [1, 1, 8], strides = [1, 1, 1]} : vector<8x1x8xf32> to vector<1x1x8xf32>
    %c0_148 = arith.constant 0 : index
    %c0_149 = arith.constant 0 : index
    %c0_150 = arith.constant 0 : index
    %201 = vector.load %arg16[%c0_148, %c0_149, %c0_150] : memref<1x1x8xf32, #tpu.memory_space<vmem>>, vector<1x1x8xf32>
    tpu.vector_store %arg16[%c0_148, %c0_149, %c0_150], %200 {strides = array<i32>} : memref<1x1x8xf32, #tpu.memory_space<vmem>>, vector<1x1x8xf32>,
    %c0_151 = arith.constant 0 : index
    %c0_152 = arith.constant 0 : index
    %202 = vector.load %arg17[%c0_151, %c0_152] : memref<8x64xf32, #tpu.memory_space<vmem>>, vector<8x64xf32>
    tpu.vector_store %arg17[%c0_151, %c0_152], %102 {strides = array<i32>} : memref<8x64xf32, #tpu.memory_space<vmem>>, vector<8x64xf32>,
    %c0_153 = arith.constant 0 : index
    %c0_154 = arith.constant 0 : index
    %203 = vector.load %arg18[%c0_153, %c0_154] : memref<8x64xf32, #tpu.memory_space<vmem>>, vector<8x64xf32>
    tpu.vector_store %arg18[%c0_153, %c0_154], %100 {strides = array<i32>} : memref<8x64xf32, #tpu.memory_space<vmem>>, vector<8x64xf32>,
    %c0_155 = arith.constant 0 : index
    %c0_156 = arith.constant 0 : index
    %204 = vector.load %arg19[%c0_155, %c0_156] : memref<8x32xf32, #tpu.memory_space<vmem>>, vector<8x32xf32>
    tpu.vector_store %arg19[%c0_155, %c0_156], %169 {strides = array<i32>} : memref<8x32xf32, #tpu.memory_space<vmem>>, vector<8x32xf32>,
    %c0_157 = arith.constant 0 : index
    %c0_158 = arith.constant 0 : index
    %205 = vector.load %arg20[%c0_157, %c0_158] : memref<8x32xf32, #tpu.memory_space<vmem>>, vector<8x32xf32>
    tpu.vector_store %arg20[%c0_157, %c0_158], %167 {strides = array<i32>} : memref<8x32xf32, #tpu.memory_space<vmem>>, vector<8x32xf32>,
    %c0_159 = arith.constant 0 : index
    %c0_160 = arith.constant 0 : index
    %206 = vector.load %arg21[%c0_159, %c0_160] : memref<8x32xf32, #tpu.memory_space<vmem>>, vector<8x32xf32>
    tpu.vector_store %arg21[%c0_159, %c0_160], %188 {strides = array<i32>} : memref<8x32xf32, #tpu.memory_space<vmem>>, vector<8x32xf32>,
    %c0_161 = arith.constant 0 : index
    %c0_162 = arith.constant 0 : index
    %207 = vector.load %arg22[%c0_161, %c0_162] : memref<8x128xf32, #tpu.memory_space<vmem>>, vector<8x128xf32>
    tpu.vector_store %arg22[%c0_161, %c0_162], %196 {strides = array<i32>} : memref<8x128xf32, #tpu.memory_space<vmem>>, vector<8x128xf32>,
    return
  }
  func.func @transform_0(%arg0: i32) -> (i32, i32, i32) {
    %c0_i32 = arith.constant 0 : i32
    %c0_i32_0 = arith.constant 0 : i32
    %c0_i32_1 = arith.constant 0 : i32
    %c0_i32_2 = arith.constant 0 : i32
    return %c0_i32, %c0_i32_0, %c0_i32_1 : i32, i32, i32
  }
  func.func @transform_1(%arg0: i32) -> (i32, i32, i32) {
    %c0_i32 = arith.constant 0 : i32
    %c0_i32_0 = arith.constant 0 : i32
    %c0_i32_1 = arith.constant 0 : i32
    %c0_i32_2 = arith.constant 0 : i32
    return %c0_i32, %c0_i32_0, %c0_i32_1 : i32, i32, i32
  }
  func.func @transform_2(%arg0: i32) -> (i32, i32, i32) {
    %c0_i32 = arith.constant 0 : i32
    %c0_i32_0 = arith.constant 0 : i32
    %c0_i32_1 = arith.constant 0 : i32
    %c0_i32_2 = arith.constant 0 : i32
    return %c0_i32, %c0_i32_0, %c0_i32_1 : i32, i32, i32
  }
  func.func @transform_3(%arg0: i32) -> (i32, i32) {
    %c0_i32 = arith.constant 0 : i32
    %c0_i32_0 = arith.constant 0 : i32
    %c0_i32_1 = arith.constant 0 : i32
    return %c0_i32, %c0_i32_0 : i32, i32
  }
  func.func @transform_4(%arg0: i32) -> (i32, i32, i32) {
    %c0_i32 = arith.constant 0 : i32
    %c0_i32_0 = arith.constant 0 : i32
    %c0_i32_1 = arith.constant 0 : i32
    %c0_i32_2 = arith.constant 0 : i32
    return %c0_i32, %c0_i32_0, %c0_i32_1 : i32, i32, i32
  }
  func.func @transform_5(%arg0: i32) -> (i32, i32, i32) {
    %c0_i32 = arith.constant 0 : i32
    %c0_i32_0 = arith.constant 0 : i32
    %c0_i32_1 = arith.constant 0 : i32
    %c0_i32_2 = arith.constant 0 : i32
    return %c0_i32, %c0_i32_0, %c0_i32_1 : i32, i32, i32
  }
  func.func @transform_6(%arg0: i32) -> (i32, i32, i32) {
    %c0_i32 = arith.constant 0 : i32
    %c0_i32_0 = arith.constant 0 : i32
    %c0_i32_1 = arith.constant 0 : i32
    %c0_i32_2 = arith.constant 0 : i32
    return %c0_i32, %c0_i32_0, %c0_i32_1 : i32, i32, i32
  }
  func.func @transform_7(%arg0: i32) -> (i32, i32, i32) {
    %c0_i32 = arith.constant 0 : i32
    %c0_i32_0 = arith.constant 0 : i32
    %c0_i32_1 = arith.constant 0 : i32
    %c0_i32_2 = arith.constant 0 : i32
    return %c0_i32, %c0_i32_0, %c0_i32_1 : i32, i32, i32
  }
  func.func @transform_8(%arg0: i32) -> (i32, i32, i32) {
    %c0_i32 = arith.constant 0 : i32
    %c0_i32_0 = arith.constant 0 : i32
    %c0_i32_1 = arith.constant 0 : i32
    %c0_i32_2 = arith.constant 0 : i32
    return %c0_i32, %c0_i32_0, %c0_i32_1 : i32, i32, i32
  }
  func.func @transform_9(%arg0: i32) -> (i32, i32, i32) {
    %c0_i32 = arith.constant 0 : i32
    %c0_i32_0 = arith.constant 0 : i32
    %c0_i32_1 = arith.constant 0 : i32
    %c0_i32_2 = arith.constant 0 : i32
    return %c0_i32, %c0_i32_0, %c0_i32_1 : i32, i32, i32
  }
  func.func @transform_10(%arg0: i32) -> (i32, i32, i32) {
    %c0_i32 = arith.constant 0 : i32
    %c0_i32_0 = arith.constant 0 : i32
    %c0_i32_1 = arith.constant 0 : i32
    %c0_i32_2 = arith.constant 0 : i32
    return %c0_i32, %c0_i32_0, %c0_i32_1 : i32, i32, i32
  }
  func.func @transform_11(%arg0: i32) -> (i32, i32) {
    %c0_i32 = arith.constant 0 : i32
    %c0_i32_0 = arith.constant 0 : i32
    %c0_i32_1 = arith.constant 0 : i32
    return %c0_i32, %c0_i32_0 : i32, i32
  }
  func.func @transform_12(%arg0: i32) -> (i32, i32) {
    %c0_i32 = arith.constant 0 : i32
    %c0_i32_0 = arith.constant 0 : i32
    %c0_i32_1 = arith.constant 0 : i32
    return %c0_i32, %c0_i32_0 : i32, i32
  }
  func.func @transform_13(%arg0: i32) -> (i32, i32) {
    %c0_i32 = arith.constant 0 : i32
    %c0_i32_0 = arith.constant 0 : i32
    %c0_i32_1 = arith.constant 0 : i32
    return %c0_i32, %c0_i32_0 : i32, i32
  }
  func.func @transform_14(%arg0: i32) -> (i32, i32, i32) {
    %c0_i32 = arith.constant 0 : i32
    %c0_i32_0 = arith.constant 0 : i32
    %c0_i32_1 = arith.constant 0 : i32
    return %arg0, %c0_i32, %c0_i32_0 : i32, i32, i32
  }
  func.func @transform_15(%arg0: i32) -> (i32, i32, i32) {
    %c0_i32 = arith.constant 0 : i32
    %c0_i32_0 = arith.constant 0 : i32
    %c0_i32_1 = arith.constant 0 : i32
    return %arg0, %c0_i32, %c0_i32_0 : i32, i32, i32
  }
}

</mosaic_0001>

<llo_original>
// kernel: decoder_forward.1
$region0: #{decoder_forward.1}
  #allocation0 [shape = 'u32[]', space=smem, size = 0x4, offset = 0x4, fixed_abs, tag = 'smem constant byte address 0x4 - core index']
  #allocation1 [shape = 'u32[144,128]{1,0:T(1,128)}', space=vmem, size = 0x12000, scoped, tag = 'internal scratch']
  #allocation2 [shape = 'f32[8,64]{1,0:T(8,128)}', space=vmem, size = 0x1000, scoped, tag = 'scratch operand']
  #allocation3 [shape = 'f32[8,64]{1,0:T(8,128)}', space=vmem, size = 0x1000, scoped, tag = 'scratch operand']
  #allocation4 [shape = 'f32[8,32]{1,0:T(8,128)}', space=vmem, size = 0x1000, scoped, tag = 'scratch operand']
  #allocation5 [shape = 'f32[8,32]{1,0:T(8,128)}', space=vmem, size = 0x1000, scoped, tag = 'scratch operand']
  #allocation6 [shape = 'f32[8,32]{1,0:T(8,128)}', space=vmem, size = 0x1000, scoped, tag = 'scratch operand']
  #allocation7 [shape = 'f32[8,128]{1,0:T(8,128)}', space=vmem, size = 0x1000, scoped, tag = 'scratch operand']
  %s0 = inlined_call_operand.vmem [shape: f32[8,8,32], index: 0, kind: input, shape index: {}]
  %s1 = inlined_call_operand.hbm [shape: f32[8,8,32], index: 1, kind: input, shape index: {}]
  %s2 = inlined_call_operand.vmem [shape: f32[8,1,8], index: 2, kind: input, shape index: {}]
  %s3 = inlined_call_operand.vmem [shape: f32[128,64], index: 3, kind: input, shape index: {}]
  %s4 = inlined_call_operand.vmem [shape: f32[4,64,64], index: 4, kind: input, shape index: {}]
  %s5 = inlined_call_operand.hbm [shape: f32[4,32,64], index: 5, kind: input, shape index: {}]
  %s6 = inlined_call_operand.vmem [shape: f32[4,64,64], index: 6, kind: input, shape index: {}]
  %s7 = inlined_call_operand.vmem [shape: f32[4,1,64], index: 7, kind: input, shape index: {}]
  %s8 = inlined_call_operand.vmem [shape: f32[4,64,32], index: 8, kind: input, shape index: {}]
  %s9 = inlined_call_operand.hbm [shape: f32[4,32,32], index: 9, kind: input, shape index: {}]
  %s10 = inlined_call_operand.vmem [shape: f32[4,1,32], index: 10, kind: input, shape index: {}]
  %s11 = inlined_call_operand.vmem [shape: f32[32,128], index: 11, kind: input, shape index: {}]
  %s12 = inlined_call_operand.hbm [shape: f32[32,128], index: 12, kind: input, shape index: {}]
  %s13 = inlined_call_operand.vmem [shape: f32[1,128], index: 13, kind: input, shape index: {}]
  %s14 = inlined_call_operand.vmem [shape: f32[16,8,128], index: 14, kind: output, shape index: {0}]
  %s15 = inlined_call_operand.vmem [shape: f32[16,1,8], index: 15, kind: output, shape index: {1}]
  %16 = xla_tuple %s14, %s15
  %s17 = sld [smem:[#allocation0]]
  $region117: #{decoder_forward.1} parent=0
    _
  %s19 = ssub.s32 1, %s17
  %s20 = scalar_select 0, %s19, %s17
  $region1: #{decoder_forward.1} parent=0
    #allocation8 [shape = 'u8[32768]{0}', space=vmem, size = 0x8000, scoped, tag = 'input window, operand 1, single buffered']
    #allocation9 [shape = 's32[2]{0}', space=sflag, size = 0x8, scoped, tag = 'scoped memory for decoder_forward.1']
    #allocation10 [shape = 'u8[65536]{0}', space=vmem, size = 0x10000, scoped, tag = 'input window, operand 5, single buffered']
    #allocation11 [shape = 's32[1]{0}', space=sflag, size = 0x4, scoped, tag = 'scoped memory for decoder_forward.1']
    #allocation12 [shape = 'u8[65536]{0}', space=vmem, size = 0x10000, scoped, tag = 'input window, operand 9, single buffered']
    #allocation13 [shape = 'u8[16384]{0}', space=vmem, size = 0x4000, scoped, tag = 'input window, operand 12, single buffered']
    #allocation14 [shape = 's32[1]{0}', space=sflag, size = 0x4, scoped, tag = 'scoped memory for decoder_forward.1']
    %21 = vsyncpa [#allocation9], 0
    %22 = vsyncpa [#allocation11], 0
    %23 = vsyncpa [#allocation14], 0
    loop: start=0, step=1, limit=18
    $region2: #{decoder_forward.1} parent=1 // loop_pre_header
      _
    $region3: #{decoder_forward.1} parent=1 // loop_header
      %s25 = sphi 0, %s29
      %p26 = scmp.ge.s32.totalorder %s25, 18
      %s33 = sphi 0, %s33
      %s35 = sphi 0, %s33
      %s36 = sphi 0, %s35
      %s50 = sphi 0, %s36
      %s54 = sphi 0, %s54
      %s56 = sphi 0, %s54
      %s57 = sphi 0, %s56
      %s71 = sphi 0, %s57
      %s75 = sphi 0, %s75
      %s77 = sphi 0, %s75
      %s78 = sphi 0, %s77
      %s92 = sphi 0, %s78
      %s96 = sphi 0, %s96
      %s98 = sphi 0, %s96
      %s99 = sphi 0, %s98
      %s113 = sphi 0, %s99
      %s117 = sphi 0, %s117
      %s119 = sphi 0, %s117
      %s120 = sphi 0, %s119
      %s134 = sphi 0, %s120
      %s138 = sphi 0, %s138
      %s140 = sphi 0, %s138
      %s141 = sphi 0, %s140
      %s155 = sphi 0, %s141
      %s159 = sphi 0, %s159
      %s161 = sphi 0, %s159
      %s162 = sphi 0, %s161
      %s176 = sphi 0, %s162
      %s180 = sphi 0, %s180
      %s182 = sphi 0, %s180
      %s183 = sphi 0, %s182
      %s197 = sphi 0, %s183
      %s201 = sphi 0, %s201
      %s203 = sphi 0, %s201
      %s204 = sphi 0, %s203
      %s218 = sphi 0, %s204
      %s222 = sphi 0, %s222
      %s224 = sphi 0, %s222
      %s225 = sphi 0, %s224
      %s239 = sphi 0, %s225
      %s243 = sphi 0, %s243
      %s245 = sphi 0, %s243
      %s246 = sphi 0, %s245
      %s260 = sphi 0, %s246
      %s264 = sphi 0, %s264
      %s266 = sphi 0, %s264
      %s267 = sphi 0, %s266
      %s281 = sphi 0, %s267
      %s285 = sphi 0, %s285
      %s287 = sphi 0, %s285
      %s288 = sphi 0, %s287
      %s302 = sphi 0, %s288
      %s306 = sphi 0, %s306
      %s308 = sphi 0, %s306
      %s309 = sphi 0, %s308
      %s323 = sphi 0, %s309
      %s329 = sphi 0, %s331
      %s332 = sphi 0, %s329
      %s333 = sphi 0, %s332
      %s349 = sphi 0, %s333
      %s355 = sphi 0, %s357
      %s358 = sphi 0, %s355
      %s359 = sphi 0, %s358
      %s375 = sphi 0, %s359
    $region4: #{decoder_forward.1} parent=1 // loop_header_branch
      %28 = sbr.rel (%p26) target = $region8
    $region5: #{decoder_forward.1} parent=1 // loop_body
      %s30 = ssub.s32 %s25, 1
      %s31 = ssub.s32 %s25, 2
      %s32 = sadd.s32 %s25, 1
      %s34 = sadd.s32 %s33, 1
      %p37 = scmp.eq.s32.totalorder %s25, 15
      %p38 = scmp.ne.s32.totalorder %s33, %s35
      %p39 = scmp.eq.s32.totalorder %s25, 0
      %p40 = por %p38, %p39
      %p41 = scmp.ne.s32.totalorder %s33, %s35
      %p42 = scmp.eq.s32.totalorder %s30, 15
      %p43 = por %p41, %p42
      %p44 = scmp.ne.s32.totalorder %s35, %s36
      %p45 = scmp.eq.s32.totalorder %s30, 0
      %p46 = por %p44, %p45
      %p47 = scmp.ne.s32.totalorder %s35, %s36
      %p48 = scmp.eq.s32.totalorder %s31, 15
      %p49 = por %p47, %p48
      %p51 = scmp.ne.s32.totalorder %s36, %s50
      %p52 = scmp.eq.s32.totalorder %s31, 0
      %p53 = por %p51, %p52
      %s55 = sadd.s32 %s54, 1
      %p58 = scmp.eq.s32.totalorder %s25, 15
      %p59 = scmp.ne.s32.totalorder %s54, %s56
      %p60 = scmp.eq.s32.totalorder %s25, 0
      %p61 = por %p59, %p60
      %p62 = scmp.ne.s32.totalorder %s54, %s56
      %p63 = scmp.eq.s32.totalorder %s30, 15
      %p64 = por %p62, %p63
      %p65 = scmp.ne.s32.totalorder %s56, %s57
      %p66 = scmp.eq.s32.totalorder %s30, 0
      %p67 = por %p65, %p66
      %p68 = scmp.ne.s32.totalorder %s56, %s57
      %p69 = scmp.eq.s32.totalorder %s31, 15
      %p70 = por %p68, %p69
      %p72 = scmp.ne.s32.totalorder %s57, %s71
      %p73 = scmp.eq.s32.totalorder %s31, 0
      %p74 = por %p72, %p73
      %s76 = sadd.s32 %s75, 1
      %p79 = scmp.eq.s32.totalorder %s25, 15
      %p80 = scmp.ne.s32.totalorder %s75, %s77
      %p81 = scmp.eq.s32.totalorder %s25, 0
      %p82 = por %p80, %p81
      %p83 = scmp.ne.s32.totalorder %s75, %s77
      %p84 = scmp.eq.s32.totalorder %s30, 15
      %p85 = por %p83, %p84
      %p86 = scmp.ne.s32.totalorder %s77, %s78
      %p87 = scmp.eq.s32.totalorder %s30, 0
      %p88 = por %p86, %p87
      %p89 = scmp.ne.s32.totalorder %s77, %s78
      %p90 = scmp.eq.s32.totalorder %s31, 15
      %p91 = por %p89, %p90
      %p93 = scmp.ne.s32.totalorder %s78, %s92
      %p94 = scmp.eq.s32.totalorder %s31, 0
      %p95 = por %p93, %p94
      %s97 = sadd.s32 %s96, 1
      %p100 = scmp.eq.s32.totalorder %s25, 15
      %p101 = scmp.ne.s32.totalorder %s96, %s98
      %p102 = scmp.eq.s32.totalorder %s25, 0
      %p103 = por %p101, %p102
      %p104 = scmp.ne.s32.totalorder %s96, %s98
      %p105 = scmp.eq.s32.totalorder %s30, 15
      %p106 = por %p104, %p105
      %p107 = scmp.ne.s32.totalorder %s98, %s99
      %p108 = scmp.eq.s32.totalorder %s30, 0
      %p109 = por %p107, %p108
      %p110 = scmp.ne.s32.totalorder %s98, %s99
      %p111 = scmp.eq.s32.totalorder %s31, 15
      %p112 = por %p110, %p111
      %p114 = scmp.ne.s32.totalorder %s99, %s113
      %p115 = scmp.eq.s32.totalorder %s31, 0
      %p116 = por %p114, %p115
      %s118 = sadd.s32 %s117, 1
      %p121 = scmp.eq.s32.totalorder %s25, 15
      %p122 = scmp.ne.s32.totalorder %s117, %s119
      %p123 = scmp.eq.s32.totalorder %s25, 0
      %p124 = por %p122, %p123
      %p125 = scmp.ne.s32.totalorder %s117, %s119
      %p126 = scmp.eq.s32.totalorder %s30, 15
      %p127 = por %p125, %p126
      %p128 = scmp.ne.s32.totalorder %s119, %s120
      %p129 = scmp.eq.s32.totalorder %s30, 0
      %p130 = por %p128, %p129
      %p131 = scmp.ne.s32.totalorder %s119, %s120
      %p132 = scmp.eq.s32.totalorder %s31, 15
      %p133 = por %p131, %p132
      %p135 = scmp.ne.s32.totalorder %s120, %s134
      %p136 = scmp.eq.s32.totalorder %s31, 0
      %p137 = por %p135, %p136
      %s139 = sadd.s32 %s138, 1
      %p142 = scmp.eq.s32.totalorder %s25, 15
      %p143 = scmp.ne.s32.totalorder %s138, %s140
      %p144 = scmp.eq.s32.totalorder %s25, 0
      %p145 = por %p143, %p144
      %p146 = scmp.ne.s32.totalorder %s138, %s140
      %p147 = scmp.eq.s32.totalorder %s30, 15
      %p148 = por %p146, %p147
      %p149 = scmp.ne.s32.totalorder %s140, %s141
      %p150 = scmp.eq.s32.totalorder %s30, 0
      %p151 = por %p149, %p150
      %p152 = scmp.ne.s32.totalorder %s140, %s141
      %p153 = scmp.eq.s32.totalorder %s31, 15
      %p154 = por %p152, %p153
      %p156 = scmp.ne.s32.totalorder %s141, %s155
      %p157 = scmp.eq.s32.totalorder %s31, 0
      %p158 = por %p156, %p157
      %s160 = sadd.s32 %s159, 1
      %p163 = scmp.eq.s32.totalorder %s25, 15
      %p164 = scmp.ne.s32.totalorder %s159, %s161
      %p165 = scmp.eq.s32.totalorder %s25, 0
      %p166 = por %p164, %p165
      %p167 = scmp.ne.s32.totalorder %s159, %s161
      %p168 = scmp.eq.s32.totalorder %s30, 15
      %p169 = por %p167, %p168
      %p170 = scmp.ne.s32.totalorder %s161, %s162
      %p171 = scmp.eq.s32.totalorder %s30, 0
      %p172 = por %p170, %p171
      %p173 = scmp.ne.s32.totalorder %s161, %s162
      %p174 = scmp.eq.s32.totalorder %s31, 15
      %p175 = por %p173, %p174
      %p177 = scmp.ne.s32.totalorder %s162, %s176
      %p178 = scmp.eq.s32.totalorder %s31, 0
      %p179 = por %p177, %p178
      %s181 = sadd.s32 %s180, 1
      %p184 = scmp.eq.s32.totalorder %s25, 15
      %p185 = scmp.ne.s32.totalorder %s180, %s182
      %p186 = scmp.eq.s32.totalorder %s25, 0
      %p187 = por %p185, %p186
      %p188 = scmp.ne.s32.totalorder %s180, %s182
      %p189 = scmp.eq.s32.totalorder %s30, 15
      %p190 = por %p188, %p189
      %p191 = scmp.ne.s32.totalorder %s182, %s183
      %p192 = scmp.eq.s32.totalorder %s30, 0
      %p193 = por %p191, %p192
      %p194 = scmp.ne.s32.totalorder %s182, %s183
      %p195 = scmp.eq.s32.totalorder %s31, 15
      %p196 = por %p194, %p195
      %p198 = scmp.ne.s32.totalorder %s183, %s197
      %p199 = scmp.eq.s32.totalorder %s31, 0
      %p200 = por %p198, %p199
      %s202 = sadd.s32 %s201, 1
      %p205 = scmp.eq.s32.totalorder %s25, 15
      %p206 = scmp.ne.s32.totalorder %s201, %s203
      %p207 = scmp.eq.s32.totalorder %s25, 0
      %p208 = por %p206, %p207
      %p209 = scmp.ne.s32.totalorder %s201, %s203
      %p210 = scmp.eq.s32.totalorder %s30, 15
      %p211 = por %p209, %p210
      %p212 = scmp.ne.s32.totalorder %s203, %s204
      %p213 = scmp.eq.s32.totalorder %s30, 0
      %p214 = por %p212, %p213
      %p215 = scmp.ne.s32.totalorder %s203, %s204
      %p216 = scmp.eq.s32.totalorder %s31, 15
      %p217 = por %p215, %p216
      %p219 = scmp.ne.s32.totalorder %s204, %s218
      %p220 = scmp.eq.s32.totalorder %s31, 0
      %p221 = por %p219, %p220
      %s223 = sadd.s32 %s222, 1
      %p226 = scmp.eq.s32.totalorder %s25, 15
      %p227 = scmp.ne.s32.totalorder %s222, %s224
      %p228 = scmp.eq.s32.totalorder %s25, 0
      %p229 = por %p227, %p228
      %p230 = scmp.ne.s32.totalorder %s222, %s224
      %p231 = scmp.eq.s32.totalorder %s30, 15
      %p232 = por %p230, %p231
      %p233 = scmp.ne.s32.totalorder %s224, %s225
      %p234 = scmp.eq.s32.totalorder %s30, 0
      %p235 = por %p233, %p234
      %p236 = scmp.ne.s32.totalorder %s224, %s225
      %p237 = scmp.eq.s32.totalorder %s31, 15
      %p238 = por %p236, %p237
      %p240 = scmp.ne.s32.totalorder %s225, %s239
      %p241 = scmp.eq.s32.totalorder %s31, 0
      %p242 = por %p240, %p241
      %s244 = sadd.s32 %s243, 1
      %p247 = scmp.eq.s32.totalorder %s25, 15
      %p248 = scmp.ne.s32.totalorder %s243, %s245
      %p249 = scmp.eq.s32.totalorder %s25, 0
      %p250 = por %p248, %p249
      %p251 = scmp.ne.s32.totalorder %s243, %s245
      %p252 = scmp.eq.s32.totalorder %s30, 15
      %p253 = por %p251, %p252
      %p254 = scmp.ne.s32.totalorder %s245, %s246
      %p255 = scmp.eq.s32.totalorder %s30, 0
      %p256 = por %p254, %p255
      %p257 = scmp.ne.s32.totalorder %s245, %s246
      %p258 = scmp.eq.s32.totalorder %s31, 15
      %p259 = por %p257, %p258
      %p261 = scmp.ne.s32.totalorder %s246, %s260
      %p262 = scmp.eq.s32.totalorder %s31, 0
      %p263 = por %p261, %p262
      %s265 = sadd.s32 %s264, 1
      %p268 = scmp.eq.s32.totalorder %s25, 15
      %p269 = scmp.ne.s32.totalorder %s264, %s266
      %p270 = scmp.eq.s32.totalorder %s25, 0
      %p271 = por %p269, %p270
      %p272 = scmp.ne.s32.totalorder %s264, %s266
      %p273 = scmp.eq.s32.totalorder %s30, 15
      %p274 = por %p272, %p273
      %p275 = scmp.ne.s32.totalorder %s266, %s267
      %p276 = scmp.eq.s32.totalorder %s30, 0
      %p277 = por %p275, %p276
      %p278 = scmp.ne.s32.totalorder %s266, %s267
      %p279 = scmp.eq.s32.totalorder %s31, 15
      %p280 = por %p278, %p279
      %p282 = scmp.ne.s32.totalorder %s267, %s281
      %p283 = scmp.eq.s32.totalorder %s31, 0
      %p284 = por %p282, %p283
      %s286 = sadd.s32 %s285, 1
      %p289 = scmp.eq.s32.totalorder %s25, 15
      %p290 = scmp.ne.s32.totalorder %s285, %s287
      %p291 = scmp.eq.s32.totalorder %s25, 0
      %p292 = por %p290, %p291
      %p293 = scmp.ne.s32.totalorder %s285, %s287
      %p294 = scmp.eq.s32.totalorder %s30, 15
      %p295 = por %p293, %p294
      %p296 = scmp.ne.s32.totalorder %s287, %s288
      %p297 = scmp.eq.s32.totalorder %s30, 0
      %p298 = por %p296, %p297
      %p299 = scmp.ne.s32.totalorder %s287, %s288
      %p300 = scmp.eq.s32.totalorder %s31, 15
      %p301 = por %p299, %p300
      %p303 = scmp.ne.s32.totalorder %s288, %s302
      %p304 = scmp.eq.s32.totalorder %s31, 0
      %p305 = por %p303, %p304
      %s307 = sadd.s32 %s306, 1
      %p310 = scmp.eq.s32.totalorder %s25, 15
      %p311 = scmp.ne.s32.totalorder %s306, %s308
      %p312 = scmp.eq.s32.totalorder %s25, 0
      %p313 = por %p311, %p312
      %p314 = scmp.ne.s32.totalorder %s306, %s308
      %p315 = scmp.eq.s32.totalorder %s30, 15
      %p316 = por %p314, %p315
      %p317 = scmp.ne.s32.totalorder %s308, %s309
      %p318 = scmp.eq.s32.totalorder %s30, 0
      %p319 = por %p317, %p318
      %p320 = scmp.ne.s32.totalorder %s308, %s309
      %p321 = scmp.eq.s32.totalorder %s31, 15
      %p322 = por %p320, %p321
      %p324 = scmp.ne.s32.totalorder %s309, %s323
      %p325 = scmp.eq.s32.totalorder %s31, 0
      %p326 = por %p324, %p325
      %s327 = ssub.s32 %s25, %s32
      %p328 = scmp.eq.s32.totalorder %s327, 0
      %s330 = sadd.s32 %s329, 1
      %s331 = scalar_select %p328, %s329, %s330
      %p334 = pneg %p328
      %p335 = scmp.eq.s32.totalorder %s25, 15
      %p336 = por %p334, %p335
      %p337 = scmp.ne.s32.totalorder %s329, %s332
      %p338 = scmp.eq.s32.totalorder %s25, 0
      %p339 = por %p337, %p338
      %p340 = scmp.ne.s32.totalorder %s329, %s332
      %p341 = scmp.eq.s32.totalorder %s30, 15
      %p342 = por %p340, %p341
      %p343 = scmp.ne.s32.totalorder %s332, %s333
      %p344 = scmp.eq.s32.totalorder %s30, 0
      %p345 = por %p343, %p344
      %p346 = scmp.ne.s32.totalorder %s332, %s333
      %p347 = scmp.eq.s32.totalorder %s31, 15
      %p348 = por %p346, %p347
      %p350 = scmp.ne.s32.totalorder %s333, %s349
      %p351 = scmp.eq.s32.totalorder %s31, 0
      %p352 = por %p350, %p351
      %s353 = ssub.s32 %s25, %s32
      %p354 = scmp.eq.s32.totalorder %s353, 0
      %s356 = sadd.s32 %s355, 1
      %s357 = scalar_select %p354, %s355, %s356
      %p360 = pneg %p354
      %p361 = scmp.eq.s32.totalorder %s25, 15
      %p362 = por %p360, %p361
      %p363 = scmp.ne.s32.totalorder %s355, %s358
      %p364 = scmp.eq.s32.totalorder %s25, 0
      %p365 = por %p363, %p364
      %p366 = scmp.ne.s32.totalorder %s355, %s358
      %p367 = scmp.eq.s32.totalorder %s30, 15
      %p368 = por %p366, %p367
      %p369 = scmp.ne.s32.totalorder %s358, %s359
      %p370 = scmp.eq.s32.totalorder %s30, 0
      %p371 = por %p369, %p370
      %p372 = scmp.ne.s32.totalorder %s358, %s359
      %p373 = scmp.eq.s32.totalorder %s31, 15
      %p374 = por %p372, %p373
      %p376 = scmp.ne.s32.totalorder %s359, %s375
      %p377 = scmp.eq.s32.totalorder %s31, 0
      %p378 = por %p376, %p377
      %p379 = scmp.le.s32.totalorder 1, %s25
      %p380 = scmp.lt.s32.totalorder %s25, 17
      %p381 = pnand %p379, %p380
      %p382 = pneg %p381
      // Predicated region
      $region9: #{decoder_forward.1} parent=5 // pred_check
        _
      $region10: #{decoder_forward.1} parent=5 // pred_check_branch
        %384 = sbr.rel (%p381) target = $region12
      $region11: #{decoder_forward.1} parent=5 // pred_region
        %s385 = ssub.s32 %s25, 1
        // Predicated region
        $region13: #{decoder_forward.1} parent=11 // pred_check
          %p386 = pneg %p46
        $region14: #{decoder_forward.1} parent=11 // pred_check_branch
          %388 = sbr.rel (%p386) target = $region16
        $region15: #{decoder_forward.1} parent=11 // pred_region
          _
        $region16: #{decoder_forward.1} parent=11 // pred_fallthru
          _
        // Predicated region
        $region17: #{decoder_forward.1} parent=11 // pred_check
          %p389 = pneg %p67
        $region18: #{decoder_forward.1} parent=11 // pred_check_branch
          %391 = sbr.rel (%p389) target = $region20
        $region19: #{decoder_forward.1} parent=11 // pred_region
          %s393 = ssub.s32 1024, 1024
          %394 = vsyncadd [#allocation9], %s393
          %s395 = sshll.u32 [#allocation8], 4
          %s396 = int_to_ptr.vmem [resolvable:$true] %s395
          %401 = dma.hbm_to_vmem [thread:$0]  %s1, 1024, %s396, [#allocation9], 128, 128, 8
        $region20: #{decoder_forward.1} parent=11 // pred_fallthru
          _
        // Predicated region
        $region21: #{decoder_forward.1} parent=11 // pred_check
          %p402 = pneg %p88
        $region22: #{decoder_forward.1} parent=11 // pred_check_branch
          %404 = sbr.rel (%p402) target = $region24
        $region23: #{decoder_forward.1} parent=11 // pred_region
          _
        $region24: #{decoder_forward.1} parent=11 // pred_fallthru
          _
        // Predicated region
        $region25: #{decoder_forward.1} parent=11 // pred_check
          %p405 = pneg %p109
        $region26: #{decoder_forward.1} parent=11 // pred_check_branch
          %407 = sbr.rel (%p405) target = $region28
        $region27: #{decoder_forward.1} parent=11 // pred_region
          _
        $region28: #{decoder_forward.1} parent=11 // pred_fallthru
          _
        // Predicated region
        $region29: #{decoder_forward.1} parent=11 // pred_check
          %p408 = pneg %p130
        $region30: #{decoder_forward.1} parent=11 // pred_check_branch
          %410 = sbr.rel (%p408) target = $region32
        $region31: #{decoder_forward.1} parent=11 // pred_region
          _
        $region32: #{decoder_forward.1} parent=11 // pred_fallthru
          _
        // Predicated region
        $region33: #{decoder_forward.1} parent=11 // pred_check
          %p411 = pneg %p151
        $region34: #{decoder_forward.1} parent=11 // pred_check_branch
          %413 = sbr.rel (%p411) target = $region36
        $region35: #{decoder_forward.1} parent=11 // pred_region
          %s415 = ssub.s32 2048, 2048
          %416 = vsyncadd [#allocation11], %s415
          %s417 = sshll.u32 [#allocation10], 4
          %s418 = int_to_ptr.vmem [resolvable:$true] %s417
          %423 = dma.hbm_to_vmem [thread:$0]  %s5, 2048, %s418, [#allocation11], 128, 128, 8
        $region36: #{decoder_forward.1} parent=11 // pred_fallthru
          _
        // Predicated region
        $region37: #{decoder_forward.1} parent=11 // pred_check
          %p424 = pneg %p172
        $region38: #{decoder_forward.1} parent=11 // pred_check_branch
          %426 = sbr.rel (%p424) target = $region40
        $region39: #{decoder_forward.1} parent=11 // pred_region
          _
        $region40: #{decoder_forward.1} parent=11 // pred_fallthru
          _
        // Predicated region
        $region41: #{decoder_forward.1} parent=11 // pred_check
          %p427 = pneg %p193
        $region42: #{decoder_forward.1} parent=11 // pred_check_branch
          %429 = sbr.rel (%p427) target = $region44
        $region43: #{decoder_forward.1} parent=11 // pred_region
          _
        $region44: #{decoder_forward.1} parent=11 // pred_fallthru
          _
        // Predicated region
        $region45: #{decoder_forward.1} parent=11 // pred_check
          %p430 = pneg %p214
        $region46: #{decoder_forward.1} parent=11 // pred_check_branch
          %432 = sbr.rel (%p430) target = $region48
        $region47: #{decoder_forward.1} parent=11 // pred_region
          _
        $region48: #{decoder_forward.1} parent=11 // pred_fallthru
          _
        // Predicated region
        $region49: #{decoder_forward.1} parent=11 // pred_check
          %p433 = pneg %p235
        $region50: #{decoder_forward.1} parent=11 // pred_check_branch
          %435 = sbr.rel (%p433) target = $region52
        $region51: #{decoder_forward.1} parent=11 // pred_region
          %s437 = ssub.s32 2048, 2048
          %438 = vsyncadd [#allocation11], %s437
          %s439 = sshll.u32 [#allocation12], 4
          %s440 = int_to_ptr.vmem [resolvable:$true] %s439
          %445 = dma.hbm_to_vmem [thread:$0]  %s9, 2048, %s440, [#allocation11], 128, 128, 8
        $region52: #{decoder_forward.1} parent=11 // pred_fallthru
          _
        // Predicated region
        $region53: #{decoder_forward.1} parent=11 // pred_check
          %p446 = pneg %p256
        $region54: #{decoder_forward.1} parent=11 // pred_check_branch
          %448 = sbr.rel (%p446) target = $region56
        $region55: #{decoder_forward.1} parent=11 // pred_region
          _
        $region56: #{decoder_forward.1} parent=11 // pred_fallthru
          _
        // Predicated region
        $region57: #{decoder_forward.1} parent=11 // pred_check
          %p449 = pneg %p277
        $region58: #{decoder_forward.1} parent=11 // pred_check_branch
          %451 = sbr.rel (%p449) target = $region60
        $region59: #{decoder_forward.1} parent=11 // pred_region
          _
        $region60: #{decoder_forward.1} parent=11 // pred_fallthru
          _
        // Predicated region
        $region61: #{decoder_forward.1} parent=11 // pred_check
          %p452 = pneg %p298
        $region62: #{decoder_forward.1} parent=11 // pred_check_branch
          %454 = sbr.rel (%p452) target = $region64
        $region63: #{decoder_forward.1} parent=11 // pred_region
          %s456 = ssub.s32 512, 512
          %457 = vsyncadd [#allocation14], %s456
          %s458 = sshll.u32 [#allocation13], 4
          %s459 = int_to_ptr.vmem [resolvable:$true] %s458
          %464 = dma.hbm_to_vmem [thread:$0]  %s12, 512, %s459, [#allocation14], 128, 128, 8
        $region64: #{decoder_forward.1} parent=11 // pred_fallthru
          _
        // Predicated region
        $region65: #{decoder_forward.1} parent=11 // pred_check
          %p465 = pneg %p319
        $region66: #{decoder_forward.1} parent=11 // pred_check_branch
          %467 = sbr.rel (%p465) target = $region68
        $region67: #{decoder_forward.1} parent=11 // pred_region
          _
        $region68: #{decoder_forward.1} parent=11 // pred_fallthru
          _
      $region12: #{decoder_forward.1} parent=5 // pred_fallthru
        _
      %p468 = scmp.lt.s32.totalorder %s25, 16
      // Predicated region
      $region69: #{decoder_forward.1} parent=5 // pred_check
        %p469 = pneg %p468
      $region70: #{decoder_forward.1} parent=5 // pred_check_branch
        %471 = sbr.rel (%p469) target = $region72
      $region71: #{decoder_forward.1} parent=5 // pred_region
        _
      $region72: #{decoder_forward.1} parent=5 // pred_fallthru
        _
      %p472 = scmp.le.s32.totalorder 1, %s25
      %p473 = scmp.lt.s32.totalorder %s25, 17
      %p474 = pnand %p472, %p473
      %p475 = pneg %p474
      // Predicated region
      $region73: #{decoder_forward.1} parent=5 // pred_check
        _
      $region74: #{decoder_forward.1} parent=5 // pred_check_branch
        %477 = sbr.rel (%p474) target = $region76
      $region75: #{decoder_forward.1} parent=5 // pred_region
        %s478 = ssub.s32 %s25, 1
        // Predicated region
        $region77: #{decoder_forward.1} parent=75 // pred_check
          %p479 = pneg %p67
        $region78: #{decoder_forward.1} parent=75 // pred_check_branch
          %481 = sbr.rel (%p479) target = $region80
        $region79: #{decoder_forward.1} parent=75 // pred_region
          %482 = dma.done [#allocation9], 1024
        $region80: #{decoder_forward.1} parent=75 // pred_fallthru
          _
        // Predicated region
        $region81: #{decoder_forward.1} parent=75 // pred_check
          %p483 = pneg %p151
        $region82: #{decoder_forward.1} parent=75 // pred_check_branch
          %485 = sbr.rel (%p483) target = $region84
        $region83: #{decoder_forward.1} parent=75 // pred_region
          %486 = dma.done [#allocation11], 2048
        $region84: #{decoder_forward.1} parent=75 // pred_fallthru
          _
        // Predicated region
        $region85: #{decoder_forward.1} parent=75 // pred_check
          %p487 = pneg %p235
        $region86: #{decoder_forward.1} parent=75 // pred_check_branch
          %489 = sbr.rel (%p487) target = $region88
        $region87: #{decoder_forward.1} parent=75 // pred_region
          %490 = dma.done [#allocation11], 2048
        $region88: #{decoder_forward.1} parent=75 // pred_fallthru
          _
        // Predicated region
        $region89: #{decoder_forward.1} parent=75 // pred_check
          %p491 = pneg %p298
        $region90: #{decoder_forward.1} parent=75 // pred_check_branch
          %493 = sbr.rel (%p491) target = $region92
        $region91: #{decoder_forward.1} parent=75 // pred_region
          %494 = dma.done [#allocation14], 512
        $region92: #{decoder_forward.1} parent=75 // pred_fallthru
          _
        %p495 = pneg %p46
        %p496 = pneg %p43
        %p497 = pneg %p67
        %p498 = pneg %p64
        %p499 = pneg %p88
        %p500 = pneg %p85
        %p501 = pneg %p109
        %p502 = pneg %p106
        %p503 = pneg %p130
        %p504 = pneg %p127
        %p505 = pneg %p151
        %p506 = pneg %p148
        %p507 = pneg %p172
        %p508 = pneg %p169
        %p509 = pneg %p193
        %p510 = pneg %p190
        %p511 = pneg %p214
        %p512 = pneg %p211
        %p513 = pneg %p235
        %p514 = pneg %p232
        %p515 = pneg %p256
        %p516 = pneg %p253
        %p517 = pneg %p277
        %p518 = pneg %p274
        %p519 = pneg %p298
        %p520 = pneg %p295
        %p521 = pneg %p319
        %p522 = pneg %p316
        %p523 = pneg %p345
        %p524 = pneg %p342
        %p525 = scmp.lt.s32.totalorder %s30, 15
        %s526 = scalar_select %p525, %s30, 15
        %s527 = smul.addr %s526, 8
        %s528 = scalar_lea.vmem %s14, %s527
        %p529 = pneg %p371
        %p530 = pneg %p368
        %p531 = scmp.lt.s32.totalorder %s30, 15
        %s532 = scalar_select %p531, %s30, 15
        %s533 = scalar_lea.vmem %s15, %s532
        %p534 = scmp.lt.s32.totalorder %s30, 15
        %s535 = scalar_select %p534, %s30, 15
        %s536 = smul.addr %s535, 8
        %s537 = scalar_lea.vmem %s14, %s536
        %p538 = scmp.lt.s32.totalorder %s30, 15
        %s539 = scalar_select %p538, %s30, 15
        %s540 = scalar_lea.vmem %s15, %s539
        %p541 = scmp.eq.s32.totalorder %s30, 0
        // Predicated region
        $region93: #{decoder_forward.1} parent=75 // pred_check
          %p542 = pneg %p541
        $region94: #{decoder_forward.1} parent=75 // pred_check_branch
          %544 = sbr.rel (%p542) target = $region96
        $region95: #{decoder_forward.1} parent=75 // pred_region
          %vm545 = vcmask 523264
          %546 = vst.msk [vmem:[#allocation2] sm:$0xff] %vm545, 0.0
          %547 = vst.msk [vmem:[#allocation3] sm:$0xff] %vm545, 0.0
          %vm548 = vcmask 261120
          %549 = vst.msk [vmem:[#allocation4] sm:$0xff] %vm548, 0.0
          %550 = vst.msk [vmem:[#allocation5] sm:$0xff] %vm548, 0.0
          %551 = vst.msk [vmem:[#allocation6] sm:$0xff] %vm548, 0.0
          %552 = vst [vmem:[#allocation7] sm:$0xff] 0.0
        $region96: #{decoder_forward.1} parent=75 // pred_fallthru
          _
        %v553 = vld [vmem:[#allocation7] sm:$0xff]
        %v554 = vlaneseq
        %v555 = vand.u32 %v554, 127
        %556 = vmax.xlane.f32.xlu0 %v553
        %v557 = vpop.xlane.xlu0 %556
        %vm558 = vcmp.eq.f32.partialorder %v553, %v557
        %v559 = vsel %vm558, %v555, 128
        %v560 = vand.u32 %v559, 65535
        %v561 = vshra.s32 %v559, 16
        %v562 = vcvt.s32.f32 %v560
        %v563 = vcvt.s32.f32 %v561
        %564 = vmin.xlane.f32.xlu0 %v563
        %v565 = vpop.xlane.xlu0 %564
        %vm566 = vcmp.eq.f32.partialorder %v563, %v565
        %v567 = vsel %vm566, %v562, inf
        %568 = vmin.xlane.f32.xlu0 %v567
        %v569 = vpop.xlane.xlu0 %568
        %v570 = vcvt.f32.s32 %v569
        %v571 = vcvt.f32.s32 %v565
        %v572 = vshll.u32 %v571, 16
        %v573 = vadd.s32 %v572, %v570
        %vm574 = vcmp.eq.s32.totalorder %v555, %v573
        %v575 = vsel %vm574, 1, 0
        %v576 = vcvt.s32.f32 %v575
        %v577 = vld [vmem:[%s3] sm:$0xff]
        %v578 = vld [vmem:[%s3 + $0x8] sm:$0xff]
        %v579 = vld [vmem:[%s3 + $0x10] sm:$0xff]
        %v580 = vld [vmem:[%s3 + $0x18] sm:$0xff]
        %v581 = vld [vmem:[%s3 + $0x20] sm:$0xff]
        %v582 = vld [vmem:[%s3 + $0x28] sm:$0xff]
        %v583 = vld [vmem:[%s3 + $0x30] sm:$0xff]
        %v584 = vld [vmem:[%s3 + $0x38] sm:$0xff]
        %v585 = vld [vmem:[%s3 + $0x40] sm:$0xff]
        %v586 = vld [vmem:[%s3 + $0x48] sm:$0xff]
        %v587 = vld [vmem:[%s3 + $0x50] sm:$0xff]
        %v588 = vld [vmem:[%s3 + $0x58] sm:$0xff]
        %v589 = vld [vmem:[%s3 + $0x60] sm:$0xff]
        %v590 = vld [vmem:[%s3 + $0x68] sm:$0xff]
        %v591 = vld [vmem:[%s3 + $0x70] sm:$0xff]
        %v592 = vld [vmem:[%s3 + $0x78] sm:$0xff]
        %593 = vmatprep.subr.mxu0 0.0
        %594 = vmatpush1.msra.mxu0 %v577
        %595 = vmatprep.subr.mxu0 0.0
        %596 = vmatpush1.msra.mxu0 %v578
        %597 = vmatprep.subr.mxu0 0.0
        %598 = vmatpush1.msra.mxu0 %v579
        %599 = vmatprep.subr.mxu0 0.0
        %600 = vmatpush1.msra.mxu0 %v580
        %601 = vmatprep.subr.mxu0 0.0
        %602 = vmatpush1.msra.mxu0 %v581
        %603 = vmatprep.subr.mxu0 0.0
        %604 = vmatpush1.msra.mxu0 %v582
        %605 = vmatprep.subr.mxu0 0.0
        %606 = vmatpush1.msra.mxu0 %v583
        %607 = vmatprep.subr.mxu0 0.0
        %608 = vmatpush1.msra.mxu0 %v584
        %609 = vmatprep.subr.mxu0 0.0
        %610 = vmatpush1.msra.mxu0 %v585
        %611 = vmatprep.subr.mxu0 0.0
        %612 = vmatpush1.msra.mxu0 %v586
        %613 = vmatprep.subr.mxu0 0.0
        %614 = vmatpush1.msra.mxu0 %v587
        %615 = vmatprep.subr.mxu0 0.0
        %616 = vmatpush1.msra.mxu0 %v588
        %617 = vmatprep.subr.mxu0 0.0
        %618 = vmatpush1.msra.mxu0 %v589
        %619 = vmatprep.subr.mxu0 0.0
        %620 = vmatpush1.msra.mxu0 %v590
        %621 = vmatprep.subr.mxu0 0.0
        %622 = vmatpush1.msra.mxu0 %v591
        %623 = vmatprep.subr.mxu0 0.0
        %624 = vmatpush1.msra.mxu0 %v592
        %625 = vmatprep.subr.mxu0 0.0
        %626 = vmatpush1.msra.mxu0 0.0
        %627 = vmatprep.subr.mxu0 0.0
        %628 = vmatpush1.msra.mxu0 0.0
        %629 = vmatprep.subr.mxu0 0.0
        %630 = vmatpush1.msra.mxu0 0.0
        %631 = vmatprep.subr.mxu0 0.0
        %632 = vmatpush1.msra.mxu0 0.0
        %633 = vmatprep.subr.mxu0 0.0
        %634 = vmatpush1.msra.mxu0 0.0
        %635 = vmatprep.subr.mxu0 0.0
        %636 = vmatpush1.msra.mxu0 0.0
        %637 = vmatprep.subr.mxu0 0.0
        %638 = vmatpush1.msra.mxu0 0.0
        %639 = vmatprep.subr.mxu0 0.0
        %640 = vmatpush1.msra.mxu0 0.0
        %641 = vmatprep.subr.mxu0 0.0
        %642 = vmatpush1.msra.mxu0 0.0
        %643 = vmatprep.subr.mxu0 0.0
        %644 = vmatpush1.msra.mxu0 0.0
        %645 = vmatprep.subr.mxu0 0.0
        %646 = vmatpush1.msra.mxu0 0.0
        %647 = vmatprep.subr.mxu0 0.0
        %648 = vmatpush1.msra.mxu0 0.0
        %649 = vmatprep.subr.mxu0 0.0
        %650 = vmatpush1.msra.mxu0 0.0
        %651 = vmatprep.subr.mxu0 0.0
        %652 = vmatpush1.msra.mxu0 0.0
        %653 = vmatprep.subr.mxu0 0.0
        %654 = vmatpush1.msra.mxu0 0.0
        %655 = vmatprep.subr.mxu0 0.0
        %656 = vmatpush1.msra.mxu0 0.0
        %657 = vmatprep.mubr.f32.mxu0 0.0
        %658 = vmatmul.mubr.f32.gmra.mrb[0].mxu0 %v576
        %v659 = vpop.f32.mrb[0].mxu0
        %v660 = vadd.f32 0.0, %v659
        %v661 = vpop.f32.mrb[0].mxu0
        %662 = vdwg.mxu0
        %v663 = vld [vmem:[#allocation2] sm:$0xff]
        %v664 = vld [vmem:[#allocation3] sm:$0xff]
        %v665 = vld [vmem:[#allocation6] sm:$0xff]
        %v666 = vld [vmem:[%s4] sm:$0xff]
        %v667 = vld [vmem:[%s4 + $0x8] sm:$0xff]
        %v668 = vld [vmem:[%s4 + $0x10] sm:$0xff]
        %v669 = vld [vmem:[%s4 + $0x18] sm:$0xff]
        %v670 = vld [vmem:[%s4 + $0x20] sm:$0xff]
        %v671 = vld [vmem:[%s4 + $0x28] sm:$0xff]
        %v672 = vld [vmem:[%s4 + $0x30] sm:$0xff]
        %v673 = vld [vmem:[%s4 + $0x38] sm:$0xff]
        %v674 = vld [vmem:[#allocation10] sm:$0xff]
        %v675 = vld [vmem:[#allocation10 + $0x8] sm:$0xff]
        %v676 = vld [vmem:[#allocation10 + $0x10] sm:$0xff]
        %v677 = vld [vmem:[#allocation10 + $0x18] sm:$0xff]
        %vm678 = vcmask 261120
        %v680 = vsel %vm678, %v665, 0
        %682 = vmatprep.subr.mxu0 0.0
        %683 = vmatpush1.msra.mxu0 %v674
        %684 = vmatprep.subr.mxu0 0.0
        %685 = vmatpush1.msra.mxu0 %v675
        %686 = vmatprep.subr.mxu0 0.0
        %687 = vmatpush1.msra.mxu0 %v676
        %688 = vmatprep.subr.mxu0 0.0
        %689 = vmatpush1.msra.mxu0 %v677
        %690 = vmatprep.subr.mxu0 0.0
        %691 = vmatpush1.msra.mxu0 0.0
        %692 = vmatprep.subr.mxu0 0.0
        %693 = vmatpush1.msra.mxu0 0.0
        %694 = vmatprep.subr.mxu0 0.0
        %695 = vmatpush1.msra.mxu0 0.0
        %696 = vmatprep.subr.mxu0 0.0
        %697 = vmatpush1.msra.mxu0 0.0
        %698 = vmatprep.subr.mxu0 0.0
        %699 = vmatpush1.msra.mxu0 0.0
        %700 = vmatprep.subr.mxu0 0.0
        %701 = vmatpush1.msra.mxu0 0.0
        %702 = vmatprep.subr.mxu0 0.0
        %703 = vmatpush1.msra.mxu0 0.0
        %704 = vmatprep.subr.mxu0 0.0
        %705 = vmatpush1.msra.mxu0 0.0
        %706 = vmatprep.subr.mxu0 0.0
        %707 = vmatpush1.msra.mxu0 0.0
        %708 = vmatprep.subr.mxu0 0.0
        %709 = vmatpush1.msra.mxu0 0.0
        %710 = vmatprep.subr.mxu0 0.0
        %711 = vmatpush1.msra.mxu0 0.0
        %712 = vmatprep.subr.mxu0 0.0
        %713 = vmatpush1.msra.mxu0 0.0
        %714 = vmatprep.subr.mxu0 0.0
        %715 = vmatpush1.msra.mxu0 0.0
        %716 = vmatprep.subr.mxu0 0.0
        %717 = vmatpush1.msra.mxu0 0.0
        %718 = vmatprep.subr.mxu0 0.0
        %719 = vmatpush1.msra.mxu0 0.0
        %720 = vmatprep.subr.mxu0 0.0
        %721 = vmatpush1.msra.mxu0 0.0
        %722 = vmatprep.subr.mxu0 0.0
        %723 = vmatpush1.msra.mxu0 0.0
        %724 = vmatprep.subr.mxu0 0.0
        %725 = vmatpush1.msra.mxu0 0.0
        %726 = vmatprep.subr.mxu0 0.0
        %727 = vmatpush1.msra.mxu0 0.0
        %728 = vmatprep.subr.mxu0 0.0
        %729 = vmatpush1.msra.mxu0 0.0
        %730 = vmatprep.subr.mxu0 0.0
        %731 = vmatpush1.msra.mxu0 0.0
        %732 = vmatprep.subr.mxu0 0.0
        %733 = vmatpush1.msra.mxu0 0.0
        %734 = vmatprep.subr.mxu0 0.0
        %735 = vmatpush1.msra.mxu0 0.0
        %736 = vmatprep.subr.mxu0 0.0
        %737 = vmatpush1.msra.mxu0 0.0
        %738 = vmatprep.subr.mxu0 0.0
        %739 = vmatpush1.msra.mxu0 0.0
        %740 = vmatprep.subr.mxu0 0.0
        %741 = vmatpush1.msra.mxu0 0.0
        %742 = vmatprep.subr.mxu0 0.0
        %743 = vmatpush1.msra.mxu0 0.0
        %744 = vmatprep.subr.mxu0 0.0
        %745 = vmatpush1.msra.mxu0 0.0
        %746 = vmatprep.mubr.f32.mxu0 0.0
        %747 = vmatmul.mubr.f32.gmra.mrb[0].mxu0 %v680
        %v748 = vpop.f32.mrb[0].mxu0
        %v749 = vadd.f32 0.0, %v748
        %v750 = vpop.f32.mrb[0].mxu0
        %751 = vdwg.mxu0
        %vm752 = vcmask 523264
        %v754 = vsel %vm752, %v660, 0
        %756 = vmatprep.subr.mxu0 0.0
        %757 = vmatpush1.msra.mxu0 %v666
        %758 = vmatprep.subr.mxu0 0.0
        %759 = vmatpush1.msra.mxu0 %v667
        %760 = vmatprep.subr.mxu0 0.0
        %761 = vmatpush1.msra.mxu0 %v668
        %762 = vmatprep.subr.mxu0 0.0
        %763 = vmatpush1.msra.mxu0 %v669
        %764 = vmatprep.subr.mxu0 0.0
        %765 = vmatpush1.msra.mxu0 %v670
        %766 = vmatprep.subr.mxu0 0.0
        %767 = vmatpush1.msra.mxu0 %v671
        %768 = vmatprep.subr.mxu0 0.0
        %769 = vmatpush1.msra.mxu0 %v672
        %770 = vmatprep.subr.mxu0 0.0
        %771 = vmatpush1.msra.mxu0 %v673
        %772 = vmatprep.subr.mxu0 0.0
        %773 = vmatpush1.msra.mxu0 0.0
        %774 = vmatprep.subr.mxu0 0.0
        %775 = vmatpush1.msra.mxu0 0.0
        %776 = vmatprep.subr.mxu0 0.0
        %777 = vmatpush1.msra.mxu0 0.0
        %778 = vmatprep.subr.mxu0 0.0
        %779 = vmatpush1.msra.mxu0 0.0
        %780 = vmatprep.subr.mxu0 0.0
        %781 = vmatpush1.msra.mxu0 0.0
        %782 = vmatprep.subr.mxu0 0.0
        %783 = vmatpush1.msra.mxu0 0.0
        %784 = vmatprep.subr.mxu0 0.0
        %785 = vmatpush1.msra.mxu0 0.0
        %786 = vmatprep.subr.mxu0 0.0
        %787 = vmatpush1.msra.mxu0 0.0
        %788 = vmatprep.subr.mxu0 0.0
        %789 = vmatpush1.msra.mxu0 0.0
        %790 = vmatprep.subr.mxu0 0.0
        %791 = vmatpush1.msra.mxu0 0.0
        %792 = vmatprep.subr.mxu0 0.0
        %793 = vmatpush1.msra.mxu0 0.0
        %794 = vmatprep.subr.mxu0 0.0
        %795 = vmatpush1.msra.mxu0 0.0
        %796 = vmatprep.subr.mxu0 0.0
        %797 = vmatpush1.msra.mxu0 0.0
        %798 = vmatprep.subr.mxu0 0.0
        %799 = vmatpush1.msra.mxu0 0.0
        %800 = vmatprep.subr.mxu0 0.0
        %801 = vmatpush1.msra.mxu0 0.0
        %802 = vmatprep.subr.mxu0 0.0
        %803 = vmatpush1.msra.mxu0 0.0
        %804 = vmatprep.subr.mxu0 0.0
        %805 = vmatpush1.msra.mxu0 0.0
        %806 = vmatprep.subr.mxu0 0.0
        %807 = vmatpush1.msra.mxu0 0.0
        %808 = vmatprep.subr.mxu0 0.0
        %809 = vmatpush1.msra.mxu0 0.0
        %810 = vmatprep.subr.mxu0 0.0
        %811 = vmatpush1.msra.mxu0 0.0
        %812 = vmatprep.subr.mxu0 0.0
        %813 = vmatpush1.msra.mxu0 0.0
        %814 = vmatprep.subr.mxu0 0.0
        %815 = vmatpush1.msra.mxu0 0.0
        %816 = vmatprep.subr.mxu0 0.0
        %817 = vmatpush1.msra.mxu0 0.0
        %818 = vmatprep.subr.mxu0 0.0
        %819 = vmatpush1.msra.mxu0 0.0
        %820 = vmatprep.mubr.f32.mxu0 0.0
        %821 = vmatmul.mubr.f32.gmra.mrb[0].mxu0 %v754
        %v822 = vpop.f32.mrb[0].mxu0
        %v823 = vadd.f32 %v749, %v822
        %v824 = vpop.f32.mrb[0].mxu0
        %825 = vdwg.mxu0
        %v826 = vld [vmem:[%s6] sm:$0xff]
        %v827 = vld [vmem:[%s6 + $0x8] sm:$0xff]
        %v828 = vld [vmem:[%s6 + $0x10] sm:$0xff]
        %v829 = vld [vmem:[%s6 + $0x18] sm:$0xff]
        %v830 = vld [vmem:[%s6 + $0x20] sm:$0xff]
        %v831 = vld [vmem:[%s6 + $0x28] sm:$0xff]
        %v832 = vld [vmem:[%s6 + $0x30] sm:$0xff]
        %v833 = vld [vmem:[%s6 + $0x38] sm:$0xff]
        %v835 = vsel %vm752, %v663, 0
        %837 = vmatprep.subr.mxu0 0.0
        %838 = vmatpush1.msra.mxu0 %v826
        %839 = vmatprep.subr.mxu0 0.0
        %840 = vmatpush1.msra.mxu0 %v827
        %841 = vmatprep.subr.mxu0 0.0
        %842 = vmatpush1.msra.mxu0 %v828
        %843 = vmatprep.subr.mxu0 0.0
        %844 = vmatpush1.msra.mxu0 %v829
        %845 = vmatprep.subr.mxu0 0.0
        %846 = vmatpush1.msra.mxu0 %v830
        %847 = vmatprep.subr.mxu0 0.0
        %848 = vmatpush1.msra.mxu0 %v831
        %849 = vmatprep.subr.mxu0 0.0
        %850 = vmatpush1.msra.mxu0 %v832
        %851 = vmatprep.subr.mxu0 0.0
        %852 = vmatpush1.msra.mxu0 %v833
        %853 = vmatprep.subr.mxu0 0.0
        %854 = vmatpush1.msra.mxu0 0.0
        %855 = vmatprep.subr.mxu0 0.0
        %856 = vmatpush1.msra.mxu0 0.0
        %857 = vmatprep.subr.mxu0 0.0
        %858 = vmatpush1.msra.mxu0 0.0
        %859 = vmatprep.subr.mxu0 0.0
        %860 = vmatpush1.msra.mxu0 0.0
        %861 = vmatprep.subr.mxu0 0.0
        %862 = vmatpush1.msra.mxu0 0.0
        %863 = vmatprep.subr.mxu0 0.0
        %864 = vmatpush1.msra.mxu0 0.0
        %865 = vmatprep.subr.mxu0 0.0
        %866 = vmatpush1.msra.mxu0 0.0
        %867 = vmatprep.subr.mxu0 0.0
        %868 = vmatpush1.msra.mxu0 0.0
        %869 = vmatprep.subr.mxu0 0.0
        %870 = vmatpush1.msra.mxu0 0.0
        %871 = vmatprep.subr.mxu0 0.0
        %872 = vmatpush1.msra.mxu0 0.0
        %873 = vmatprep.subr.mxu0 0.0
        %874 = vmatpush1.msra.mxu0 0.0
        %875 = vmatprep.subr.mxu0 0.0
        %876 = vmatpush1.msra.mxu0 0.0
        %877 = vmatprep.subr.mxu0 0.0
        %878 = vmatpush1.msra.mxu0 0.0
        %879 = vmatprep.subr.mxu0 0.0
        %880 = vmatpush1.msra.mxu0 0.0
        %881 = vmatprep.subr.mxu0 0.0
        %882 = vmatpush1.msra.mxu0 0.0
        %883 = vmatprep.subr.mxu0 0.0
        %884 = vmatpush1.msra.mxu0 0.0
        %885 = vmatprep.subr.mxu0 0.0
        %886 = vmatpush1.msra.mxu0 0.0
        %887 = vmatprep.subr.mxu0 0.0
        %888 = vmatpush1.msra.mxu0 0.0
        %889 = vmatprep.subr.mxu0 0.0
        %890 = vmatpush1.msra.mxu0 0.0
        %891 = vmatprep.subr.mxu0 0.0
        %892 = vmatpush1.msra.mxu0 0.0
        %893 = vmatprep.subr.mxu0 0.0
        %894 = vmatpush1.msra.mxu0 0.0
        %895 = vmatprep.subr.mxu0 0.0
        %896 = vmatpush1.msra.mxu0 0.0
        %897 = vmatprep.subr.mxu0 0.0
        %898 = vmatpush1.msra.mxu0 0.0
        %899 = vmatprep.subr.mxu0 0.0
        %900 = vmatpush1.msra.mxu0 0.0
        %901 = vmatprep.mubr.f32.mxu0 0.0
        %902 = vmatmul.mubr.f32.gmra.mrb[0].mxu0 %v835
        %v903 = vpop.f32.mrb[0].mxu0
        %v904 = vadd.f32 0.0, %v903
        %v905 = vpop.f32.mrb[0].mxu0
        %906 = vdwg.mxu0
        %v907 = vadd.f32 %v823, %v904
        %v908 = vld [vmem:[%s7] sm:$0x1]
        %v910 = vlaneseq
        %v911 = vshrl.u32 %v910, 7
        %v912 = vsub.s32 0, %v911
        %v913 = vrot.slane %v908, %v912
        %v915 = vadd.f32 %v907, %v913
        %s916 = scalar_lea.vmem %s4, 64
        %v917 = vld [vmem:[%s916] sm:$0xff]
        %v918 = vld [vmem:[%s916 + $0x8] sm:$0xff]
        %v919 = vld [vmem:[%s916 + $0x10] sm:$0xff]
        %v920 = vld [vmem:[%s916 + $0x18] sm:$0xff]
        %v921 = vld [vmem:[%s916 + $0x20] sm:$0xff]
        %v922 = vld [vmem:[%s916 + $0x28] sm:$0xff]
        %v923 = vld [vmem:[%s916 + $0x30] sm:$0xff]
        %v924 = vld [vmem:[%s916 + $0x38] sm:$0xff]
        %s925 = scalar_lea.vmem [#allocation10], 32
        %v926 = vld [vmem:[%s925] sm:$0xff]
        %v927 = vld [vmem:[%s925 + $0x8] sm:$0xff]
        %v928 = vld [vmem:[%s925 + $0x10] sm:$0xff]
        %v929 = vld [vmem:[%s925 + $0x18] sm:$0xff]
        %930 = vmatprep.subr.mxu0 0.0
        %931 = vmatpush1.msra.mxu0 %v926
        %932 = vmatprep.subr.mxu0 0.0
        %933 = vmatpush1.msra.mxu0 %v927
        %934 = vmatprep.subr.mxu0 0.0
        %935 = vmatpush1.msra.mxu0 %v928
        %936 = vmatprep.subr.mxu0 0.0
        %937 = vmatpush1.msra.mxu0 %v929
        %938 = vmatprep.subr.mxu0 0.0
        %939 = vmatpush1.msra.mxu0 0.0
        %940 = vmatprep.subr.mxu0 0.0
        %941 = vmatpush1.msra.mxu0 0.0
        %942 = vmatprep.subr.mxu0 0.0
        %943 = vmatpush1.msra.mxu0 0.0
        %944 = vmatprep.subr.mxu0 0.0
        %945 = vmatpush1.msra.mxu0 0.0
        %946 = vmatprep.subr.mxu0 0.0
        %947 = vmatpush1.msra.mxu0 0.0
        %948 = vmatprep.subr.mxu0 0.0
        %949 = vmatpush1.msra.mxu0 0.0
        %950 = vmatprep.subr.mxu0 0.0
        %951 = vmatpush1.msra.mxu0 0.0
        %952 = vmatprep.subr.mxu0 0.0
        %953 = vmatpush1.msra.mxu0 0.0
        %954 = vmatprep.subr.mxu0 0.0
        %955 = vmatpush1.msra.mxu0 0.0
        %956 = vmatprep.subr.mxu0 0.0
        %957 = vmatpush1.msra.mxu0 0.0
        %958 = vmatprep.subr.mxu0 0.0
        %959 = vmatpush1.msra.mxu0 0.0
        %960 = vmatprep.subr.mxu0 0.0
        %961 = vmatpush1.msra.mxu0 0.0
        %962 = vmatprep.subr.mxu0 0.0
        %963 = vmatpush1.msra.mxu0 0.0
        %964 = vmatprep.subr.mxu0 0.0
        %965 = vmatpush1.msra.mxu0 0.0
        %966 = vmatprep.subr.mxu0 0.0
        %967 = vmatpush1.msra.mxu0 0.0
        %968 = vmatprep.subr.mxu0 0.0
        %969 = vmatpush1.msra.mxu0 0.0
        %970 = vmatprep.subr.mxu0 0.0
        %971 = vmatpush1.msra.mxu0 0.0
        %972 = vmatprep.subr.mxu0 0.0
        %973 = vmatpush1.msra.mxu0 0.0
        %974 = vmatprep.subr.mxu0 0.0
        %975 = vmatpush1.msra.mxu0 0.0
        %976 = vmatprep.subr.mxu0 0.0
        %977 = vmatpush1.msra.mxu0 0.0
        %978 = vmatprep.subr.mxu0 0.0
        %979 = vmatpush1.msra.mxu0 0.0
        %980 = vmatprep.subr.mxu0 0.0
        %981 = vmatpush1.msra.mxu0 0.0
        %982 = vmatprep.subr.mxu0 0.0
        %983 = vmatpush1.msra.mxu0 0.0
        %984 = vmatprep.subr.mxu0 0.0
        %985 = vmatpush1.msra.mxu0 0.0
        %986 = vmatprep.subr.mxu0 0.0
        %987 = vmatpush1.msra.mxu0 0.0
        %988 = vmatprep.subr.mxu0 0.0
        %989 = vmatpush1.msra.mxu0 0.0
        %990 = vmatprep.subr.mxu0 0.0
        %991 = vmatpush1.msra.mxu0 0.0
        %992 = vmatprep.subr.mxu0 0.0
        %993 = vmatpush1.msra.mxu0 0.0
        %994 = vmatprep.mubr.f32.mxu0 0.0
        %995 = vmatmul.mubr.f32.gmra.mrb[0].mxu0 %v680
        %v996 = vpop.f32.mrb[0].mxu0
        %v997 = vadd.f32 0.0, %v996
        %v998 = vpop.f32.mrb[0].mxu0
        %999 = vdwg.mxu0
        %1000 = vmatprep.subr.mxu0 0.0
        %1001 = vmatpush1.msra.mxu0 %v917
        %1002 = vmatprep.subr.mxu0 0.0
        %1003 = vmatpush1.msra.mxu0 %v918
        %1004 = vmatprep.subr.mxu0 0.0
        %1005 = vmatpush1.msra.mxu0 %v919
        %1006 = vmatprep.subr.mxu0 0.0
        %1007 = vmatpush1.msra.mxu0 %v920
        %1008 = vmatprep.subr.mxu0 0.0
        %1009 = vmatpush1.msra.mxu0 %v921
        %1010 = vmatprep.subr.mxu0 0.0
        %1011 = vmatpush1.msra.mxu0 %v922
        %1012 = vmatprep.subr.mxu0 0.0
        %1013 = vmatpush1.msra.mxu0 %v923
        %1014 = vmatprep.subr.mxu0 0.0
        %1015 = vmatpush1.msra.mxu0 %v924
        %1016 = vmatprep.subr.mxu0 0.0
        %1017 = vmatpush1.msra.mxu0 0.0
        %1018 = vmatprep.subr.mxu0 0.0
        %1019 = vmatpush1.msra.mxu0 0.0
        %1020 = vmatprep.subr.mxu0 0.0
        %1021 = vmatpush1.msra.mxu0 0.0
        %1022 = vmatprep.subr.mxu0 0.0
        %1023 = vmatpush1.msra.mxu0 0.0
        %1024 = vmatprep.subr.mxu0 0.0
        %1025 = vmatpush1.msra.mxu0 0.0
        %1026 = vmatprep.subr.mxu0 0.0
        %1027 = vmatpush1.msra.mxu0 0.0
        %1028 = vmatprep.subr.mxu0 0.0
        %1029 = vmatpush1.msra.mxu0 0.0
        %1030 = vmatprep.subr.mxu0 0.0
        %1031 = vmatpush1.msra.mxu0 0.0
        %1032 = vmatprep.subr.mxu0 0.0
        %1033 = vmatpush1.msra.mxu0 0.0
        %1034 = vmatprep.subr.mxu0 0.0
        %1035 = vmatpush1.msra.mxu0 0.0
        %1036 = vmatprep.subr.mxu0 0.0
        %1037 = vmatpush1.msra.mxu0 0.0
        %1038 = vmatprep.subr.mxu0 0.0
        %1039 = vmatpush1.msra.mxu0 0.0
        %1040 = vmatprep.subr.mxu0 0.0
        %1041 = vmatpush1.msra.mxu0 0.0
        %1042 = vmatprep.subr.mxu0 0.0
        %1043 = vmatpush1.msra.mxu0 0.0
        %1044 = vmatprep.subr.mxu0 0.0
        %1045 = vmatpush1.msra.mxu0 0.0
        %1046 = vmatprep.subr.mxu0 0.0
        %1047 = vmatpush1.msra.mxu0 0.0
        %1048 = vmatprep.subr.mxu0 0.0
        %1049 = vmatpush1.msra.mxu0 0.0
        %1050 = vmatprep.subr.mxu0 0.0
        %1051 = vmatpush1.msra.mxu0 0.0
        %1052 = vmatprep.subr.mxu0 0.0
        %1053 = vmatpush1.msra.mxu0 0.0
        %1054 = vmatprep.subr.mxu0 0.0
        %1055 = vmatpush1.msra.mxu0 0.0
        %1056 = vmatprep.subr.mxu0 0.0
        %1057 = vmatpush1.msra.mxu0 0.0
        %1058 = vmatprep.subr.mxu0 0.0
        %1059 = vmatpush1.msra.mxu0 0.0
        %1060 = vmatprep.subr.mxu0 0.0
        %1061 = vmatpush1.msra.mxu0 0.0
        %1062 = vmatprep.subr.mxu0 0.0
        %1063 = vmatpush1.msra.mxu0 0.0
        %1064 = vmatprep.mubr.f32.mxu0 0.0
        %1065 = vmatmul.mubr.f32.gmra.mrb[0].mxu0 %v754
        %v1066 = vpop.f32.mrb[0].mxu0
        %v1067 = vadd.f32 %v997, %v1066
        %v1068 = vpop.f32.mrb[0].mxu0
        %1069 = vdwg.mxu0
        %s1070 = scalar_lea.vmem %s6, 64
        %v1071 = vld [vmem:[%s1070] sm:$0xff]
        %v1072 = vld [vmem:[%s1070 + $0x8] sm:$0xff]
        %v1073 = vld [vmem:[%s1070 + $0x10] sm:$0xff]
        %v1074 = vld [vmem:[%s1070 + $0x18] sm:$0xff]
        %v1075 = vld [vmem:[%s1070 + $0x20] sm:$0xff]
        %v1076 = vld [vmem:[%s1070 + $0x28] sm:$0xff]
        %v1077 = vld [vmem:[%s1070 + $0x30] sm:$0xff]
        %v1078 = vld [vmem:[%s1070 + $0x38] sm:$0xff]
        %1079 = vmatprep.subr.mxu0 0.0
        %1080 = vmatpush1.msra.mxu0 %v1071
        %1081 = vmatprep.subr.mxu0 0.0
        %1082 = vmatpush1.msra.mxu0 %v1072
        %1083 = vmatprep.subr.mxu0 0.0
        %1084 = vmatpush1.msra.mxu0 %v1073
        %1085 = vmatprep.subr.mxu0 0.0
        %1086 = vmatpush1.msra.mxu0 %v1074
        %1087 = vmatprep.subr.mxu0 0.0
        %1088 = vmatpush1.msra.mxu0 %v1075
        %1089 = vmatprep.subr.mxu0 0.0
        %1090 = vmatpush1.msra.mxu0 %v1076
        %1091 = vmatprep.subr.mxu0 0.0
        %1092 = vmatpush1.msra.mxu0 %v1077
        %1093 = vmatprep.subr.mxu0 0.0
        %1094 = vmatpush1.msra.mxu0 %v1078
        %1095 = vmatprep.subr.mxu0 0.0
        %1096 = vmatpush1.msra.mxu0 0.0
        %1097 = vmatprep.subr.mxu0 0.0
        %1098 = vmatpush1.msra.mxu0 0.0
        %1099 = vmatprep.subr.mxu0 0.0
        %1100 = vmatpush1.msra.mxu0 0.0
        %1101 = vmatprep.subr.mxu0 0.0
        %1102 = vmatpush1.msra.mxu0 0.0
        %1103 = vmatprep.subr.mxu0 0.0
        %1104 = vmatpush1.msra.mxu0 0.0
        %1105 = vmatprep.subr.mxu0 0.0
        %1106 = vmatpush1.msra.mxu0 0.0
        %1107 = vmatprep.subr.mxu0 0.0
        %1108 = vmatpush1.msra.mxu0 0.0
        %1109 = vmatprep.subr.mxu0 0.0
        %1110 = vmatpush1.msra.mxu0 0.0
        %1111 = vmatprep.subr.mxu0 0.0
        %1112 = vmatpush1.msra.mxu0 0.0
        %1113 = vmatprep.subr.mxu0 0.0
        %1114 = vmatpush1.msra.mxu0 0.0
        %1115 = vmatprep.subr.mxu0 0.0
        %1116 = vmatpush1.msra.mxu0 0.0
        %1117 = vmatprep.subr.mxu0 0.0
        %1118 = vmatpush1.msra.mxu0 0.0
        %1119 = vmatprep.subr.mxu0 0.0
        %1120 = vmatpush1.msra.mxu0 0.0
        %1121 = vmatprep.subr.mxu0 0.0
        %1122 = vmatpush1.msra.mxu0 0.0
        %1123 = vmatprep.subr.mxu0 0.0
        %1124 = vmatpush1.msra.mxu0 0.0
        %1125 = vmatprep.subr.mxu0 0.0
        %1126 = vmatpush1.msra.mxu0 0.0
        %1127 = vmatprep.subr.mxu0 0.0
        %1128 = vmatpush1.msra.mxu0 0.0
        %1129 = vmatprep.subr.mxu0 0.0
        %1130 = vmatpush1.msra.mxu0 0.0
        %1131 = vmatprep.subr.mxu0 0.0
        %1132 = vmatpush1.msra.mxu0 0.0
        %1133 = vmatprep.subr.mxu0 0.0
        %1134 = vmatpush1.msra.mxu0 0.0
        %1135 = vmatprep.subr.mxu0 0.0
        %1136 = vmatpush1.msra.mxu0 0.0
        %1137 = vmatprep.subr.mxu0 0.0
        %1138 = vmatpush1.msra.mxu0 0.0
        %1139 = vmatprep.subr.mxu0 0.0
        %1140 = vmatpush1.msra.mxu0 0.0
        %1141 = vmatprep.subr.mxu0 0.0
        %1142 = vmatpush1.msra.mxu0 0.0
        %1143 = vmatprep.mubr.f32.mxu0 0.0
        %1144 = vmatmul.mubr.f32.gmra.mrb[0].mxu0 %v835
        %v1145 = vpop.f32.mrb[0].mxu0
        %v1146 = vadd.f32 0.0, %v1145
        %v1147 = vpop.f32.mrb[0].mxu0
        %1148 = vdwg.mxu0
        %v1149 = vadd.f32 %v1067, %v1146
        %s1150 = scalar_lea.vmem %s7, 1
        %v1151 = vld [vmem:[%s1150] sm:$0x1]
        %v1153 = vlaneseq
        %v1154 = vshrl.u32 %v1153, 7
        %v1155 = vsub.s32 0, %v1154
        %v1156 = vrot.slane %v1151, %v1155
        %v1158 = vadd.f32 %v1149, %v1156
        %s1159 = scalar_lea.vmem %s4, 128
        %v1160 = vld [vmem:[%s1159] sm:$0xff]
        %v1161 = vld [vmem:[%s1159 + $0x8] sm:$0xff]
        %v1162 = vld [vmem:[%s1159 + $0x10] sm:$0xff]
        %v1163 = vld [vmem:[%s1159 + $0x18] sm:$0xff]
        %v1164 = vld [vmem:[%s1159 + $0x20] sm:$0xff]
        %v1165 = vld [vmem:[%s1159 + $0x28] sm:$0xff]
        %v1166 = vld [vmem:[%s1159 + $0x30] sm:$0xff]
        %v1167 = vld [vmem:[%s1159 + $0x38] sm:$0xff]
        %s1168 = scalar_lea.vmem [#allocation10], 64
        %v1169 = vld [vmem:[%s1168] sm:$0xff]
        %v1170 = vld [vmem:[%s1168 + $0x8] sm:$0xff]
        %v1171 = vld [vmem:[%s1168 + $0x10] sm:$0xff]
        %v1172 = vld [vmem:[%s1168 + $0x18] sm:$0xff]
        %1173 = vmatprep.subr.mxu0 0.0
        %1174 = vmatpush1.msra.mxu0 %v1169
        %1175 = vmatprep.subr.mxu0 0.0
        %1176 = vmatpush1.msra.mxu0 %v1170
        %1177 = vmatprep.subr.mxu0 0.0
        %1178 = vmatpush1.msra.mxu0 %v1171
        %1179 = vmatprep.subr.mxu0 0.0
        %1180 = vmatpush1.msra.mxu0 %v1172
        %1181 = vmatprep.subr.mxu0 0.0
        %1182 = vmatpush1.msra.mxu0 0.0
        %1183 = vmatprep.subr.mxu0 0.0
        %1184 = vmatpush1.msra.mxu0 0.0
        %1185 = vmatprep.subr.mxu0 0.0
        %1186 = vmatpush1.msra.mxu0 0.0
        %1187 = vmatprep.subr.mxu0 0.0
        %1188 = vmatpush1.msra.mxu0 0.0
        %1189 = vmatprep.subr.mxu0 0.0
        %1190 = vmatpush1.msra.mxu0 0.0
        %1191 = vmatprep.subr.mxu0 0.0
        %1192 = vmatpush1.msra.mxu0 0.0
        %1193 = vmatprep.subr.mxu0 0.0
        %1194 = vmatpush1.msra.mxu0 0.0
        %1195 = vmatprep.subr.mxu0 0.0
        %1196 = vmatpush1.msra.mxu0 0.0
        %1197 = vmatprep.subr.mxu0 0.0
        %1198 = vmatpush1.msra.mxu0 0.0
        %1199 = vmatprep.subr.mxu0 0.0
        %1200 = vmatpush1.msra.mxu0 0.0
        %1201 = vmatprep.subr.mxu0 0.0
        %1202 = vmatpush1.msra.mxu0 0.0
        %1203 = vmatprep.subr.mxu0 0.0
        %1204 = vmatpush1.msra.mxu0 0.0
        %1205 = vmatprep.subr.mxu0 0.0
        %1206 = vmatpush1.msra.mxu0 0.0
        %1207 = vmatprep.subr.mxu0 0.0
        %1208 = vmatpush1.msra.mxu0 0.0
        %1209 = vmatprep.subr.mxu0 0.0
        %1210 = vmatpush1.msra.mxu0 0.0
        %1211 = vmatprep.subr.mxu0 0.0
        %1212 = vmatpush1.msra.mxu0 0.0
        %1213 = vmatprep.subr.mxu0 0.0
        %1214 = vmatpush1.msra.mxu0 0.0
        %1215 = vmatprep.subr.mxu0 0.0
        %1216 = vmatpush1.msra.mxu0 0.0
        %1217 = vmatprep.subr.mxu0 0.0
        %1218 = vmatpush1.msra.mxu0 0.0
        %1219 = vmatprep.subr.mxu0 0.0
        %1220 = vmatpush1.msra.mxu0 0.0
        %1221 = vmatprep.subr.mxu0 0.0
        %1222 = vmatpush1.msra.mxu0 0.0
        %1223 = vmatprep.subr.mxu0 0.0
        %1224 = vmatpush1.msra.mxu0 0.0
        %1225 = vmatprep.subr.mxu0 0.0
        %1226 = vmatpush1.msra.mxu0 0.0
        %1227 = vmatprep.subr.mxu0 0.0
        %1228 = vmatpush1.msra.mxu0 0.0
        %1229 = vmatprep.subr.mxu0 0.0
        %1230 = vmatpush1.msra.mxu0 0.0
        %1231 = vmatprep.subr.mxu0 0.0
        %1232 = vmatpush1.msra.mxu0 0.0
        %1233 = vmatprep.subr.mxu0 0.0
        %1234 = vmatpush1.msra.mxu0 0.0
        %1235 = vmatprep.subr.mxu0 0.0
        %1236 = vmatpush1.msra.mxu0 0.0
        %1237 = vmatprep.mubr.f32.mxu0 0.0
        %1238 = vmatmul.mubr.f32.gmra.mrb[0].mxu0 %v680
        %v1239 = vpop.f32.mrb[0].mxu0
        %v1240 = vadd.f32 0.0, %v1239
        %v1241 = vpop.f32.mrb[0].mxu0
        %1242 = vdwg.mxu0
        %1243 = vmatprep.subr.mxu0 0.0
        %1244 = vmatpush1.msra.mxu0 %v1160
        %1245 = vmatprep.subr.mxu0 0.0
        %1246 = vmatpush1.msra.mxu0 %v1161
        %1247 = vmatprep.subr.mxu0 0.0
        %1248 = vmatpush1.msra.mxu0 %v1162
        %1249 = vmatprep.subr.mxu0 0.0
        %1250 = vmatpush1.msra.mxu0 %v1163
        %1251 = vmatprep.subr.mxu0 0.0
        %1252 = vmatpush1.msra.mxu0 %v1164
        %1253 = vmatprep.subr.mxu0 0.0
        %1254 = vmatpush1.msra.mxu0 %v1165
        %1255 = vmatprep.subr.mxu0 0.0
        %1256 = vmatpush1.msra.mxu0 %v1166
        %1257 = vmatprep.subr.mxu0 0.0
        %1258 = vmatpush1.msra.mxu0 %v1167
        %1259 = vmatprep.subr.mxu0 0.0
        %1260 = vmatpush1.msra.mxu0 0.0
        %1261 = vmatprep.subr.mxu0 0.0
        %1262 = vmatpush1.msra.mxu0 0.0
        %1263 = vmatprep.subr.mxu0 0.0
        %1264 = vmatpush1.msra.mxu0 0.0
        %1265 = vmatprep.subr.mxu0 0.0
        %1266 = vmatpush1.msra.mxu0 0.0
        %1267 = vmatprep.subr.mxu0 0.0
        %1268 = vmatpush1.msra.mxu0 0.0
        %1269 = vmatprep.subr.mxu0 0.0
        %1270 = vmatpush1.msra.mxu0 0.0
        %1271 = vmatprep.subr.mxu0 0.0
        %1272 = vmatpush1.msra.mxu0 0.0
        %1273 = vmatprep.subr.mxu0 0.0
        %1274 = vmatpush1.msra.mxu0 0.0
        %1275 = vmatprep.subr.mxu0 0.0
        %1276 = vmatpush1.msra.mxu0 0.0
        %1277 = vmatprep.subr.mxu0 0.0
        %1278 = vmatpush1.msra.mxu0 0.0
        %1279 = vmatprep.subr.mxu0 0.0
        %1280 = vmatpush1.msra.mxu0 0.0
        %1281 = vmatprep.subr.mxu0 0.0
        %1282 = vmatpush1.msra.mxu0 0.0
        %1283 = vmatprep.subr.mxu0 0.0
        %1284 = vmatpush1.msra.mxu0 0.0
        %1285 = vmatprep.subr.mxu0 0.0
        %1286 = vmatpush1.msra.mxu0 0.0
        %1287 = vmatprep.subr.mxu0 0.0
        %1288 = vmatpush1.msra.mxu0 0.0
        %1289 = vmatprep.subr.mxu0 0.0
        %1290 = vmatpush1.msra.mxu0 0.0
        %1291 = vmatprep.subr.mxu0 0.0
        %1292 = vmatpush1.msra.mxu0 0.0
        %1293 = vmatprep.subr.mxu0 0.0
        %1294 = vmatpush1.msra.mxu0 0.0
        %1295 = vmatprep.subr.mxu0 0.0
        %1296 = vmatpush1.msra.mxu0 0.0
        %1297 = vmatprep.subr.mxu0 0.0
        %1298 = vmatpush1.msra.mxu0 0.0
        %1299 = vmatprep.subr.mxu0 0.0
        %1300 = vmatpush1.msra.mxu0 0.0
        %1301 = vmatprep.subr.mxu0 0.0
        %1302 = vmatpush1.msra.mxu0 0.0
        %1303 = vmatprep.subr.mxu0 0.0
        %1304 = vmatpush1.msra.mxu0 0.0
        %1305 = vmatprep.subr.mxu0 0.0
        %1306 = vmatpush1.msra.mxu0 0.0
        %1307 = vmatprep.mubr.f32.mxu0 0.0
        %1308 = vmatmul.mubr.f32.gmra.mrb[0].mxu0 %v754
        %v1309 = vpop.f32.mrb[0].mxu0
        %v1310 = vadd.f32 %v1240, %v1309
        %v1311 = vpop.f32.mrb[0].mxu0
        %1312 = vdwg.mxu0
        %s1313 = scalar_lea.vmem %s6, 128
        %v1314 = vld [vmem:[%s1313] sm:$0xff]
        %v1315 = vld [vmem:[%s1313 + $0x8] sm:$0xff]
        %v1316 = vld [vmem:[%s1313 + $0x10] sm:$0xff]
        %v1317 = vld [vmem:[%s1313 + $0x18] sm:$0xff]
        %v1318 = vld [vmem:[%s1313 + $0x20] sm:$0xff]
        %v1319 = vld [vmem:[%s1313 + $0x28] sm:$0xff]
        %v1320 = vld [vmem:[%s1313 + $0x30] sm:$0xff]
        %v1321 = vld [vmem:[%s1313 + $0x38] sm:$0xff]
        %1322 = vmatprep.subr.mxu0 0.0
        %1323 = vmatpush1.msra.mxu0 %v1314
        %1324 = vmatprep.subr.mxu0 0.0
        %1325 = vmatpush1.msra.mxu0 %v1315
        %1326 = vmatprep.subr.mxu0 0.0
        %1327 = vmatpush1.msra.mxu0 %v1316
        %1328 = vmatprep.subr.mxu0 0.0
        %1329 = vmatpush1.msra.mxu0 %v1317
        %1330 = vmatprep.subr.mxu0 0.0
        %1331 = vmatpush1.msra.mxu0 %v1318
        %1332 = vmatprep.subr.mxu0 0.0
        %1333 = vmatpush1.msra.mxu0 %v1319
        %1334 = vmatprep.subr.mxu0 0.0
        %1335 = vmatpush1.msra.mxu0 %v1320
        %1336 = vmatprep.subr.mxu0 0.0
        %1337 = vmatpush1.msra.mxu0 %v1321
        %1338 = vmatprep.subr.mxu0 0.0
        %1339 = vmatpush1.msra.mxu0 0.0
        %1340 = vmatprep.subr.mxu0 0.0
        %1341 = vmatpush1.msra.mxu0 0.0
        %1342 = vmatprep.subr.mxu0 0.0
        %1343 = vmatpush1.msra.mxu0 0.0
        %1344 = vmatprep.subr.mxu0 0.0
        %1345 = vmatpush1.msra.mxu0 0.0
        %1346 = vmatprep.subr.mxu0 0.0
        %1347 = vmatpush1.msra.mxu0 0.0
        %1348 = vmatprep.subr.mxu0 0.0
        %1349 = vmatpush1.msra.mxu0 0.0
        %1350 = vmatprep.subr.mxu0 0.0
        %1351 = vmatpush1.msra.mxu0 0.0
        %1352 = vmatprep.subr.mxu0 0.0
        %1353 = vmatpush1.msra.mxu0 0.0
        %1354 = vmatprep.subr.mxu0 0.0
        %1355 = vmatpush1.msra.mxu0 0.0
        %1356 = vmatprep.subr.mxu0 0.0
        %1357 = vmatpush1.msra.mxu0 0.0
        %1358 = vmatprep.subr.mxu0 0.0
        %1359 = vmatpush1.msra.mxu0 0.0
        %1360 = vmatprep.subr.mxu0 0.0
        %1361 = vmatpush1.msra.mxu0 0.0
        %1362 = vmatprep.subr.mxu0 0.0
        %1363 = vmatpush1.msra.mxu0 0.0
        %1364 = vmatprep.subr.mxu0 0.0
        %1365 = vmatpush1.msra.mxu0 0.0
        %1366 = vmatprep.subr.mxu0 0.0
        %1367 = vmatpush1.msra.mxu0 0.0
        %1368 = vmatprep.subr.mxu0 0.0
        %1369 = vmatpush1.msra.mxu0 0.0
        %1370 = vmatprep.subr.mxu0 0.0
        %1371 = vmatpush1.msra.mxu0 0.0
        %1372 = vmatprep.subr.mxu0 0.0
        %1373 = vmatpush1.msra.mxu0 0.0
        %1374 = vmatprep.subr.mxu0 0.0
        %1375 = vmatpush1.msra.mxu0 0.0
        %1376 = vmatprep.subr.mxu0 0.0
        %1377 = vmatpush1.msra.mxu0 0.0
        %1378 = vmatprep.subr.mxu0 0.0
        %1379 = vmatpush1.msra.mxu0 0.0
        %1380 = vmatprep.subr.mxu0 0.0
        %1381 = vmatpush1.msra.mxu0 0.0
        %1382 = vmatprep.subr.mxu0 0.0
        %1383 = vmatpush1.msra.mxu0 0.0
        %1384 = vmatprep.subr.mxu0 0.0
        %1385 = vmatpush1.msra.mxu0 0.0
        %1386 = vmatprep.mubr.f32.mxu0 0.0
        %1387 = vmatmul.mubr.f32.gmra.mrb[0].mxu0 %v835
        %v1388 = vpop.f32.mrb[0].mxu0
        %v1389 = vadd.f32 0.0, %v1388
        %v1390 = vpop.f32.mrb[0].mxu0
        %1391 = vdwg.mxu0
        %v1392 = vadd.f32 %v1310, %v1389
        %s1393 = scalar_lea.vmem %s7, 2
        %v1394 = vld [vmem:[%s1393] sm:$0x1]
        %v1396 = vlaneseq
        %v1397 = vshrl.u32 %v1396, 7
        %v1398 = vsub.s32 0, %v1397
        %v1399 = vrot.slane %v1394, %v1398
        %v1401 = vadd.f32 %v1392, %v1399
        %s1402 = scalar_lea.vmem %s4, 192
        %v1403 = vld [vmem:[%s1402] sm:$0xff]
        %v1404 = vld [vmem:[%s1402 + $0x8] sm:$0xff]
        %v1405 = vld [vmem:[%s1402 + $0x10] sm:$0xff]
        %v1406 = vld [vmem:[%s1402 + $0x18] sm:$0xff]
        %v1407 = vld [vmem:[%s1402 + $0x20] sm:$0xff]
        %v1408 = vld [vmem:[%s1402 + $0x28] sm:$0xff]
        %v1409 = vld [vmem:[%s1402 + $0x30] sm:$0xff]
        %v1410 = vld [vmem:[%s1402 + $0x38] sm:$0xff]
        %s1411 = scalar_lea.vmem [#allocation10], 96
        %v1412 = vld [vmem:[%s1411] sm:$0xff]
        %v1413 = vld [vmem:[%s1411 + $0x8] sm:$0xff]
        %v1414 = vld [vmem:[%s1411 + $0x10] sm:$0xff]
        %v1415 = vld [vmem:[%s1411 + $0x18] sm:$0xff]
        %1416 = vmatprep.subr.mxu0 0.0
        %1417 = vmatpush1.msra.mxu0 %v1412
        %1418 = vmatprep.subr.mxu0 0.0
        %1419 = vmatpush1.msra.mxu0 %v1413
        %1420 = vmatprep.subr.mxu0 0.0
        %1421 = vmatpush1.msra.mxu0 %v1414
        %1422 = vmatprep.subr.mxu0 0.0
        %1423 = vmatpush1.msra.mxu0 %v1415
        %1424 = vmatprep.subr.mxu0 0.0
        %1425 = vmatpush1.msra.mxu0 0.0
        %1426 = vmatprep.subr.mxu0 0.0
        %1427 = vmatpush1.msra.mxu0 0.0
        %1428 = vmatprep.subr.mxu0 0.0
        %1429 = vmatpush1.msra.mxu0 0.0
        %1430 = vmatprep.subr.mxu0 0.0
        %1431 = vmatpush1.msra.mxu0 0.0
        %1432 = vmatprep.subr.mxu0 0.0
        %1433 = vmatpush1.msra.mxu0 0.0
        %1434 = vmatprep.subr.mxu0 0.0
        %1435 = vmatpush1.msra.mxu0 0.0
        %1436 = vmatprep.subr.mxu0 0.0
        %1437 = vmatpush1.msra.mxu0 0.0
        %1438 = vmatprep.subr.mxu0 0.0
        %1439 = vmatpush1.msra.mxu0 0.0
        %1440 = vmatprep.subr.mxu0 0.0
        %1441 = vmatpush1.msra.mxu0 0.0
        %1442 = vmatprep.subr.mxu0 0.0
        %1443 = vmatpush1.msra.mxu0 0.0
        %1444 = vmatprep.subr.mxu0 0.0
        %1445 = vmatpush1.msra.mxu0 0.0
        %1446 = vmatprep.subr.mxu0 0.0
        %1447 = vmatpush1.msra.mxu0 0.0
        %1448 = vmatprep.subr.mxu0 0.0
        %1449 = vmatpush1.msra.mxu0 0.0
        %1450 = vmatprep.subr.mxu0 0.0
        %1451 = vmatpush1.msra.mxu0 0.0
        %1452 = vmatprep.subr.mxu0 0.0
        %1453 = vmatpush1.msra.mxu0 0.0
        %1454 = vmatprep.subr.mxu0 0.0
        %1455 = vmatpush1.msra.mxu0 0.0
        %1456 = vmatprep.subr.mxu0 0.0
        %1457 = vmatpush1.msra.mxu0 0.0
        %1458 = vmatprep.subr.mxu0 0.0
        %1459 = vmatpush1.msra.mxu0 0.0
        %1460 = vmatprep.subr.mxu0 0.0
        %1461 = vmatpush1.msra.mxu0 0.0
        %1462 = vmatprep.subr.mxu0 0.0
        %1463 = vmatpush1.msra.mxu0 0.0
        %1464 = vmatprep.subr.mxu0 0.0
        %1465 = vmatpush1.msra.mxu0 0.0
        %1466 = vmatprep.subr.mxu0 0.0
        %1467 = vmatpush1.msra.mxu0 0.0
        %1468 = vmatprep.subr.mxu0 0.0
        %1469 = vmatpush1.msra.mxu0 0.0
        %1470 = vmatprep.subr.mxu0 0.0
        %1471 = vmatpush1.msra.mxu0 0.0
        %1472 = vmatprep.subr.mxu0 0.0
        %1473 = vmatpush1.msra.mxu0 0.0
        %1474 = vmatprep.subr.mxu0 0.0
        %1475 = vmatpush1.msra.mxu0 0.0
        %1476 = vmatprep.subr.mxu0 0.0
        %1477 = vmatpush1.msra.mxu0 0.0
        %1478 = vmatprep.subr.mxu0 0.0
        %1479 = vmatpush1.msra.mxu0 0.0
        %1480 = vmatprep.mubr.f32.mxu0 0.0
        %1481 = vmatmul.mubr.f32.gmra.mrb[0].mxu0 %v680
        %v1482 = vpop.f32.mrb[0].mxu0
        %v1483 = vadd.f32 0.0, %v1482
        %v1484 = vpop.f32.mrb[0].mxu0
        %1485 = vdwg.mxu0
        %1486 = vmatprep.subr.mxu0 0.0
        %1487 = vmatpush1.msra.mxu0 %v1403
        %1488 = vmatprep.subr.mxu0 0.0
        %1489 = vmatpush1.msra.mxu0 %v1404
        %1490 = vmatprep.subr.mxu0 0.0
        %1491 = vmatpush1.msra.mxu0 %v1405
        %1492 = vmatprep.subr.mxu0 0.0
        %1493 = vmatpush1.msra.mxu0 %v1406
        %1494 = vmatprep.subr.mxu0 0.0
        %1495 = vmatpush1.msra.mxu0 %v1407
        %1496 = vmatprep.subr.mxu0 0.0
        %1497 = vmatpush1.msra.mxu0 %v1408
        %1498 = vmatprep.subr.mxu0 0.0
        %1499 = vmatpush1.msra.mxu0 %v1409
        %1500 = vmatprep.subr.mxu0 0.0
        %1501 = vmatpush1.msra.mxu0 %v1410
        %1502 = vmatprep.subr.mxu0 0.0
        %1503 = vmatpush1.msra.mxu0 0.0
        %1504 = vmatprep.subr.mxu0 0.0
        %1505 = vmatpush1.msra.mxu0 0.0
        %1506 = vmatprep.subr.mxu0 0.0
        %1507 = vmatpush1.msra.mxu0 0.0
        %1508 = vmatprep.subr.mxu0 0.0
        %1509 = vmatpush1.msra.mxu0 0.0
        %1510 = vmatprep.subr.mxu0 0.0
        %1511 = vmatpush1.msra.mxu0 0.0
        %1512 = vmatprep.subr.mxu0 0.0
        %1513 = vmatpush1.msra.mxu0 0.0
        %1514 = vmatprep.subr.mxu0 0.0
        %1515 = vmatpush1.msra.mxu0 0.0
        %1516 = vmatprep.subr.mxu0 0.0
        %1517 = vmatpush1.msra.mxu0 0.0
        %1518 = vmatprep.subr.mxu0 0.0
        %1519 = vmatpush1.msra.mxu0 0.0
        %1520 = vmatprep.subr.mxu0 0.0
        %1521 = vmatpush1.msra.mxu0 0.0
        %1522 = vmatprep.subr.mxu0 0.0
        %1523 = vmatpush1.msra.mxu0 0.0
        %1524 = vmatprep.subr.mxu0 0.0
        %1525 = vmatpush1.msra.mxu0 0.0
        %1526 = vmatprep.subr.mxu0 0.0
        %1527 = vmatpush1.msra.mxu0 0.0
        %1528 = vmatprep.subr.mxu0 0.0
        %1529 = vmatpush1.msra.mxu0 0.0
        %1530 = vmatprep.subr.mxu0 0.0
        %1531 = vmatpush1.msra.mxu0 0.0
        %1532 = vmatprep.subr.mxu0 0.0
        %1533 = vmatpush1.msra.mxu0 0.0
        %1534 = vmatprep.subr.mxu0 0.0
        %1535 = vmatpush1.msra.mxu0 0.0
        %1536 = vmatprep.subr.mxu0 0.0
        %1537 = vmatpush1.msra.mxu0 0.0
        %1538 = vmatprep.subr.mxu0 0.0
        %1539 = vmatpush1.msra.mxu0 0.0
        %1540 = vmatprep.subr.mxu0 0.0
        %1541 = vmatpush1.msra.mxu0 0.0
        %1542 = vmatprep.subr.mxu0 0.0
        %1543 = vmatpush1.msra.mxu0 0.0
        %1544 = vmatprep.subr.mxu0 0.0
        %1545 = vmatpush1.msra.mxu0 0.0
        %1546 = vmatprep.subr.mxu0 0.0
        %1547 = vmatpush1.msra.mxu0 0.0
        %1548 = vmatprep.subr.mxu0 0.0
        %1549 = vmatpush1.msra.mxu0 0.0
        %1550 = vmatprep.mubr.f32.mxu0 0.0
        %1551 = vmatmul.mubr.f32.gmra.mrb[0].mxu0 %v754
        %v1552 = vpop.f32.mrb[0].mxu0
        %v1553 = vadd.f32 %v1483, %v1552
        %v1554 = vpop.f32.mrb[0].mxu0
        %1555 = vdwg.mxu0
        %s1556 = scalar_lea.vmem %s6, 192
        %v1557 = vld [vmem:[%s1556] sm:$0xff]
        %v1558 = vld [vmem:[%s1556 + $0x8] sm:$0xff]
        %v1559 = vld [vmem:[%s1556 + $0x10] sm:$0xff]
        %v1560 = vld [vmem:[%s1556 + $0x18] sm:$0xff]
        %v1561 = vld [vmem:[%s1556 + $0x20] sm:$0xff]
        %v1562 = vld [vmem:[%s1556 + $0x28] sm:$0xff]
        %v1563 = vld [vmem:[%s1556 + $0x30] sm:$0xff]
        %v1564 = vld [vmem:[%s1556 + $0x38] sm:$0xff]
        %1565 = vmatprep.subr.mxu0 0.0
        %1566 = vmatpush1.msra.mxu0 %v1557
        %1567 = vmatprep.subr.mxu0 0.0
        %1568 = vmatpush1.msra.mxu0 %v1558
        %1569 = vmatprep.subr.mxu0 0.0
        %1570 = vmatpush1.msra.mxu0 %v1559
        %1571 = vmatprep.subr.mxu0 0.0
        %1572 = vmatpush1.msra.mxu0 %v1560
        %1573 = vmatprep.subr.mxu0 0.0
        %1574 = vmatpush1.msra.mxu0 %v1561
        %1575 = vmatprep.subr.mxu0 0.0
        %1576 = vmatpush1.msra.mxu0 %v1562
        %1577 = vmatprep.subr.mxu0 0.0
        %1578 = vmatpush1.msra.mxu0 %v1563
        %1579 = vmatprep.subr.mxu0 0.0
        %1580 = vmatpush1.msra.mxu0 %v1564
        %1581 = vmatprep.subr.mxu0 0.0
        %1582 = vmatpush1.msra.mxu0 0.0
        %1583 = vmatprep.subr.mxu0 0.0
        %1584 = vmatpush1.msra.mxu0 0.0
        %1585 = vmatprep.subr.mxu0 0.0
        %1586 = vmatpush1.msra.mxu0 0.0
        %1587 = vmatprep.subr.mxu0 0.0
        %1588 = vmatpush1.msra.mxu0 0.0
        %1589 = vmatprep.subr.mxu0 0.0
        %1590 = vmatpush1.msra.mxu0 0.0
        %1591 = vmatprep.subr.mxu0 0.0
        %1592 = vmatpush1.msra.mxu0 0.0
        %1593 = vmatprep.subr.mxu0 0.0
        %1594 = vmatpush1.msra.mxu0 0.0
        %1595 = vmatprep.subr.mxu0 0.0
        %1596 = vmatpush1.msra.mxu0 0.0
        %1597 = vmatprep.subr.mxu0 0.0
        %1598 = vmatpush1.msra.mxu0 0.0
        %1599 = vmatprep.subr.mxu0 0.0
        %1600 = vmatpush1.msra.mxu0 0.0
        %1601 = vmatprep.subr.mxu0 0.0
        %1602 = vmatpush1.msra.mxu0 0.0
        %1603 = vmatprep.subr.mxu0 0.0
        %1604 = vmatpush1.msra.mxu0 0.0
        %1605 = vmatprep.subr.mxu0 0.0
        %1606 = vmatpush1.msra.mxu0 0.0
        %1607 = vmatprep.subr.mxu0 0.0
        %1608 = vmatpush1.msra.mxu0 0.0
        %1609 = vmatprep.subr.mxu0 0.0
        %1610 = vmatpush1.msra.mxu0 0.0
        %1611 = vmatprep.subr.mxu0 0.0
        %1612 = vmatpush1.msra.mxu0 0.0
        %1613 = vmatprep.subr.mxu0 0.0
        %1614 = vmatpush1.msra.mxu0 0.0
        %1615 = vmatprep.subr.mxu0 0.0
        %1616 = vmatpush1.msra.mxu0 0.0
        %1617 = vmatprep.subr.mxu0 0.0
        %1618 = vmatpush1.msra.mxu0 0.0
        %1619 = vmatprep.subr.mxu0 0.0
        %1620 = vmatpush1.msra.mxu0 0.0
        %1621 = vmatprep.subr.mxu0 0.0
        %1622 = vmatpush1.msra.mxu0 0.0
        %1623 = vmatprep.subr.mxu0 0.0
        %1624 = vmatpush1.msra.mxu0 0.0
        %1625 = vmatprep.subr.mxu0 0.0
        %1626 = vmatpush1.msra.mxu0 0.0
        %1627 = vmatprep.subr.mxu0 0.0
        %1628 = vmatpush1.msra.mxu0 0.0
        %1629 = vmatprep.mubr.f32.mxu0 0.0
        %1630 = vmatmul.mubr.f32.gmra.mrb[0].mxu0 %v835
        %v1631 = vpop.f32.mrb[0].mxu0
        %v1632 = vadd.f32 0.0, %v1631
        %v1633 = vpop.f32.mrb[0].mxu0
        %1634 = vdwg.mxu0
        %v1635 = vadd.f32 %v1553, %v1632
        %s1636 = scalar_lea.vmem %s7, 3
        %v1637 = vld [vmem:[%s1636] sm:$0x1]
        %v1639 = vlaneseq
        %v1640 = vshrl.u32 %v1639, 7
        %v1641 = vsub.s32 0, %v1640
        %v1642 = vrot.slane %v1637, %v1641
        %v1644 = vadd.f32 %v1635, %v1642
        %v1645 = vxor.u32 %v915, 2147483648
        %v1646 = vmul.f32 %v1645, 1.442695
        %v1647 = vpow.pop %v1646
        %v1648 = vadd.f32 %v1647, 1.0
        %v1649 = vrcp.pop %v1648
        %v1650 = vmul.f32 1.0, %v1649
        %v1651 = vxor.u32 %v1158, 2147483648
        %v1652 = vmul.f32 %v1651, 1.442695
        %v1653 = vpow.pop %v1652
        %v1654 = vadd.f32 %v1653, 1.0
        %v1655 = vrcp.pop %v1654
        %v1656 = vmul.f32 1.0, %v1655
        %v1657 = vtanh.pop %v1401
        %v1658 = vxor.u32 %v1644, 2147483648
        %v1659 = vmul.f32 %v1658, 1.442695
        %v1660 = vpow.pop %v1659
        %v1661 = vadd.f32 %v1660, 1.0
        %v1662 = vrcp.pop %v1661
        %v1663 = vmul.f32 1.0, %v1662
        %v1664 = vmul.f32 %v1656, %v664
        %v1665 = vmul.f32 %v1650, %v1657
        %v1666 = vadd.f32 %v1664, %v1665
        %v1667 = vtanh.pop %v1666
        %v1668 = vmul.f32 %v1663, %v1667
        %v1669 = vld [vmem:[#allocation4] sm:$0xff]
        %v1670 = vld [vmem:[#allocation5] sm:$0xff]
        %v1671 = vld [vmem:[%s8] sm:$0xff]
        %v1672 = vld [vmem:[%s8 + $0x8] sm:$0xff]
        %v1673 = vld [vmem:[%s8 + $0x10] sm:$0xff]
        %v1674 = vld [vmem:[%s8 + $0x18] sm:$0xff]
        %v1675 = vld [vmem:[%s8 + $0x20] sm:$0xff]
        %v1676 = vld [vmem:[%s8 + $0x28] sm:$0xff]
        %v1677 = vld [vmem:[%s8 + $0x30] sm:$0xff]
        %v1678 = vld [vmem:[%s8 + $0x38] sm:$0xff]
        %v1679 = vld [vmem:[#allocation12] sm:$0xff]
        %v1680 = vld [vmem:[#allocation12 + $0x8] sm:$0xff]
        %v1681 = vld [vmem:[#allocation12 + $0x10] sm:$0xff]
        %v1682 = vld [vmem:[#allocation12 + $0x18] sm:$0xff]
        %v1684 = vsel %vm678, %v1669, 0
        %1686 = vmatprep.subr.mxu0 0.0
        %1687 = vmatpush1.msra.mxu0 %v1679
        %1688 = vmatprep.subr.mxu0 0.0
        %1689 = vmatpush1.msra.mxu0 %v1680
        %1690 = vmatprep.subr.mxu0 0.0
        %1691 = vmatpush1.msra.mxu0 %v1681
        %1692 = vmatprep.subr.mxu0 0.0
        %1693 = vmatpush1.msra.mxu0 %v1682
        %1694 = vmatprep.subr.mxu0 0.0
        %1695 = vmatpush1.msra.mxu0 0.0
        %1696 = vmatprep.subr.mxu0 0.0
        %1697 = vmatpush1.msra.mxu0 0.0
        %1698 = vmatprep.subr.mxu0 0.0
        %1699 = vmatpush1.msra.mxu0 0.0
        %1700 = vmatprep.subr.mxu0 0.0
        %1701 = vmatpush1.msra.mxu0 0.0
        %1702 = vmatprep.subr.mxu0 0.0
        %1703 = vmatpush1.msra.mxu0 0.0
        %1704 = vmatprep.subr.mxu0 0.0
        %1705 = vmatpush1.msra.mxu0 0.0
        %1706 = vmatprep.subr.mxu0 0.0
        %1707 = vmatpush1.msra.mxu0 0.0
        %1708 = vmatprep.subr.mxu0 0.0
        %1709 = vmatpush1.msra.mxu0 0.0
        %1710 = vmatprep.subr.mxu0 0.0
        %1711 = vmatpush1.msra.mxu0 0.0
        %1712 = vmatprep.subr.mxu0 0.0
        %1713 = vmatpush1.msra.mxu0 0.0
        %1714 = vmatprep.subr.mxu0 0.0
        %1715 = vmatpush1.msra.mxu0 0.0
        %1716 = vmatprep.subr.mxu0 0.0
        %1717 = vmatpush1.msra.mxu0 0.0
        %1718 = vmatprep.subr.mxu0 0.0
        %1719 = vmatpush1.msra.mxu0 0.0
        %1720 = vmatprep.subr.mxu0 0.0
        %1721 = vmatpush1.msra.mxu0 0.0
        %1722 = vmatprep.subr.mxu0 0.0
        %1723 = vmatpush1.msra.mxu0 0.0
        %1724 = vmatprep.subr.mxu0 0.0
        %1725 = vmatpush1.msra.mxu0 0.0
        %1726 = vmatprep.subr.mxu0 0.0
        %1727 = vmatpush1.msra.mxu0 0.0
        %1728 = vmatprep.subr.mxu0 0.0
        %1729 = vmatpush1.msra.mxu0 0.0
        %1730 = vmatprep.subr.mxu0 0.0
        %1731 = vmatpush1.msra.mxu0 0.0
        %1732 = vmatprep.subr.mxu0 0.0
        %1733 = vmatpush1.msra.mxu0 0.0
        %1734 = vmatprep.subr.mxu0 0.0
        %1735 = vmatpush1.msra.mxu0 0.0
        %1736 = vmatprep.subr.mxu0 0.0
        %1737 = vmatpush1.msra.mxu0 0.0
        %1738 = vmatprep.subr.mxu0 0.0
        %1739 = vmatpush1.msra.mxu0 0.0
        %1740 = vmatprep.subr.mxu0 0.0
        %1741 = vmatpush1.msra.mxu0 0.0
        %1742 = vmatprep.subr.mxu0 0.0
        %1743 = vmatpush1.msra.mxu0 0.0
        %1744 = vmatprep.subr.mxu0 0.0
        %1745 = vmatpush1.msra.mxu0 0.0
        %1746 = vmatprep.subr.mxu0 0.0
        %1747 = vmatpush1.msra.mxu0 0.0
        %1748 = vmatprep.subr.mxu0 0.0
        %1749 = vmatpush1.msra.mxu0 0.0
        %1750 = vmatprep.mubr.f32.mxu0 0.0
        %1751 = vmatmul.mubr.f32.gmra.mrb[0].mxu0 %v1684
        %v1752 = vpop.f32.mrb[0].mxu0
        %v1753 = vadd.f32 0.0, %v1752
        %v1754 = vpop.f32.mrb[0].mxu0
        %1755 = vdwg.mxu0
        %v1757 = vsel %vm752, %v1668, 0
        %1759 = vmatprep.subr.mxu0 0.0
        %1760 = vmatpush1.msra.mxu0 %v1671
        %1761 = vmatprep.subr.mxu0 0.0
        %1762 = vmatpush1.msra.mxu0 %v1672
        %1763 = vmatprep.subr.mxu0 0.0
        %1764 = vmatpush1.msra.mxu0 %v1673
        %1765 = vmatprep.subr.mxu0 0.0
        %1766 = vmatpush1.msra.mxu0 %v1674
        %1767 = vmatprep.subr.mxu0 0.0
        %1768 = vmatpush1.msra.mxu0 %v1675
        %1769 = vmatprep.subr.mxu0 0.0
        %1770 = vmatpush1.msra.mxu0 %v1676
        %1771 = vmatprep.subr.mxu0 0.0
        %1772 = vmatpush1.msra.mxu0 %v1677
        %1773 = vmatprep.subr.mxu0 0.0
        %1774 = vmatpush1.msra.mxu0 %v1678
        %1775 = vmatprep.subr.mxu0 0.0
        %1776 = vmatpush1.msra.mxu0 0.0
        %1777 = vmatprep.subr.mxu0 0.0
        %1778 = vmatpush1.msra.mxu0 0.0
        %1779 = vmatprep.subr.mxu0 0.0
        %1780 = vmatpush1.msra.mxu0 0.0
        %1781 = vmatprep.subr.mxu0 0.0
        %1782 = vmatpush1.msra.mxu0 0.0
        %1783 = vmatprep.subr.mxu0 0.0
        %1784 = vmatpush1.msra.mxu0 0.0
        %1785 = vmatprep.subr.mxu0 0.0
        %1786 = vmatpush1.msra.mxu0 0.0
        %1787 = vmatprep.subr.mxu0 0.0
        %1788 = vmatpush1.msra.mxu0 0.0
        %1789 = vmatprep.subr.mxu0 0.0
        %1790 = vmatpush1.msra.mxu0 0.0
        %1791 = vmatprep.subr.mxu0 0.0
        %1792 = vmatpush1.msra.mxu0 0.0
        %1793 = vmatprep.subr.mxu0 0.0
        %1794 = vmatpush1.msra.mxu0 0.0
        %1795 = vmatprep.subr.mxu0 0.0
        %1796 = vmatpush1.msra.mxu0 0.0
        %1797 = vmatprep.subr.mxu0 0.0
        %1798 = vmatpush1.msra.mxu0 0.0
        %1799 = vmatprep.subr.mxu0 0.0
        %1800 = vmatpush1.msra.mxu0 0.0
        %1801 = vmatprep.subr.mxu0 0.0
        %1802 = vmatpush1.msra.mxu0 0.0
        %1803 = vmatprep.subr.mxu0 0.0
        %1804 = vmatpush1.msra.mxu0 0.0
        %1805 = vmatprep.subr.mxu0 0.0
        %1806 = vmatpush1.msra.mxu0 0.0
        %1807 = vmatprep.subr.mxu0 0.0
        %1808 = vmatpush1.msra.mxu0 0.0
        %1809 = vmatprep.subr.mxu0 0.0
        %1810 = vmatpush1.msra.mxu0 0.0
        %1811 = vmatprep.subr.mxu0 0.0
        %1812 = vmatpush1.msra.mxu0 0.0
        %1813 = vmatprep.subr.mxu0 0.0
        %1814 = vmatpush1.msra.mxu0 0.0
        %1815 = vmatprep.subr.mxu0 0.0
        %1816 = vmatpush1.msra.mxu0 0.0
        %1817 = vmatprep.subr.mxu0 0.0
        %1818 = vmatpush1.msra.mxu0 0.0
        %1819 = vmatprep.subr.mxu0 0.0
        %1820 = vmatpush1.msra.mxu0 0.0
        %1821 = vmatprep.subr.mxu0 0.0
        %1822 = vmatpush1.msra.mxu0 0.0
        %1823 = vmatprep.mubr.f32.mxu0 0.0
        %1824 = vmatmul.mubr.f32.gmra.mrb[0].mxu0 %v1757
        %v1825 = vpop.f32.mrb[0].mxu0
        %v1826 = vadd.f32 %v1753, %v1825
        %v1827 = vpop.f32.mrb[0].mxu0
        %1828 = vdwg.mxu0
        %v1829 = vld [vmem:[%s10] sm:$0x1]
        %v1831 = vlaneseq
        %v1832 = vshrl.u32 %v1831, 7
        %v1833 = vsub.s32 0, %v1832
        %v1834 = vrot.slane %v1829, %v1833
        %v1836 = vadd.f32 %v1826, %v1834
        %s1837 = scalar_lea.vmem %s8, 64
        %v1838 = vld [vmem:[%s1837] sm:$0xff]
        %v1839 = vld [vmem:[%s1837 + $0x8] sm:$0xff]
        %v1840 = vld [vmem:[%s1837 + $0x10] sm:$0xff]
        %v1841 = vld [vmem:[%s1837 + $0x18] sm:$0xff]
        %v1842 = vld [vmem:[%s1837 + $0x20] sm:$0xff]
        %v1843 = vld [vmem:[%s1837 + $0x28] sm:$0xff]
        %v1844 = vld [vmem:[%s1837 + $0x30] sm:$0xff]
        %v1845 = vld [vmem:[%s1837 + $0x38] sm:$0xff]
        %s1846 = scalar_lea.vmem [#allocation12], 32
        %v1847 = vld [vmem:[%s1846] sm:$0xff]
        %v1848 = vld [vmem:[%s1846 + $0x8] sm:$0xff]
        %v1849 = vld [vmem:[%s1846 + $0x10] sm:$0xff]
        %v1850 = vld [vmem:[%s1846 + $0x18] sm:$0xff]
        %1851 = vmatprep.subr.mxu0 0.0
        %1852 = vmatpush1.msra.mxu0 %v1847
        %1853 = vmatprep.subr.mxu0 0.0
        %1854 = vmatpush1.msra.mxu0 %v1848
        %1855 = vmatprep.subr.mxu0 0.0
        %1856 = vmatpush1.msra.mxu0 %v1849
        %1857 = vmatprep.subr.mxu0 0.0
        %1858 = vmatpush1.msra.mxu0 %v1850
        %1859 = vmatprep.subr.mxu0 0.0
        %1860 = vmatpush1.msra.mxu0 0.0
        %1861 = vmatprep.subr.mxu0 0.0
        %1862 = vmatpush1.msra.mxu0 0.0
        %1863 = vmatprep.subr.mxu0 0.0
        %1864 = vmatpush1.msra.mxu0 0.0
        %1865 = vmatprep.subr.mxu0 0.0
        %1866 = vmatpush1.msra.mxu0 0.0
        %1867 = vmatprep.subr.mxu0 0.0
        %1868 = vmatpush1.msra.mxu0 0.0
        %1869 = vmatprep.subr.mxu0 0.0
        %1870 = vmatpush1.msra.mxu0 0.0
        %1871 = vmatprep.subr.mxu0 0.0
        %1872 = vmatpush1.msra.mxu0 0.0
        %1873 = vmatprep.subr.mxu0 0.0
        %1874 = vmatpush1.msra.mxu0 0.0
        %1875 = vmatprep.subr.mxu0 0.0
        %1876 = vmatpush1.msra.mxu0 0.0
        %1877 = vmatprep.subr.mxu0 0.0
        %1878 = vmatpush1.msra.mxu0 0.0
        %1879 = vmatprep.subr.mxu0 0.0
        %1880 = vmatpush1.msra.mxu0 0.0
        %1881 = vmatprep.subr.mxu0 0.0
        %1882 = vmatpush1.msra.mxu0 0.0
        %1883 = vmatprep.subr.mxu0 0.0
        %1884 = vmatpush1.msra.mxu0 0.0
        %1885 = vmatprep.subr.mxu0 0.0
        %1886 = vmatpush1.msra.mxu0 0.0
        %1887 = vmatprep.subr.mxu0 0.0
        %1888 = vmatpush1.msra.mxu0 0.0
        %1889 = vmatprep.subr.mxu0 0.0
        %1890 = vmatpush1.msra.mxu0 0.0
        %1891 = vmatprep.subr.mxu0 0.0
        %1892 = vmatpush1.msra.mxu0 0.0
        %1893 = vmatprep.subr.mxu0 0.0
        %1894 = vmatpush1.msra.mxu0 0.0
        %1895 = vmatprep.subr.mxu0 0.0
        %1896 = vmatpush1.msra.mxu0 0.0
        %1897 = vmatprep.subr.mxu0 0.0
        %1898 = vmatpush1.msra.mxu0 0.0
        %1899 = vmatprep.subr.mxu0 0.0
        %1900 = vmatpush1.msra.mxu0 0.0
        %1901 = vmatprep.subr.mxu0 0.0
        %1902 = vmatpush1.msra.mxu0 0.0
        %1903 = vmatprep.subr.mxu0 0.0
        %1904 = vmatpush1.msra.mxu0 0.0
        %1905 = vmatprep.subr.mxu0 0.0
        %1906 = vmatpush1.msra.mxu0 0.0
        %1907 = vmatprep.subr.mxu0 0.0
        %1908 = vmatpush1.msra.mxu0 0.0
        %1909 = vmatprep.subr.mxu0 0.0
        %1910 = vmatpush1.msra.mxu0 0.0
        %1911 = vmatprep.subr.mxu0 0.0
        %1912 = vmatpush1.msra.mxu0 0.0
        %1913 = vmatprep.subr.mxu0 0.0
        %1914 = vmatpush1.msra.mxu0 0.0
        %1915 = vmatprep.mubr.f32.mxu0 0.0
        %1916 = vmatmul.mubr.f32.gmra.mrb[0].mxu0 %v1684
        %v1917 = vpop.f32.mrb[0].mxu0
        %v1918 = vadd.f32 0.0, %v1917
        %v1919 = vpop.f32.mrb[0].mxu0
        %1920 = vdwg.mxu0
        %1921 = vmatprep.subr.mxu0 0.0
        %1922 = vmatpush1.msra.mxu0 %v1838
        %1923 = vmatprep.subr.mxu0 0.0
        %1924 = vmatpush1.msra.mxu0 %v1839
        %1925 = vmatprep.subr.mxu0 0.0
        %1926 = vmatpush1.msra.mxu0 %v1840
        %1927 = vmatprep.subr.mxu0 0.0
        %1928 = vmatpush1.msra.mxu0 %v1841
        %1929 = vmatprep.subr.mxu0 0.0
        %1930 = vmatpush1.msra.mxu0 %v1842
        %1931 = vmatprep.subr.mxu0 0.0
        %1932 = vmatpush1.msra.mxu0 %v1843
        %1933 = vmatprep.subr.mxu0 0.0
        %1934 = vmatpush1.msra.mxu0 %v1844
        %1935 = vmatprep.subr.mxu0 0.0
        %1936 = vmatpush1.msra.mxu0 %v1845
        %1937 = vmatprep.subr.mxu0 0.0
        %1938 = vmatpush1.msra.mxu0 0.0
        %1939 = vmatprep.subr.mxu0 0.0
        %1940 = vmatpush1.msra.mxu0 0.0
        %1941 = vmatprep.subr.mxu0 0.0
        %1942 = vmatpush1.msra.mxu0 0.0
        %1943 = vmatprep.subr.mxu0 0.0
        %1944 = vmatpush1.msra.mxu0 0.0
        %1945 = vmatprep.subr.mxu0 0.0
        %1946 = vmatpush1.msra.mxu0 0.0
        %1947 = vmatprep.subr.mxu0 0.0
        %1948 = vmatpush1.msra.mxu0 0.0
        %1949 = vmatprep.subr.mxu0 0.0
        %1950 = vmatpush1.msra.mxu0 0.0
        %1951 = vmatprep.subr.mxu0 0.0
        %1952 = vmatpush1.msra.mxu0 0.0
        %1953 = vmatprep.subr.mxu0 0.0
        %1954 = vmatpush1.msra.mxu0 0.0
        %1955 = vmatprep.subr.mxu0 0.0
        %1956 = vmatpush1.msra.mxu0 0.0
        %1957 = vmatprep.subr.mxu0 0.0
        %1958 = vmatpush1.msra.mxu0 0.0
        %1959 = vmatprep.subr.mxu0 0.0
        %1960 = vmatpush1.msra.mxu0 0.0
        %1961 = vmatprep.subr.mxu0 0.0
        %1962 = vmatpush1.msra.mxu0 0.0
        %1963 = vmatprep.subr.mxu0 0.0
        %1964 = vmatpush1.msra.mxu0 0.0
        %1965 = vmatprep.subr.mxu0 0.0
        %1966 = vmatpush1.msra.mxu0 0.0
        %1967 = vmatprep.subr.mxu0 0.0
        %1968 = vmatpush1.msra.mxu0 0.0
        %1969 = vmatprep.subr.mxu0 0.0
        %1970 = vmatpush1.msra.mxu0 0.0
        %1971 = vmatprep.subr.mxu0 0.0
        %1972 = vmatpush1.msra.mxu0 0.0
        %1973 = vmatprep.subr.mxu0 0.0
        %1974 = vmatpush1.msra.mxu0 0.0
        %1975 = vmatprep.subr.mxu0 0.0
        %1976 = vmatpush1.msra.mxu0 0.0
        %1977 = vmatprep.subr.mxu0 0.0
        %1978 = vmatpush1.msra.mxu0 0.0
        %1979 = vmatprep.subr.mxu0 0.0
        %1980 = vmatpush1.msra.mxu0 0.0
        %1981 = vmatprep.subr.mxu0 0.0
        %1982 = vmatpush1.msra.mxu0 0.0
        %1983 = vmatprep.subr.mxu0 0.0
        %1984 = vmatpush1.msra.mxu0 0.0
        %1985 = vmatprep.mubr.f32.mxu0 0.0
        %1986 = vmatmul.mubr.f32.gmra.mrb[0].mxu0 %v1757
        %v1987 = vpop.f32.mrb[0].mxu0
        %v1988 = vadd.f32 %v1918, %v1987
        %v1989 = vpop.f32.mrb[0].mxu0
        %1990 = vdwg.mxu0
        %s1991 = scalar_lea.vmem %s10, 1
        %v1992 = vld [vmem:[%s1991] sm:$0x1]
        %v1994 = vlaneseq
        %v1995 = vshrl.u32 %v1994, 7
        %v1996 = vsub.s32 0, %v1995
        %v1997 = vrot.slane %v1992, %v1996
        %v1999 = vadd.f32 %v1988, %v1997
        %s2000 = scalar_lea.vmem %s8, 128
        %v2001 = vld [vmem:[%s2000] sm:$0xff]
        %v2002 = vld [vmem:[%s2000 + $0x8] sm:$0xff]
        %v2003 = vld [vmem:[%s2000 + $0x10] sm:$0xff]
        %v2004 = vld [vmem:[%s2000 + $0x18] sm:$0xff]
        %v2005 = vld [vmem:[%s2000 + $0x20] sm:$0xff]
        %v2006 = vld [vmem:[%s2000 + $0x28] sm:$0xff]
        %v2007 = vld [vmem:[%s2000 + $0x30] sm:$0xff]
        %v2008 = vld [vmem:[%s2000 + $0x38] sm:$0xff]
        %s2009 = scalar_lea.vmem [#allocation12], 64
        %v2010 = vld [vmem:[%s2009] sm:$0xff]
        %v2011 = vld [vmem:[%s2009 + $0x8] sm:$0xff]
        %v2012 = vld [vmem:[%s2009 + $0x10] sm:$0xff]
        %v2013 = vld [vmem:[%s2009 + $0x18] sm:$0xff]
        %2014 = vmatprep.subr.mxu0 0.0
        %2015 = vmatpush1.msra.mxu0 %v2010
        %2016 = vmatprep.subr.mxu0 0.0
        %2017 = vmatpush1.msra.mxu0 %v2011
        %2018 = vmatprep.subr.mxu0 0.0
        %2019 = vmatpush1.msra.mxu0 %v2012
        %2020 = vmatprep.subr.mxu0 0.0
        %2021 = vmatpush1.msra.mxu0 %v2013
        %2022 = vmatprep.subr.mxu0 0.0
        %2023 = vmatpush1.msra.mxu0 0.0
        %2024 = vmatprep.subr.mxu0 0.0
        %2025 = vmatpush1.msra.mxu0 0.0
        %2026 = vmatprep.subr.mxu0 0.0
        %2027 = vmatpush1.msra.mxu0 0.0
        %2028 = vmatprep.subr.mxu0 0.0
        %2029 = vmatpush1.msra.mxu0 0.0
        %2030 = vmatprep.subr.mxu0 0.0
        %2031 = vmatpush1.msra.mxu0 0.0
        %2032 = vmatprep.subr.mxu0 0.0
        %2033 = vmatpush1.msra.mxu0 0.0
        %2034 = vmatprep.subr.mxu0 0.0
        %2035 = vmatpush1.msra.mxu0 0.0
        %2036 = vmatprep.subr.mxu0 0.0
        %2037 = vmatpush1.msra.mxu0 0.0
        %2038 = vmatprep.subr.mxu0 0.0
        %2039 = vmatpush1.msra.mxu0 0.0
        %2040 = vmatprep.subr.mxu0 0.0
        %2041 = vmatpush1.msra.mxu0 0.0
        %2042 = vmatprep.subr.mxu0 0.0
        %2043 = vmatpush1.msra.mxu0 0.0
        %2044 = vmatprep.subr.mxu0 0.0
        %2045 = vmatpush1.msra.mxu0 0.0
        %2046 = vmatprep.subr.mxu0 0.0
        %2047 = vmatpush1.msra.mxu0 0.0
        %2048 = vmatprep.subr.mxu0 0.0
        %2049 = vmatpush1.msra.mxu0 0.0
        %2050 = vmatprep.subr.mxu0 0.0
        %2051 = vmatpush1.msra.mxu0 0.0
        %2052 = vmatprep.subr.mxu0 0.0
        %2053 = vmatpush1.msra.mxu0 0.0
        %2054 = vmatprep.subr.mxu0 0.0
        %2055 = vmatpush1.msra.mxu0 0.0
        %2056 = vmatprep.subr.mxu0 0.0
        %2057 = vmatpush1.msra.mxu0 0.0
        %2058 = vmatprep.subr.mxu0 0.0
        %2059 = vmatpush1.msra.mxu0 0.0
        %2060 = vmatprep.subr.mxu0 0.0
        %2061 = vmatpush1.msra.mxu0 0.0
        %2062 = vmatprep.subr.mxu0 0.0
        %2063 = vmatpush1.msra.mxu0 0.0
        %2064 = vmatprep.subr.mxu0 0.0
        %2065 = vmatpush1.msra.mxu0 0.0
        %2066 = vmatprep.subr.mxu0 0.0
        %2067 = vmatpush1.msra.mxu0 0.0
        %2068 = vmatprep.subr.mxu0 0.0
        %2069 = vmatpush1.msra.mxu0 0.0
        %2070 = vmatprep.subr.mxu0 0.0
        %2071 = vmatpush1.msra.mxu0 0.0
        %2072 = vmatprep.subr.mxu0 0.0
        %2073 = vmatpush1.msra.mxu0 0.0
        %2074 = vmatprep.subr.mxu0 0.0
        %2075 = vmatpush1.msra.mxu0 0.0
        %2076 = vmatprep.subr.mxu0 0.0
        %2077 = vmatpush1.msra.mxu0 0.0
        %2078 = vmatprep.mubr.f32.mxu0 0.0
        %2079 = vmatmul.mubr.f32.gmra.mrb[0].mxu0 %v1684
        %v2080 = vpop.f32.mrb[0].mxu0
        %v2081 = vadd.f32 0.0, %v2080
        %v2082 = vpop.f32.mrb[0].mxu0
        %2083 = vdwg.mxu0
        %2084 = vmatprep.subr.mxu0 0.0
        %2085 = vmatpush1.msra.mxu0 %v2001
        %2086 = vmatprep.subr.mxu0 0.0
        %2087 = vmatpush1.msra.mxu0 %v2002
        %2088 = vmatprep.subr.mxu0 0.0
        %2089 = vmatpush1.msra.mxu0 %v2003
        %2090 = vmatprep.subr.mxu0 0.0
        %2091 = vmatpush1.msra.mxu0 %v2004
        %2092 = vmatprep.subr.mxu0 0.0
        %2093 = vmatpush1.msra.mxu0 %v2005
        %2094 = vmatprep.subr.mxu0 0.0
        %2095 = vmatpush1.msra.mxu0 %v2006
        %2096 = vmatprep.subr.mxu0 0.0
        %2097 = vmatpush1.msra.mxu0 %v2007
        %2098 = vmatprep.subr.mxu0 0.0
        %2099 = vmatpush1.msra.mxu0 %v2008
        %2100 = vmatprep.subr.mxu0 0.0
        %2101 = vmatpush1.msra.mxu0 0.0
        %2102 = vmatprep.subr.mxu0 0.0
        %2103 = vmatpush1.msra.mxu0 0.0
        %2104 = vmatprep.subr.mxu0 0.0
        %2105 = vmatpush1.msra.mxu0 0.0
        %2106 = vmatprep.subr.mxu0 0.0
        %2107 = vmatpush1.msra.mxu0 0.0
        %2108 = vmatprep.subr.mxu0 0.0
        %2109 = vmatpush1.msra.mxu0 0.0
        %2110 = vmatprep.subr.mxu0 0.0
        %2111 = vmatpush1.msra.mxu0 0.0
        %2112 = vmatprep.subr.mxu0 0.0
        %2113 = vmatpush1.msra.mxu0 0.0
        %2114 = vmatprep.subr.mxu0 0.0
        %2115 = vmatpush1.msra.mxu0 0.0
        %2116 = vmatprep.subr.mxu0 0.0
        %2117 = vmatpush1.msra.mxu0 0.0
        %2118 = vmatprep.subr.mxu0 0.0
        %2119 = vmatpush1.msra.mxu0 0.0
        %2120 = vmatprep.subr.mxu0 0.0
        %2121 = vmatpush1.msra.mxu0 0.0
        %2122 = vmatprep.subr.mxu0 0.0
        %2123 = vmatpush1.msra.mxu0 0.0
        %2124 = vmatprep.subr.mxu0 0.0
        %2125 = vmatpush1.msra.mxu0 0.0
        %2126 = vmatprep.subr.mxu0 0.0
        %2127 = vmatpush1.msra.mxu0 0.0
        %2128 = vmatprep.subr.mxu0 0.0
        %2129 = vmatpush1.msra.mxu0 0.0
        %2130 = vmatprep.subr.mxu0 0.0
        %2131 = vmatpush1.msra.mxu0 0.0
        %2132 = vmatprep.subr.mxu0 0.0
        %2133 = vmatpush1.msra.mxu0 0.0
        %2134 = vmatprep.subr.mxu0 0.0
        %2135 = vmatpush1.msra.mxu0 0.0
        %2136 = vmatprep.subr.mxu0 0.0
        %2137 = vmatpush1.msra.mxu0 0.0
        %2138 = vmatprep.subr.mxu0 0.0
        %2139 = vmatpush1.msra.mxu0 0.0
        %2140 = vmatprep.subr.mxu0 0.0
        %2141 = vmatpush1.msra.mxu0 0.0
        %2142 = vmatprep.subr.mxu0 0.0
        %2143 = vmatpush1.msra.mxu0 0.0
        %2144 = vmatprep.subr.mxu0 0.0
        %2145 = vmatpush1.msra.mxu0 0.0
        %2146 = vmatprep.subr.mxu0 0.0
        %2147 = vmatpush1.msra.mxu0 0.0
        %2148 = vmatprep.mubr.f32.mxu0 0.0
        %2149 = vmatmul.mubr.f32.gmra.mrb[0].mxu0 %v1757
        %v2150 = vpop.f32.mrb[0].mxu0
        %v2151 = vadd.f32 %v2081, %v2150
        %v2152 = vpop.f32.mrb[0].mxu0
        %2153 = vdwg.mxu0
        %s2154 = scalar_lea.vmem %s10, 2
        %v2155 = vld [vmem:[%s2154] sm:$0x1]
        %v2157 = vlaneseq
        %v2158 = vshrl.u32 %v2157, 7
        %v2159 = vsub.s32 0, %v2158
        %v2160 = vrot.slane %v2155, %v2159
        %v2162 = vadd.f32 %v2151, %v2160
        %s2163 = scalar_lea.vmem %s8, 192
        %v2164 = vld [vmem:[%s2163] sm:$0xff]
        %v2165 = vld [vmem:[%s2163 + $0x8] sm:$0xff]
        %v2166 = vld [vmem:[%s2163 + $0x10] sm:$0xff]
        %v2167 = vld [vmem:[%s2163 + $0x18] sm:$0xff]
        %v2168 = vld [vmem:[%s2163 + $0x20] sm:$0xff]
        %v2169 = vld [vmem:[%s2163 + $0x28] sm:$0xff]
        %v2170 = vld [vmem:[%s2163 + $0x30] sm:$0xff]
        %v2171 = vld [vmem:[%s2163 + $0x38] sm:$0xff]
        %s2172 = scalar_lea.vmem [#allocation12], 96
        %v2173 = vld [vmem:[%s2172] sm:$0xff]
        %v2174 = vld [vmem:[%s2172 + $0x8] sm:$0xff]
        %v2175 = vld [vmem:[%s2172 + $0x10] sm:$0xff]
        %v2176 = vld [vmem:[%s2172 + $0x18] sm:$0xff]
        %2177 = vmatprep.subr.mxu0 0.0
        %2178 = vmatpush1.msra.mxu0 %v2173
        %2179 = vmatprep.subr.mxu0 0.0
        %2180 = vmatpush1.msra.mxu0 %v2174
        %2181 = vmatprep.subr.mxu0 0.0
        %2182 = vmatpush1.msra.mxu0 %v2175
        %2183 = vmatprep.subr.mxu0 0.0
        %2184 = vmatpush1.msra.mxu0 %v2176
        %2185 = vmatprep.subr.mxu0 0.0
        %2186 = vmatpush1.msra.mxu0 0.0
        %2187 = vmatprep.subr.mxu0 0.0
        %2188 = vmatpush1.msra.mxu0 0.0
        %2189 = vmatprep.subr.mxu0 0.0
        %2190 = vmatpush1.msra.mxu0 0.0
        %2191 = vmatprep.subr.mxu0 0.0
        %2192 = vmatpush1.msra.mxu0 0.0
        %2193 = vmatprep.subr.mxu0 0.0
        %2194 = vmatpush1.msra.mxu0 0.0
        %2195 = vmatprep.subr.mxu0 0.0
        %2196 = vmatpush1.msra.mxu0 0.0
        %2197 = vmatprep.subr.mxu0 0.0
        %2198 = vmatpush1.msra.mxu0 0.0
        %2199 = vmatprep.subr.mxu0 0.0
        %2200 = vmatpush1.msra.mxu0 0.0
        %2201 = vmatprep.subr.mxu0 0.0
        %2202 = vmatpush1.msra.mxu0 0.0
        %2203 = vmatprep.subr.mxu0 0.0
        %2204 = vmatpush1.msra.mxu0 0.0
        %2205 = vmatprep.subr.mxu0 0.0
        %2206 = vmatpush1.msra.mxu0 0.0
        %2207 = vmatprep.subr.mxu0 0.0
        %2208 = vmatpush1.msra.mxu0 0.0
        %2209 = vmatprep.subr.mxu0 0.0
        %2210 = vmatpush1.msra.mxu0 0.0
        %2211 = vmatprep.subr.mxu0 0.0
        %2212 = vmatpush1.msra.mxu0 0.0
        %2213 = vmatprep.subr.mxu0 0.0
        %2214 = vmatpush1.msra.mxu0 0.0
        %2215 = vmatprep.subr.mxu0 0.0
        %2216 = vmatpush1.msra.mxu0 0.0
        %2217 = vmatprep.subr.mxu0 0.0
        %2218 = vmatpush1.msra.mxu0 0.0
        %2219 = vmatprep.subr.mxu0 0.0
        %2220 = vmatpush1.msra.mxu0 0.0
        %2221 = vmatprep.subr.mxu0 0.0
        %2222 = vmatpush1.msra.mxu0 0.0
        %2223 = vmatprep.subr.mxu0 0.0
        %2224 = vmatpush1.msra.mxu0 0.0
        %2225 = vmatprep.subr.mxu0 0.0
        %2226 = vmatpush1.msra.mxu0 0.0
        %2227 = vmatprep.subr.mxu0 0.0
        %2228 = vmatpush1.msra.mxu0 0.0
        %2229 = vmatprep.subr.mxu0 0.0
        %2230 = vmatpush1.msra.mxu0 0.0
        %2231 = vmatprep.subr.mxu0 0.0
        %2232 = vmatpush1.msra.mxu0 0.0
        %2233 = vmatprep.subr.mxu0 0.0
        %2234 = vmatpush1.msra.mxu0 0.0
        %2235 = vmatprep.subr.mxu0 0.0
        %2236 = vmatpush1.msra.mxu0 0.0
        %2237 = vmatprep.subr.mxu0 0.0
        %2238 = vmatpush1.msra.mxu0 0.0
        %2239 = vmatprep.subr.mxu0 0.0
        %2240 = vmatpush1.msra.mxu0 0.0
        %2241 = vmatprep.mubr.f32.mxu0 0.0
        %2242 = vmatmul.mubr.f32.gmra.mrb[0].mxu0 %v1684
        %v2243 = vpop.f32.mrb[0].mxu0
        %v2244 = vadd.f32 0.0, %v2243
        %v2245 = vpop.f32.mrb[0].mxu0
        %2246 = vdwg.mxu0
        %2247 = vmatprep.subr.mxu0 0.0
        %2248 = vmatpush1.msra.mxu0 %v2164
        %2249 = vmatprep.subr.mxu0 0.0
        %2250 = vmatpush1.msra.mxu0 %v2165
        %2251 = vmatprep.subr.mxu0 0.0
        %2252 = vmatpush1.msra.mxu0 %v2166
        %2253 = vmatprep.subr.mxu0 0.0
        %2254 = vmatpush1.msra.mxu0 %v2167
        %2255 = vmatprep.subr.mxu0 0.0
        %2256 = vmatpush1.msra.mxu0 %v2168
        %2257 = vmatprep.subr.mxu0 0.0
        %2258 = vmatpush1.msra.mxu0 %v2169
        %2259 = vmatprep.subr.mxu0 0.0
        %2260 = vmatpush1.msra.mxu0 %v2170
        %2261 = vmatprep.subr.mxu0 0.0
        %2262 = vmatpush1.msra.mxu0 %v2171
        %2263 = vmatprep.subr.mxu0 0.0
        %2264 = vmatpush1.msra.mxu0 0.0
        %2265 = vmatprep.subr.mxu0 0.0
        %2266 = vmatpush1.msra.mxu0 0.0
        %2267 = vmatprep.subr.mxu0 0.0
        %2268 = vmatpush1.msra.mxu0 0.0
        %2269 = vmatprep.subr.mxu0 0.0
        %2270 = vmatpush1.msra.mxu0 0.0
        %2271 = vmatprep.subr.mxu0 0.0
        %2272 = vmatpush1.msra.mxu0 0.0
        %2273 = vmatprep.subr.mxu0 0.0
        %2274 = vmatpush1.msra.mxu0 0.0
        %2275 = vmatprep.subr.mxu0 0.0
        %2276 = vmatpush1.msra.mxu0 0.0
        %2277 = vmatprep.subr.mxu0 0.0
        %2278 = vmatpush1.msra.mxu0 0.0
        %2279 = vmatprep.subr.mxu0 0.0
        %2280 = vmatpush1.msra.mxu0 0.0
        %2281 = vmatprep.subr.mxu0 0.0
        %2282 = vmatpush1.msra.mxu0 0.0
        %2283 = vmatprep.subr.mxu0 0.0
        %2284 = vmatpush1.msra.mxu0 0.0
        %2285 = vmatprep.subr.mxu0 0.0
        %2286 = vmatpush1.msra.mxu0 0.0
        %2287 = vmatprep.subr.mxu0 0.0
        %2288 = vmatpush1.msra.mxu0 0.0
        %2289 = vmatprep.subr.mxu0 0.0
        %2290 = vmatpush1.msra.mxu0 0.0
        %2291 = vmatprep.subr.mxu0 0.0
        %2292 = vmatpush1.msra.mxu0 0.0
        %2293 = vmatprep.subr.mxu0 0.0
        %2294 = vmatpush1.msra.mxu0 0.0
        %2295 = vmatprep.subr.mxu0 0.0
        %2296 = vmatpush1.msra.mxu0 0.0
        %2297 = vmatprep.subr.mxu0 0.0
        %2298 = vmatpush1.msra.mxu0 0.0
        %2299 = vmatprep.subr.mxu0 0.0
        %2300 = vmatpush1.msra.mxu0 0.0
        %2301 = vmatprep.subr.mxu0 0.0
        %2302 = vmatpush1.msra.mxu0 0.0
        %2303 = vmatprep.subr.mxu0 0.0
        %2304 = vmatpush1.msra.mxu0 0.0
        %2305 = vmatprep.subr.mxu0 0.0
        %2306 = vmatpush1.msra.mxu0 0.0
        %2307 = vmatprep.subr.mxu0 0.0
        %2308 = vmatpush1.msra.mxu0 0.0
        %2309 = vmatprep.subr.mxu0 0.0
        %2310 = vmatpush1.msra.mxu0 0.0
        %2311 = vmatprep.mubr.f32.mxu0 0.0
        %2312 = vmatmul.mubr.f32.gmra.mrb[0].mxu0 %v1757
        %v2313 = vpop.f32.mrb[0].mxu0
        %v2314 = vadd.f32 %v2244, %v2313
        %v2315 = vpop.f32.mrb[0].mxu0
        %2316 = vdwg.mxu0
        %s2317 = scalar_lea.vmem %s10, 3
        %v2318 = vld [vmem:[%s2317] sm:$0x1]
        %v2320 = vlaneseq
        %v2321 = vshrl.u32 %v2320, 7
        %v2322 = vsub.s32 0, %v2321
        %v2323 = vrot.slane %v2318, %v2322
        %v2325 = vadd.f32 %v2314, %v2323
        %v2326 = vxor.u32 %v1836, 2147483648
        %v2327 = vmul.f32 %v2326, 1.442695
        %v2328 = vpow.pop %v2327
        %v2329 = vadd.f32 %v2328, 1.0
        %v2330 = vrcp.pop %v2329
        %v2331 = vmul.f32 1.0, %v2330
        %v2332 = vxor.u32 %v1999, 2147483648
        %v2333 = vmul.f32 %v2332, 1.442695
        %v2334 = vpow.pop %v2333
        %v2335 = vadd.f32 %v2334, 1.0
        %v2336 = vrcp.pop %v2335
        %v2337 = vmul.f32 1.0, %v2336
        %v2338 = vtanh.pop %v2162
        %v2339 = vxor.u32 %v2325, 2147483648
        %v2340 = vmul.f32 %v2339, 1.442695
        %v2341 = vpow.pop %v2340
        %v2342 = vadd.f32 %v2341, 1.0
        %v2343 = vrcp.pop %v2342
        %v2344 = vmul.f32 1.0, %v2343
        %v2345 = vmul.f32 %v2337, %v1670
        %v2346 = vmul.f32 %v2331, %v2338
        %v2347 = vadd.f32 %v2345, %v2346
        %v2348 = vtanh.pop %v2347
        %v2349 = vmul.f32 %v2344, %v2348
        %v2351 = vcombine.high %v2349, %v2349
        %v2353 = vunpack.c.l.s4 1966171168
        %v2354 = vunpack.c.0.s8 %v2353
        %v2355 = vlaneseq
        %v2356 = vshrl.u32 %v2355, 7
        %v2357 = vsub.s32 %v2354, %v2356
        %v2358 = vrot.slane %v2349, %v2357
        %v2360 = vunpack.c.l.s4 1966171168
        %v2361 = vunpack.c.0.s8 %v2360
        %v2362 = vlaneseq
        %v2363 = vshrl.u32 %v2362, 7
        %v2364 = vsub.s32 %v2361, %v2363
        %v2365 = vrot.slane %v2351, %v2364
        %v2366 = vcombine.high %v2358, %v2358
        %v2367 = vcombine.high %v2365, %v2365
        %v2369 = vunpack.c.l.s4 1966171168
        %v2370 = vunpack.c.0.s8 %v2369
        %v2371 = vlaneseq
        %v2372 = vshrl.u32 %v2371, 7
        %v2373 = vsub.s32 %v2370, %v2372
        %v2374 = vrot.slane %v2358, %v2373
        %v2376 = vunpack.c.l.s4 1966171168
        %v2377 = vunpack.c.0.s8 %v2376
        %v2378 = vlaneseq
        %v2379 = vshrl.u32 %v2378, 7
        %v2380 = vsub.s32 %v2377, %v2379
        %v2381 = vrot.slane %v2365, %v2380
        %v2383 = vunpack.c.l.s4 1966171168
        %v2384 = vunpack.c.0.s8 %v2383
        %v2385 = vlaneseq
        %v2386 = vshrl.u32 %v2385, 7
        %v2387 = vsub.s32 %v2384, %v2386
        %v2388 = vrot.slane %v2366, %v2387
        %v2390 = vunpack.c.l.s4 1966171168
        %v2391 = vunpack.c.0.s8 %v2390
        %v2392 = vlaneseq
        %v2393 = vshrl.u32 %v2392, 7
        %v2394 = vsub.s32 %v2391, %v2393
        %v2395 = vrot.slane %v2367, %v2394
        %v2396 = vcombine.high %v2374, %v2374
        %v2397 = vcombine.high %v2381, %v2381
        %v2398 = vcombine.high %v2388, %v2388
        %v2399 = vcombine.high %v2395, %v2395
        %v2400 = vld [vmem:[%s0] sm:$0xff]
        %v2401 = vld [vmem:[%s0 + $0x8] sm:$0xff]
        %v2402 = vld [vmem:[%s0 + $0x10] sm:$0xff]
        %v2403 = vld [vmem:[%s0 + $0x18] sm:$0xff]
        %v2404 = vld [vmem:[%s0 + $0x20] sm:$0xff]
        %v2405 = vld [vmem:[%s0 + $0x28] sm:$0xff]
        %v2406 = vld [vmem:[%s0 + $0x30] sm:$0xff]
        %v2407 = vld [vmem:[%s0 + $0x38] sm:$0xff]
        %v2408 = vld [vmem:[%s2] sm:$0x1]
        %v2409 = vld [vmem:[%s2 + $0x1] sm:$0x1]
        %v2410 = vld [vmem:[%s2 + $0x2] sm:$0x1]
        %v2411 = vld [vmem:[%s2 + $0x3] sm:$0x1]
        %v2412 = vld [vmem:[%s2 + $0x4] sm:$0x1]
        %v2413 = vld [vmem:[%s2 + $0x5] sm:$0x1]
        %v2414 = vld [vmem:[%s2 + $0x6] sm:$0x1]
        %v2415 = vld [vmem:[%s2 + $0x7] sm:$0x1]
        %v2416 = vsel %vm678, %v2374, 0
        %v2419 = vsel %vm678, %v2400, 0
        %2421 = vmatprep.subr.mxu0 0.0
        %2422 = vmatpush1.xpose.msra.mxu0 %v2419
        %2423 = vmatprep.subr.mxu0 0.0
        %2424 = vmatpush1.xpose.msra.mxu0 0.0
        %2425 = vmatprep.subr.mxu0 0.0
        %2426 = vmatpush1.xpose.msra.mxu0 0.0
        %2427 = vmatprep.subr.mxu0 0.0
        %2428 = vmatpush1.xpose.msra.mxu0 0.0
        %2429 = vmatprep.subr.mxu0 0.0
        %2430 = vmatpush1.xpose.msra.mxu0 0.0
        %2431 = vmatprep.subr.mxu0 0.0
        %2432 = vmatpush1.xpose.msra.mxu0 0.0
        %2433 = vmatprep.subr.mxu0 0.0
        %2434 = vmatpush1.xpose.msra.mxu0 0.0
        %2435 = vmatprep.subr.mxu0 0.0
        %2436 = vmatpush1.xpose.msra.mxu0 0.0
        %2437 = vmatprep.subr.mxu0 0.0
        %2438 = vmatpush1.xpose.msra.mxu0 0.0
        %2439 = vmatprep.subr.mxu0 0.0
        %2440 = vmatpush1.xpose.msra.mxu0 0.0
        %2441 = vmatprep.subr.mxu0 0.0
        %2442 = vmatpush1.xpose.msra.mxu0 0.0
        %2443 = vmatprep.subr.mxu0 0.0
        %2444 = vmatpush1.xpose.msra.mxu0 0.0
        %2445 = vmatprep.subr.mxu0 0.0
        %2446 = vmatpush1.xpose.msra.mxu0 0.0
        %2447 = vmatprep.subr.mxu0 0.0
        %2448 = vmatpush1.xpose.msra.mxu0 0.0
        %2449 = vmatprep.subr.mxu0 0.0
        %2450 = vmatpush1.xpose.msra.mxu0 0.0
        %2451 = vmatprep.subr.mxu0 0.0
        %2452 = vmatpush1.xpose.msra.mxu0 0.0
        %2453 = vmatprep.subr.mxu0 0.0
        %2454 = vmatpush1.xpose.msra.mxu0 0.0
        %2455 = vmatprep.subr.mxu0 0.0
        %2456 = vmatpush1.xpose.msra.mxu0 0.0
        %2457 = vmatprep.subr.mxu0 0.0
        %2458 = vmatpush1.xpose.msra.mxu0 0.0
        %2459 = vmatprep.subr.mxu0 0.0
        %2460 = vmatpush1.xpose.msra.mxu0 0.0
        %2461 = vmatprep.subr.mxu0 0.0
        %2462 = vmatpush1.xpose.msra.mxu0 0.0
        %2463 = vmatprep.subr.mxu0 0.0
        %2464 = vmatpush1.xpose.msra.mxu0 0.0
        %2465 = vmatprep.subr.mxu0 0.0
        %2466 = vmatpush1.xpose.msra.mxu0 0.0
        %2467 = vmatprep.subr.mxu0 0.0
        %2468 = vmatpush1.xpose.msra.mxu0 0.0
        %2469 = vmatprep.subr.mxu0 0.0
        %2470 = vmatpush1.xpose.msra.mxu0 0.0
        %2471 = vmatprep.subr.mxu0 0.0
        %2472 = vmatpush1.xpose.msra.mxu0 0.0
        %2473 = vmatprep.subr.mxu0 0.0
        %2474 = vmatpush1.xpose.msra.mxu0 0.0
        %2475 = vmatprep.subr.mxu0 0.0
        %2476 = vmatpush1.xpose.msra.mxu0 0.0
        %2477 = vmatprep.subr.mxu0 0.0
        %2478 = vmatpush1.xpose.msra.mxu0 0.0
        %2479 = vmatprep.subr.mxu0 0.0
        %2480 = vmatpush1.xpose.msra.mxu0 0.0
        %2481 = vmatprep.subr.mxu0 0.0
        %2482 = vmatpush1.xpose.msra.mxu0 0.0
        %2483 = vmatprep.subr.mxu0 0.0
        %2484 = vmatpush1.xpose.msra.mxu0 0.0
        %2485 = vmatprep.mubr.f32.mxu0 0.0
        %2486 = vmatmul.mubr.f32.gmra.mrb[0].mxu0 %v2416
        %v2487 = vpop.f32.mrb[0].mxu0
        %v2488 = vadd.f32 %v2408, %v2487
        %v2489 = vpop.f32.mrb[0].mxu0
        %2490 = vdwg.mxu0
        %v2491 = vsel %vm678, %v2388, 0
        %v2494 = vsel %vm678, %v2401, 0
        %2496 = vmatprep.subr.mxu0 0.0
        %2497 = vmatpush1.xpose.msra.mxu0 %v2494
        %2498 = vmatprep.subr.mxu0 0.0
        %2499 = vmatpush1.xpose.msra.mxu0 0.0
        %2500 = vmatprep.subr.mxu0 0.0
        %2501 = vmatpush1.xpose.msra.mxu0 0.0
        %2502 = vmatprep.subr.mxu0 0.0
        %2503 = vmatpush1.xpose.msra.mxu0 0.0
        %2504 = vmatprep.subr.mxu0 0.0
        %2505 = vmatpush1.xpose.msra.mxu0 0.0
        %2506 = vmatprep.subr.mxu0 0.0
        %2507 = vmatpush1.xpose.msra.mxu0 0.0
        %2508 = vmatprep.subr.mxu0 0.0
        %2509 = vmatpush1.xpose.msra.mxu0 0.0
        %2510 = vmatprep.subr.mxu0 0.0
        %2511 = vmatpush1.xpose.msra.mxu0 0.0
        %2512 = vmatprep.subr.mxu0 0.0
        %2513 = vmatpush1.xpose.msra.mxu0 0.0
        %2514 = vmatprep.subr.mxu0 0.0
        %2515 = vmatpush1.xpose.msra.mxu0 0.0
        %2516 = vmatprep.subr.mxu0 0.0
        %2517 = vmatpush1.xpose.msra.mxu0 0.0
        %2518 = vmatprep.subr.mxu0 0.0
        %2519 = vmatpush1.xpose.msra.mxu0 0.0
        %2520 = vmatprep.subr.mxu0 0.0
        %2521 = vmatpush1.xpose.msra.mxu0 0.0
        %2522 = vmatprep.subr.mxu0 0.0
        %2523 = vmatpush1.xpose.msra.mxu0 0.0
        %2524 = vmatprep.subr.mxu0 0.0
        %2525 = vmatpush1.xpose.msra.mxu0 0.0
        %2526 = vmatprep.subr.mxu0 0.0
        %2527 = vmatpush1.xpose.msra.mxu0 0.0
        %2528 = vmatprep.subr.mxu0 0.0
        %2529 = vmatpush1.xpose.msra.mxu0 0.0
        %2530 = vmatprep.subr.mxu0 0.0
        %2531 = vmatpush1.xpose.msra.mxu0 0.0
        %2532 = vmatprep.subr.mxu0 0.0
        %2533 = vmatpush1.xpose.msra.mxu0 0.0
        %2534 = vmatprep.subr.mxu0 0.0
        %2535 = vmatpush1.xpose.msra.mxu0 0.0
        %2536 = vmatprep.subr.mxu0 0.0
        %2537 = vmatpush1.xpose.msra.mxu0 0.0
        %2538 = vmatprep.subr.mxu0 0.0
        %2539 = vmatpush1.xpose.msra.mxu0 0.0
        %2540 = vmatprep.subr.mxu0 0.0
        %2541 = vmatpush1.xpose.msra.mxu0 0.0
        %2542 = vmatprep.subr.mxu0 0.0
        %2543 = vmatpush1.xpose.msra.mxu0 0.0
        %2544 = vmatprep.subr.mxu0 0.0
        %2545 = vmatpush1.xpose.msra.mxu0 0.0
        %2546 = vmatprep.subr.mxu0 0.0
        %2547 = vmatpush1.xpose.msra.mxu0 0.0
        %2548 = vmatprep.subr.mxu0 0.0
        %2549 = vmatpush1.xpose.msra.mxu0 0.0
        %2550 = vmatprep.subr.mxu0 0.0
        %2551 = vmatpush1.xpose.msra.mxu0 0.0
        %2552 = vmatprep.subr.mxu0 0.0
        %2553 = vmatpush1.xpose.msra.mxu0 0.0
        %2554 = vmatprep.subr.mxu0 0.0
        %2555 = vmatpush1.xpose.msra.mxu0 0.0
        %2556 = vmatprep.subr.mxu0 0.0
        %2557 = vmatpush1.xpose.msra.mxu0 0.0
        %2558 = vmatprep.subr.mxu0 0.0
        %2559 = vmatpush1.xpose.msra.mxu0 0.0
        %2560 = vmatprep.mubr.f32.mxu0 0.0
        %2561 = vmatmul.mubr.f32.gmra.mrb[0].mxu0 %v2491
        %v2562 = vpop.f32.mrb[0].mxu0
        %v2563 = vadd.f32 %v2409, %v2562
        %v2564 = vpop.f32.mrb[0].mxu0
        %2565 = vdwg.mxu0
        %v2566 = vsel %vm678, %v2396, 0
        %v2569 = vsel %vm678, %v2402, 0
        %2571 = vmatprep.subr.mxu0 0.0
        %2572 = vmatpush1.xpose.msra.mxu0 %v2569
        %2573 = vmatprep.subr.mxu0 0.0
        %2574 = vmatpush1.xpose.msra.mxu0 0.0
        %2575 = vmatprep.subr.mxu0 0.0
        %2576 = vmatpush1.xpose.msra.mxu0 0.0
        %2577 = vmatprep.subr.mxu0 0.0
        %2578 = vmatpush1.xpose.msra.mxu0 0.0
        %2579 = vmatprep.subr.mxu0 0.0
        %2580 = vmatpush1.xpose.msra.mxu0 0.0
        %2581 = vmatprep.subr.mxu0 0.0
        %2582 = vmatpush1.xpose.msra.mxu0 0.0
        %2583 = vmatprep.subr.mxu0 0.0
        %2584 = vmatpush1.xpose.msra.mxu0 0.0
        %2585 = vmatprep.subr.mxu0 0.0
        %2586 = vmatpush1.xpose.msra.mxu0 0.0
        %2587 = vmatprep.subr.mxu0 0.0
        %2588 = vmatpush1.xpose.msra.mxu0 0.0
        %2589 = vmatprep.subr.mxu0 0.0
        %2590 = vmatpush1.xpose.msra.mxu0 0.0
        %2591 = vmatprep.subr.mxu0 0.0
        %2592 = vmatpush1.xpose.msra.mxu0 0.0
        %2593 = vmatprep.subr.mxu0 0.0
        %2594 = vmatpush1.xpose.msra.mxu0 0.0
        %2595 = vmatprep.subr.mxu0 0.0
        %2596 = vmatpush1.xpose.msra.mxu0 0.0
        %2597 = vmatprep.subr.mxu0 0.0
        %2598 = vmatpush1.xpose.msra.mxu0 0.0
        %2599 = vmatprep.subr.mxu0 0.0
        %2600 = vmatpush1.xpose.msra.mxu0 0.0
        %2601 = vmatprep.subr.mxu0 0.0
        %2602 = vmatpush1.xpose.msra.mxu0 0.0
        %2603 = vmatprep.subr.mxu0 0.0
        %2604 = vmatpush1.xpose.msra.mxu0 0.0
        %2605 = vmatprep.subr.mxu0 0.0
        %2606 = vmatpush1.xpose.msra.mxu0 0.0
        %2607 = vmatprep.subr.mxu0 0.0
        %2608 = vmatpush1.xpose.msra.mxu0 0.0
        %2609 = vmatprep.subr.mxu0 0.0
        %2610 = vmatpush1.xpose.msra.mxu0 0.0
        %2611 = vmatprep.subr.mxu0 0.0
        %2612 = vmatpush1.xpose.msra.mxu0 0.0
        %2613 = vmatprep.subr.mxu0 0.0
        %2614 = vmatpush1.xpose.msra.mxu0 0.0
        %2615 = vmatprep.subr.mxu0 0.0
        %2616 = vmatpush1.xpose.msra.mxu0 0.0
        %2617 = vmatprep.subr.mxu0 0.0
        %2618 = vmatpush1.xpose.msra.mxu0 0.0
        %2619 = vmatprep.subr.mxu0 0.0
        %2620 = vmatpush1.xpose.msra.mxu0 0.0
        %2621 = vmatprep.subr.mxu0 0.0
        %2622 = vmatpush1.xpose.msra.mxu0 0.0
        %2623 = vmatprep.subr.mxu0 0.0
        %2624 = vmatpush1.xpose.msra.mxu0 0.0
        %2625 = vmatprep.subr.mxu0 0.0
        %2626 = vmatpush1.xpose.msra.mxu0 0.0
        %2627 = vmatprep.subr.mxu0 0.0
        %2628 = vmatpush1.xpose.msra.mxu0 0.0
        %2629 = vmatprep.subr.mxu0 0.0
        %2630 = vmatpush1.xpose.msra.mxu0 0.0
        %2631 = vmatprep.subr.mxu0 0.0
        %2632 = vmatpush1.xpose.msra.mxu0 0.0
        %2633 = vmatprep.subr.mxu0 0.0
        %2634 = vmatpush1.xpose.msra.mxu0 0.0
        %2635 = vmatprep.mubr.f32.mxu0 0.0
        %2636 = vmatmul.mubr.f32.gmra.mrb[0].mxu0 %v2566
        %v2637 = vpop.f32.mrb[0].mxu0
        %v2638 = vadd.f32 %v2410, %v2637
        %v2639 = vpop.f32.mrb[0].mxu0
        %2640 = vdwg.mxu0
        %v2641 = vsel %vm678, %v2398, 0
        %v2644 = vsel %vm678, %v2403, 0
        %2646 = vmatprep.subr.mxu0 0.0
        %2647 = vmatpush1.xpose.msra.mxu0 %v2644
        %2648 = vmatprep.subr.mxu0 0.0
        %2649 = vmatpush1.xpose.msra.mxu0 0.0
        %2650 = vmatprep.subr.mxu0 0.0
        %2651 = vmatpush1.xpose.msra.mxu0 0.0
        %2652 = vmatprep.subr.mxu0 0.0
        %2653 = vmatpush1.xpose.msra.mxu0 0.0
        %2654 = vmatprep.subr.mxu0 0.0
        %2655 = vmatpush1.xpose.msra.mxu0 0.0
        %2656 = vmatprep.subr.mxu0 0.0
        %2657 = vmatpush1.xpose.msra.mxu0 0.0
        %2658 = vmatprep.subr.mxu0 0.0
        %2659 = vmatpush1.xpose.msra.mxu0 0.0
        %2660 = vmatprep.subr.mxu0 0.0
        %2661 = vmatpush1.xpose.msra.mxu0 0.0
        %2662 = vmatprep.subr.mxu0 0.0
        %2663 = vmatpush1.xpose.msra.mxu0 0.0
        %2664 = vmatprep.subr.mxu0 0.0
        %2665 = vmatpush1.xpose.msra.mxu0 0.0
        %2666 = vmatprep.subr.mxu0 0.0
        %2667 = vmatpush1.xpose.msra.mxu0 0.0
        %2668 = vmatprep.subr.mxu0 0.0
        %2669 = vmatpush1.xpose.msra.mxu0 0.0
        %2670 = vmatprep.subr.mxu0 0.0
        %2671 = vmatpush1.xpose.msra.mxu0 0.0
        %2672 = vmatprep.subr.mxu0 0.0
        %2673 = vmatpush1.xpose.msra.mxu0 0.0
        %2674 = vmatprep.subr.mxu0 0.0
        %2675 = vmatpush1.xpose.msra.mxu0 0.0
        %2676 = vmatprep.subr.mxu0 0.0
        %2677 = vmatpush1.xpose.msra.mxu0 0.0
        %2678 = vmatprep.subr.mxu0 0.0
        %2679 = vmatpush1.xpose.msra.mxu0 0.0
        %2680 = vmatprep.subr.mxu0 0.0
        %2681 = vmatpush1.xpose.msra.mxu0 0.0
        %2682 = vmatprep.subr.mxu0 0.0
        %2683 = vmatpush1.xpose.msra.mxu0 0.0
        %2684 = vmatprep.subr.mxu0 0.0
        %2685 = vmatpush1.xpose.msra.mxu0 0.0
        %2686 = vmatprep.subr.mxu0 0.0
        %2687 = vmatpush1.xpose.msra.mxu0 0.0
        %2688 = vmatprep.subr.mxu0 0.0
        %2689 = vmatpush1.xpose.msra.mxu0 0.0
        %2690 = vmatprep.subr.mxu0 0.0
        %2691 = vmatpush1.xpose.msra.mxu0 0.0
        %2692 = vmatprep.subr.mxu0 0.0
        %2693 = vmatpush1.xpose.msra.mxu0 0.0
        %2694 = vmatprep.subr.mxu0 0.0
        %2695 = vmatpush1.xpose.msra.mxu0 0.0
        %2696 = vmatprep.subr.mxu0 0.0
        %2697 = vmatpush1.xpose.msra.mxu0 0.0
        %2698 = vmatprep.subr.mxu0 0.0
        %2699 = vmatpush1.xpose.msra.mxu0 0.0
        %2700 = vmatprep.subr.mxu0 0.0
        %2701 = vmatpush1.xpose.msra.mxu0 0.0
        %2702 = vmatprep.subr.mxu0 0.0
        %2703 = vmatpush1.xpose.msra.mxu0 0.0
        %2704 = vmatprep.subr.mxu0 0.0
        %2705 = vmatpush1.xpose.msra.mxu0 0.0
        %2706 = vmatprep.subr.mxu0 0.0
        %2707 = vmatpush1.xpose.msra.mxu0 0.0
        %2708 = vmatprep.subr.mxu0 0.0
        %2709 = vmatpush1.xpose.msra.mxu0 0.0
        %2710 = vmatprep.mubr.f32.mxu0 0.0
        %2711 = vmatmul.mubr.f32.gmra.mrb[0].mxu0 %v2641
        %v2712 = vpop.f32.mrb[0].mxu0
        %v2713 = vadd.f32 %v2411, %v2712
        %v2714 = vpop.f32.mrb[0].mxu0
        %2715 = vdwg.mxu0
        %v2716 = vsel %vm678, %v2381, 0
        %v2719 = vsel %vm678, %v2404, 0
        %2721 = vmatprep.subr.mxu0 0.0
        %2722 = vmatpush1.xpose.msra.mxu0 %v2719
        %2723 = vmatprep.subr.mxu0 0.0
        %2724 = vmatpush1.xpose.msra.mxu0 0.0
        %2725 = vmatprep.subr.mxu0 0.0
        %2726 = vmatpush1.xpose.msra.mxu0 0.0
        %2727 = vmatprep.subr.mxu0 0.0
        %2728 = vmatpush1.xpose.msra.mxu0 0.0
        %2729 = vmatprep.subr.mxu0 0.0
        %2730 = vmatpush1.xpose.msra.mxu0 0.0
        %2731 = vmatprep.subr.mxu0 0.0
        %2732 = vmatpush1.xpose.msra.mxu0 0.0
        %2733 = vmatprep.subr.mxu0 0.0
        %2734 = vmatpush1.xpose.msra.mxu0 0.0
        %2735 = vmatprep.subr.mxu0 0.0
        %2736 = vmatpush1.xpose.msra.mxu0 0.0
        %2737 = vmatprep.subr.mxu0 0.0
        %2738 = vmatpush1.xpose.msra.mxu0 0.0
        %2739 = vmatprep.subr.mxu0 0.0
        %2740 = vmatpush1.xpose.msra.mxu0 0.0
        %2741 = vmatprep.subr.mxu0 0.0
        %2742 = vmatpush1.xpose.msra.mxu0 0.0
        %2743 = vmatprep.subr.mxu0 0.0
        %2744 = vmatpush1.xpose.msra.mxu0 0.0
        %2745 = vmatprep.subr.mxu0 0.0
        %2746 = vmatpush1.xpose.msra.mxu0 0.0
        %2747 = vmatprep.subr.mxu0 0.0
        %2748 = vmatpush1.xpose.msra.mxu0 0.0
        %2749 = vmatprep.subr.mxu0 0.0
        %2750 = vmatpush1.xpose.msra.mxu0 0.0
        %2751 = vmatprep.subr.mxu0 0.0
        %2752 = vmatpush1.xpose.msra.mxu0 0.0
        %2753 = vmatprep.subr.mxu0 0.0
        %2754 = vmatpush1.xpose.msra.mxu0 0.0
        %2755 = vmatprep.subr.mxu0 0.0
        %2756 = vmatpush1.xpose.msra.mxu0 0.0
        %2757 = vmatprep.subr.mxu0 0.0
        %2758 = vmatpush1.xpose.msra.mxu0 0.0
        %2759 = vmatprep.subr.mxu0 0.0
        %2760 = vmatpush1.xpose.msra.mxu0 0.0
        %2761 = vmatprep.subr.mxu0 0.0
        %2762 = vmatpush1.xpose.msra.mxu0 0.0
        %2763 = vmatprep.subr.mxu0 0.0
        %2764 = vmatpush1.xpose.msra.mxu0 0.0
        %2765 = vmatprep.subr.mxu0 0.0
        %2766 = vmatpush1.xpose.msra.mxu0 0.0
        %2767 = vmatprep.subr.mxu0 0.0
        %2768 = vmatpush1.xpose.msra.mxu0 0.0
        %2769 = vmatprep.subr.mxu0 0.0
        %2770 = vmatpush1.xpose.msra.mxu0 0.0
        %2771 = vmatprep.subr.mxu0 0.0
        %2772 = vmatpush1.xpose.msra.mxu0 0.0
        %2773 = vmatprep.subr.mxu0 0.0
        %2774 = vmatpush1.xpose.msra.mxu0 0.0
        %2775 = vmatprep.subr.mxu0 0.0
        %2776 = vmatpush1.xpose.msra.mxu0 0.0
        %2777 = vmatprep.subr.mxu0 0.0
        %2778 = vmatpush1.xpose.msra.mxu0 0.0
        %2779 = vmatprep.subr.mxu0 0.0
        %2780 = vmatpush1.xpose.msra.mxu0 0.0
        %2781 = vmatprep.subr.mxu0 0.0
        %2782 = vmatpush1.xpose.msra.mxu0 0.0
        %2783 = vmatprep.subr.mxu0 0.0
        %2784 = vmatpush1.xpose.msra.mxu0 0.0
        %2785 = vmatprep.mubr.f32.mxu0 0.0
        %2786 = vmatmul.mubr.f32.gmra.mrb[0].mxu0 %v2716
        %v2787 = vpop.f32.mrb[0].mxu0
        %v2788 = vadd.f32 %v2412, %v2787
        %v2789 = vpop.f32.mrb[0].mxu0
        %2790 = vdwg.mxu0
        %v2791 = vsel %vm678, %v2395, 0
        %v2794 = vsel %vm678, %v2405, 0
        %2796 = vmatprep.subr.mxu0 0.0
        %2797 = vmatpush1.xpose.msra.mxu0 %v2794
        %2798 = vmatprep.subr.mxu0 0.0
        %2799 = vmatpush1.xpose.msra.mxu0 0.0
        %2800 = vmatprep.subr.mxu0 0.0
        %2801 = vmatpush1.xpose.msra.mxu0 0.0
        %2802 = vmatprep.subr.mxu0 0.0
        %2803 = vmatpush1.xpose.msra.mxu0 0.0
        %2804 = vmatprep.subr.mxu0 0.0
        %2805 = vmatpush1.xpose.msra.mxu0 0.0
        %2806 = vmatprep.subr.mxu0 0.0
        %2807 = vmatpush1.xpose.msra.mxu0 0.0
        %2808 = vmatprep.subr.mxu0 0.0
        %2809 = vmatpush1.xpose.msra.mxu0 0.0
        %2810 = vmatprep.subr.mxu0 0.0
        %2811 = vmatpush1.xpose.msra.mxu0 0.0
        %2812 = vmatprep.subr.mxu0 0.0
        %2813 = vmatpush1.xpose.msra.mxu0 0.0
        %2814 = vmatprep.subr.mxu0 0.0
        %2815 = vmatpush1.xpose.msra.mxu0 0.0
        %2816 = vmatprep.subr.mxu0 0.0
        %2817 = vmatpush1.xpose.msra.mxu0 0.0
        %2818 = vmatprep.subr.mxu0 0.0
        %2819 = vmatpush1.xpose.msra.mxu0 0.0
        %2820 = vmatprep.subr.mxu0 0.0
        %2821 = vmatpush1.xpose.msra.mxu0 0.0
        %2822 = vmatprep.subr.mxu0 0.0
        %2823 = vmatpush1.xpose.msra.mxu0 0.0
        %2824 = vmatprep.subr.mxu0 0.0
        %2825 = vmatpush1.xpose.msra.mxu0 0.0
        %2826 = vmatprep.subr.mxu0 0.0
        %2827 = vmatpush1.xpose.msra.mxu0 0.0
        %2828 = vmatprep.subr.mxu0 0.0
        %2829 = vmatpush1.xpose.msra.mxu0 0.0
        %2830 = vmatprep.subr.mxu0 0.0
        %2831 = vmatpush1.xpose.msra.mxu0 0.0
        %2832 = vmatprep.subr.mxu0 0.0
        %2833 = vmatpush1.xpose.msra.mxu0 0.0
        %2834 = vmatprep.subr.mxu0 0.0
        %2835 = vmatpush1.xpose.msra.mxu0 0.0
        %2836 = vmatprep.subr.mxu0 0.0
        %2837 = vmatpush1.xpose.msra.mxu0 0.0
        %2838 = vmatprep.subr.mxu0 0.0
        %2839 = vmatpush1.xpose.msra.mxu0 0.0
        %2840 = vmatprep.subr.mxu0 0.0
        %2841 = vmatpush1.xpose.msra.mxu0 0.0
        %2842 = vmatprep.subr.mxu0 0.0
        %2843 = vmatpush1.xpose.msra.mxu0 0.0
        %2844 = vmatprep.subr.mxu0 0.0
        %2845 = vmatpush1.xpose.msra.mxu0 0.0
        %2846 = vmatprep.subr.mxu0 0.0
        %2847 = vmatpush1.xpose.msra.mxu0 0.0
        %2848 = vmatprep.subr.mxu0 0.0
        %2849 = vmatpush1.xpose.msra.mxu0 0.0
        %2850 = vmatprep.subr.mxu0 0.0
        %2851 = vmatpush1.xpose.msra.mxu0 0.0
        %2852 = vmatprep.subr.mxu0 0.0
        %2853 = vmatpush1.xpose.msra.mxu0 0.0
        %2854 = vmatprep.subr.mxu0 0.0
        %2855 = vmatpush1.xpose.msra.mxu0 0.0
        %2856 = vmatprep.subr.mxu0 0.0
        %2857 = vmatpush1.xpose.msra.mxu0 0.0
        %2858 = vmatprep.subr.mxu0 0.0
        %2859 = vmatpush1.xpose.msra.mxu0 0.0
        %2860 = vmatprep.mubr.f32.mxu0 0.0
        %2861 = vmatmul.mubr.f32.gmra.mrb[0].mxu0 %v2791
        %v2862 = vpop.f32.mrb[0].mxu0
        %v2863 = vadd.f32 %v2413, %v2862
        %v2864 = vpop.f32.mrb[0].mxu0
        %2865 = vdwg.mxu0
        %v2866 = vsel %vm678, %v2397, 0
        %v2869 = vsel %vm678, %v2406, 0
        %2871 = vmatprep.subr.mxu0 0.0
        %2872 = vmatpush1.xpose.msra.mxu0 %v2869
        %2873 = vmatprep.subr.mxu0 0.0
        %2874 = vmatpush1.xpose.msra.mxu0 0.0
        %2875 = vmatprep.subr.mxu0 0.0
        %2876 = vmatpush1.xpose.msra.mxu0 0.0
        %2877 = vmatprep.subr.mxu0 0.0
        %2878 = vmatpush1.xpose.msra.mxu0 0.0
        %2879 = vmatprep.subr.mxu0 0.0
        %2880 = vmatpush1.xpose.msra.mxu0 0.0
        %2881 = vmatprep.subr.mxu0 0.0
        %2882 = vmatpush1.xpose.msra.mxu0 0.0
        %2883 = vmatprep.subr.mxu0 0.0
        %2884 = vmatpush1.xpose.msra.mxu0 0.0
        %2885 = vmatprep.subr.mxu0 0.0
        %2886 = vmatpush1.xpose.msra.mxu0 0.0
        %2887 = vmatprep.subr.mxu0 0.0
        %2888 = vmatpush1.xpose.msra.mxu0 0.0
        %2889 = vmatprep.subr.mxu0 0.0
        %2890 = vmatpush1.xpose.msra.mxu0 0.0
        %2891 = vmatprep.subr.mxu0 0.0
        %2892 = vmatpush1.xpose.msra.mxu0 0.0
        %2893 = vmatprep.subr.mxu0 0.0
        %2894 = vmatpush1.xpose.msra.mxu0 0.0
        %2895 = vmatprep.subr.mxu0 0.0
        %2896 = vmatpush1.xpose.msra.mxu0 0.0
        %2897 = vmatprep.subr.mxu0 0.0
        %2898 = vmatpush1.xpose.msra.mxu0 0.0
        %2899 = vmatprep.subr.mxu0 0.0
        %2900 = vmatpush1.xpose.msra.mxu0 0.0
        %2901 = vmatprep.subr.mxu0 0.0
        %2902 = vmatpush1.xpose.msra.mxu0 0.0
        %2903 = vmatprep.subr.mxu0 0.0
        %2904 = vmatpush1.xpose.msra.mxu0 0.0
        %2905 = vmatprep.subr.mxu0 0.0
        %2906 = vmatpush1.xpose.msra.mxu0 0.0
        %2907 = vmatprep.subr.mxu0 0.0
        %2908 = vmatpush1.xpose.msra.mxu0 0.0
        %2909 = vmatprep.subr.mxu0 0.0
        %2910 = vmatpush1.xpose.msra.mxu0 0.0
        %2911 = vmatprep.subr.mxu0 0.0
        %2912 = vmatpush1.xpose.msra.mxu0 0.0
        %2913 = vmatprep.subr.mxu0 0.0
        %2914 = vmatpush1.xpose.msra.mxu0 0.0
        %2915 = vmatprep.subr.mxu0 0.0
        %2916 = vmatpush1.xpose.msra.mxu0 0.0
        %2917 = vmatprep.subr.mxu0 0.0
        %2918 = vmatpush1.xpose.msra.mxu0 0.0
        %2919 = vmatprep.subr.mxu0 0.0
        %2920 = vmatpush1.xpose.msra.mxu0 0.0
        %2921 = vmatprep.subr.mxu0 0.0
        %2922 = vmatpush1.xpose.msra.mxu0 0.0
        %2923 = vmatprep.subr.mxu0 0.0
        %2924 = vmatpush1.xpose.msra.mxu0 0.0
        %2925 = vmatprep.subr.mxu0 0.0
        %2926 = vmatpush1.xpose.msra.mxu0 0.0
        %2927 = vmatprep.subr.mxu0 0.0
        %2928 = vmatpush1.xpose.msra.mxu0 0.0
        %2929 = vmatprep.subr.mxu0 0.0
        %2930 = vmatpush1.xpose.msra.mxu0 0.0
        %2931 = vmatprep.subr.mxu0 0.0
        %2932 = vmatpush1.xpose.msra.mxu0 0.0
        %2933 = vmatprep.subr.mxu0 0.0
        %2934 = vmatpush1.xpose.msra.mxu0 0.0
        %2935 = vmatprep.mubr.f32.mxu0 0.0
        %2936 = vmatmul.mubr.f32.gmra.mrb[0].mxu0 %v2866
        %v2937 = vpop.f32.mrb[0].mxu0
        %v2938 = vadd.f32 %v2414, %v2937
        %v2939 = vpop.f32.mrb[0].mxu0
        %2940 = vdwg.mxu0
        %v2941 = vsel %vm678, %v2399, 0
        %v2944 = vsel %vm678, %v2407, 0
        %2946 = vmatprep.subr.mxu0 0.0
        %2947 = vmatpush1.xpose.msra.mxu0 %v2944
        %2948 = vmatprep.subr.mxu0 0.0
        %2949 = vmatpush1.xpose.msra.mxu0 0.0
        %2950 = vmatprep.subr.mxu0 0.0
        %2951 = vmatpush1.xpose.msra.mxu0 0.0
        %2952 = vmatprep.subr.mxu0 0.0
        %2953 = vmatpush1.xpose.msra.mxu0 0.0
        %2954 = vmatprep.subr.mxu0 0.0
        %2955 = vmatpush1.xpose.msra.mxu0 0.0
        %2956 = vmatprep.subr.mxu0 0.0
        %2957 = vmatpush1.xpose.msra.mxu0 0.0
        %2958 = vmatprep.subr.mxu0 0.0
        %2959 = vmatpush1.xpose.msra.mxu0 0.0
        %2960 = vmatprep.subr.mxu0 0.0
        %2961 = vmatpush1.xpose.msra.mxu0 0.0
        %2962 = vmatprep.subr.mxu0 0.0
        %2963 = vmatpush1.xpose.msra.mxu0 0.0
        %2964 = vmatprep.subr.mxu0 0.0
        %2965 = vmatpush1.xpose.msra.mxu0 0.0
        %2966 = vmatprep.subr.mxu0 0.0
        %2967 = vmatpush1.xpose.msra.mxu0 0.0
        %2968 = vmatprep.subr.mxu0 0.0
        %2969 = vmatpush1.xpose.msra.mxu0 0.0
        %2970 = vmatprep.subr.mxu0 0.0
        %2971 = vmatpush1.xpose.msra.mxu0 0.0
        %2972 = vmatprep.subr.mxu0 0.0
        %2973 = vmatpush1.xpose.msra.mxu0 0.0
        %2974 = vmatprep.subr.mxu0 0.0
        %2975 = vmatpush1.xpose.msra.mxu0 0.0
        %2976 = vmatprep.subr.mxu0 0.0
        %2977 = vmatpush1.xpose.msra.mxu0 0.0
        %2978 = vmatprep.subr.mxu0 0.0
        %2979 = vmatpush1.xpose.msra.mxu0 0.0
        %2980 = vmatprep.subr.mxu0 0.0
        %2981 = vmatpush1.xpose.msra.mxu0 0.0
        %2982 = vmatprep.subr.mxu0 0.0
        %2983 = vmatpush1.xpose.msra.mxu0 0.0
        %2984 = vmatprep.subr.mxu0 0.0
        %2985 = vmatpush1.xpose.msra.mxu0 0.0
        %2986 = vmatprep.subr.mxu0 0.0
        %2987 = vmatpush1.xpose.msra.mxu0 0.0
        %2988 = vmatprep.subr.mxu0 0.0
        %2989 = vmatpush1.xpose.msra.mxu0 0.0
        %2990 = vmatprep.subr.mxu0 0.0
        %2991 = vmatpush1.xpose.msra.mxu0 0.0
        %2992 = vmatprep.subr.mxu0 0.0
        %2993 = vmatpush1.xpose.msra.mxu0 0.0
        %2994 = vmatprep.subr.mxu0 0.0
        %2995 = vmatpush1.xpose.msra.mxu0 0.0
        %2996 = vmatprep.subr.mxu0 0.0
        %2997 = vmatpush1.xpose.msra.mxu0 0.0
        %2998 = vmatprep.subr.mxu0 0.0
        %2999 = vmatpush1.xpose.msra.mxu0 0.0
        %3000 = vmatprep.subr.mxu0 0.0
        %3001 = vmatpush1.xpose.msra.mxu0 0.0
        %3002 = vmatprep.subr.mxu0 0.0
        %3003 = vmatpush1.xpose.msra.mxu0 0.0
        %3004 = vmatprep.subr.mxu0 0.0
        %3005 = vmatpush1.xpose.msra.mxu0 0.0
        %3006 = vmatprep.subr.mxu0 0.0
        %3007 = vmatpush1.xpose.msra.mxu0 0.0
        %3008 = vmatprep.subr.mxu0 0.0
        %3009 = vmatpush1.xpose.msra.mxu0 0.0
        %3010 = vmatprep.mubr.f32.mxu0 0.0
        %3011 = vmatmul.mubr.f32.gmra.mrb[0].mxu0 %v2941
        %v3012 = vpop.f32.mrb[0].mxu0
        %v3013 = vadd.f32 %v2415, %v3012
        %v3014 = vpop.f32.mrb[0].mxu0
        %3015 = vdwg.mxu0
        %vm3016 = vcmask 57344
        %v3017 = vsel %vm3016, %v2488, -inf
        %3018 = vmax.xlane.f32.xlu0 %v3017
        %v3019 = vpop.xlane.xlu0 %3018
        %v3020 = vsel %vm3016, %v2563, -inf
        %3021 = vmax.xlane.f32.xlu0 %v3020
        %v3022 = vpop.xlane.xlu0 %3021
        %v3023 = vsel %vm3016, %v2638, -inf
        %3024 = vmax.xlane.f32.xlu0 %v3023
        %v3025 = vpop.xlane.xlu0 %3024
        %v3026 = vsel %vm3016, %v2713, -inf
        %3027 = vmax.xlane.f32.xlu0 %v3026
        %v3028 = vpop.xlane.xlu0 %3027
        %v3029 = vsel %vm3016, %v2788, -inf
        %3030 = vmax.xlane.f32.xlu0 %v3029
        %v3031 = vpop.xlane.xlu0 %3030
        %v3032 = vsel %vm3016, %v2863, -inf
        %3033 = vmax.xlane.f32.xlu0 %v3032
        %v3034 = vpop.xlane.xlu0 %3033
        %v3035 = vsel %vm3016, %v2938, -inf
        %3036 = vmax.xlane.f32.xlu0 %v3035
        %v3037 = vpop.xlane.xlu0 %3036
        %v3038 = vsel %vm3016, %v3013, -inf
        %3039 = vmax.xlane.f32.xlu0 %v3038
        %v3040 = vpop.xlane.xlu0 %3039
        %v3041 = vsub.f32 %v2488, %v3019
        %v3042 = vsub.f32 %v2563, %v3022
        %v3043 = vsub.f32 %v2638, %v3025
        %v3044 = vsub.f32 %v2713, %v3028
        %v3045 = vsub.f32 %v2788, %v3031
        %v3046 = vsub.f32 %v2863, %v3034
        %v3047 = vsub.f32 %v2938, %v3037
        %v3048 = vsub.f32 %v3013, %v3040
        %v3049 = vmul.f32 %v3041, 1.442695
        %v3050 = vpow.pop %v3049
        %v3051 = vmul.f32 %v3042, 1.442695
        %v3052 = vpow.pop %v3051
        %v3053 = vmul.f32 %v3043, 1.442695
        %v3054 = vpow.pop %v3053
        %v3055 = vmul.f32 %v3044, 1.442695
        %v3056 = vpow.pop %v3055
        %v3057 = vmul.f32 %v3045, 1.442695
        %v3058 = vpow.pop %v3057
        %v3059 = vmul.f32 %v3046, 1.442695
        %v3060 = vpow.pop %v3059
        %v3061 = vmul.f32 %v3047, 1.442695
        %v3062 = vpow.pop %v3061
        %v3063 = vmul.f32 %v3048, 1.442695
        %v3064 = vpow.pop %v3063
        %v3065 = vsel %vm3016, %v3050, 0.0
        %3066 = vadd.xlane.f32.xlu0 %v3065
        %v3067 = vpop.xlane.xlu0 %3066
        %v3068 = vsel %vm3016, %v3052, 0.0
        %3069 = vadd.xlane.f32.xlu0 %v3068
        %v3070 = vpop.xlane.xlu0 %3069
        %v3071 = vsel %vm3016, %v3054, 0.0
        %3072 = vadd.xlane.f32.xlu0 %v3071
        %v3073 = vpop.xlane.xlu0 %3072
        %v3074 = vsel %vm3016, %v3056, 0.0
        %3075 = vadd.xlane.f32.xlu0 %v3074
        %v3076 = vpop.xlane.xlu0 %3075
        %v3077 = vsel %vm3016, %v3058, 0.0
        %3078 = vadd.xlane.f32.xlu0 %v3077
        %v3079 = vpop.xlane.xlu0 %3078
        %v3080 = vsel %vm3016, %v3060, 0.0
        %3081 = vadd.xlane.f32.xlu0 %v3080
        %v3082 = vpop.xlane.xlu0 %3081
        %v3083 = vsel %vm3016, %v3062, 0.0
        %3084 = vadd.xlane.f32.xlu0 %v3083
        %v3085 = vpop.xlane.xlu0 %3084
        %v3086 = vsel %vm3016, %v3064, 0.0
        %3087 = vadd.xlane.f32.xlu0 %v3086
        %v3088 = vpop.xlane.xlu0 %3087
        %v3089 = vrcp.pop %v3067
        %v3090 = vmul.f32 %v3050, %v3089
        %v3091 = vrcp.pop %v3070
        %v3092 = vmul.f32 %v3052, %v3091
        %v3093 = vrcp.pop %v3073
        %v3094 = vmul.f32 %v3054, %v3093
        %v3095 = vrcp.pop %v3076
        %v3096 = vmul.f32 %v3056, %v3095
        %v3097 = vrcp.pop %v3079
        %v3098 = vmul.f32 %v3058, %v3097
        %v3099 = vrcp.pop %v3082
        %v3100 = vmul.f32 %v3060, %v3099
        %v3101 = vrcp.pop %v3085
        %v3102 = vmul.f32 %v3062, %v3101
        %v3103 = vrcp.pop %v3088
        %v3104 = vmul.f32 %v3064, %v3103
        %v3105 = vld [vmem:[#allocation8] sm:$0xff]
        %v3106 = vld [vmem:[#allocation8 + $0x8] sm:$0xff]
        %v3107 = vld [vmem:[#allocation8 + $0x10] sm:$0xff]
        %v3108 = vld [vmem:[#allocation8 + $0x18] sm:$0xff]
        %v3109 = vld [vmem:[#allocation8 + $0x20] sm:$0xff]
        %v3110 = vld [vmem:[#allocation8 + $0x28] sm:$0xff]
        %v3111 = vld [vmem:[#allocation8 + $0x30] sm:$0xff]
        %v3112 = vld [vmem:[#allocation8 + $0x38] sm:$0xff]
        %vm3113 = vcmask 64512
        %v3115 = vsel %vm3113, %v3090, 0
        %3117 = vmatprep.subr.mxu0 0.0
        %3118 = vmatpush1.msra.mxu0 %v3105
        %3119 = vmatprep.subr.mxu0 0.0
        %3120 = vmatpush1.msra.mxu0 0.0
        %3121 = vmatprep.subr.mxu0 0.0
        %3122 = vmatpush1.msra.mxu0 0.0
        %3123 = vmatprep.subr.mxu0 0.0
        %3124 = vmatpush1.msra.mxu0 0.0
        %3125 = vmatprep.subr.mxu0 0.0
        %3126 = vmatpush1.msra.mxu0 0.0
        %3127 = vmatprep.subr.mxu0 0.0
        %3128 = vmatpush1.msra.mxu0 0.0
        %3129 = vmatprep.subr.mxu0 0.0
        %3130 = vmatpush1.msra.mxu0 0.0
        %3131 = vmatprep.subr.mxu0 0.0
        %3132 = vmatpush1.msra.mxu0 0.0
        %3133 = vmatprep.subr.mxu0 0.0
        %3134 = vmatpush1.msra.mxu0 0.0
        %3135 = vmatprep.subr.mxu0 0.0
        %3136 = vmatpush1.msra.mxu0 0.0
        %3137 = vmatprep.subr.mxu0 0.0
        %3138 = vmatpush1.msra.mxu0 0.0
        %3139 = vmatprep.subr.mxu0 0.0
        %3140 = vmatpush1.msra.mxu0 0.0
        %3141 = vmatprep.subr.mxu0 0.0
        %3142 = vmatpush1.msra.mxu0 0.0
        %3143 = vmatprep.subr.mxu0 0.0
        %3144 = vmatpush1.msra.mxu0 0.0
        %3145 = vmatprep.subr.mxu0 0.0
        %3146 = vmatpush1.msra.mxu0 0.0
        %3147 = vmatprep.subr.mxu0 0.0
        %3148 = vmatpush1.msra.mxu0 0.0
        %3149 = vmatprep.subr.mxu0 0.0
        %3150 = vmatpush1.msra.mxu0 0.0
        %3151 = vmatprep.subr.mxu0 0.0
        %3152 = vmatpush1.msra.mxu0 0.0
        %3153 = vmatprep.subr.mxu0 0.0
        %3154 = vmatpush1.msra.mxu0 0.0
        %3155 = vmatprep.subr.mxu0 0.0
        %3156 = vmatpush1.msra.mxu0 0.0
        %3157 = vmatprep.subr.mxu0 0.0
        %3158 = vmatpush1.msra.mxu0 0.0
        %3159 = vmatprep.subr.mxu0 0.0
        %3160 = vmatpush1.msra.mxu0 0.0
        %3161 = vmatprep.subr.mxu0 0.0
        %3162 = vmatpush1.msra.mxu0 0.0
        %3163 = vmatprep.subr.mxu0 0.0
        %3164 = vmatpush1.msra.mxu0 0.0
        %3165 = vmatprep.subr.mxu0 0.0
        %3166 = vmatpush1.msra.mxu0 0.0
        %3167 = vmatprep.subr.mxu0 0.0
        %3168 = vmatpush1.msra.mxu0 0.0
        %3169 = vmatprep.subr.mxu0 0.0
        %3170 = vmatpush1.msra.mxu0 0.0
        %3171 = vmatprep.subr.mxu0 0.0
        %3172 = vmatpush1.msra.mxu0 0.0
        %3173 = vmatprep.subr.mxu0 0.0
        %3174 = vmatpush1.msra.mxu0 0.0
        %3175 = vmatprep.subr.mxu0 0.0
        %3176 = vmatpush1.msra.mxu0 0.0
        %3177 = vmatprep.subr.mxu0 0.0
        %3178 = vmatpush1.msra.mxu0 0.0
        %3179 = vmatprep.subr.mxu0 0.0
        %3180 = vmatpush1.msra.mxu0 0.0
        %3181 = vmatprep.mubr.f32.mxu0 0.0
        %3182 = vmatmul.mubr.f32.gmra.mrb[0].mxu0 %v3115
        %v3183 = vpop.f32.mrb[0].mxu0
        %v3184 = vadd.f32 0.0, %v3183
        %v3185 = vpop.f32.mrb[0].mxu0
        %3186 = vdwg.mxu0
        %v3188 = vsel %vm3113, %v3092, 0
        %3190 = vmatprep.subr.mxu0 0.0
        %3191 = vmatpush1.msra.mxu0 %v3106
        %3192 = vmatprep.subr.mxu0 0.0
        %3193 = vmatpush1.msra.mxu0 0.0
        %3194 = vmatprep.subr.mxu0 0.0
        %3195 = vmatpush1.msra.mxu0 0.0
        %3196 = vmatprep.subr.mxu0 0.0
        %3197 = vmatpush1.msra.mxu0 0.0
        %3198 = vmatprep.subr.mxu0 0.0
        %3199 = vmatpush1.msra.mxu0 0.0
        %3200 = vmatprep.subr.mxu0 0.0
        %3201 = vmatpush1.msra.mxu0 0.0
        %3202 = vmatprep.subr.mxu0 0.0
        %3203 = vmatpush1.msra.mxu0 0.0
        %3204 = vmatprep.subr.mxu0 0.0
        %3205 = vmatpush1.msra.mxu0 0.0
        %3206 = vmatprep.subr.mxu0 0.0
        %3207 = vmatpush1.msra.mxu0 0.0
        %3208 = vmatprep.subr.mxu0 0.0
        %3209 = vmatpush1.msra.mxu0 0.0
        %3210 = vmatprep.subr.mxu0 0.0
        %3211 = vmatpush1.msra.mxu0 0.0
        %3212 = vmatprep.subr.mxu0 0.0
        %3213 = vmatpush1.msra.mxu0 0.0
        %3214 = vmatprep.subr.mxu0 0.0
        %3215 = vmatpush1.msra.mxu0 0.0
        %3216 = vmatprep.subr.mxu0 0.0
        %3217 = vmatpush1.msra.mxu0 0.0
        %3218 = vmatprep.subr.mxu0 0.0
        %3219 = vmatpush1.msra.mxu0 0.0
        %3220 = vmatprep.subr.mxu0 0.0
        %3221 = vmatpush1.msra.mxu0 0.0
        %3222 = vmatprep.subr.mxu0 0.0
        %3223 = vmatpush1.msra.mxu0 0.0
        %3224 = vmatprep.subr.mxu0 0.0
        %3225 = vmatpush1.msra.mxu0 0.0
        %3226 = vmatprep.subr.mxu0 0.0
        %3227 = vmatpush1.msra.mxu0 0.0
        %3228 = vmatprep.subr.mxu0 0.0
        %3229 = vmatpush1.msra.mxu0 0.0
        %3230 = vmatprep.subr.mxu0 0.0
        %3231 = vmatpush1.msra.mxu0 0.0
        %3232 = vmatprep.subr.mxu0 0.0
        %3233 = vmatpush1.msra.mxu0 0.0
        %3234 = vmatprep.subr.mxu0 0.0
        %3235 = vmatpush1.msra.mxu0 0.0
        %3236 = vmatprep.subr.mxu0 0.0
        %3237 = vmatpush1.msra.mxu0 0.0
        %3238 = vmatprep.subr.mxu0 0.0
        %3239 = vmatpush1.msra.mxu0 0.0
        %3240 = vmatprep.subr.mxu0 0.0
        %3241 = vmatpush1.msra.mxu0 0.0
        %3242 = vmatprep.subr.mxu0 0.0
        %3243 = vmatpush1.msra.mxu0 0.0
        %3244 = vmatprep.subr.mxu0 0.0
        %3245 = vmatpush1.msra.mxu0 0.0
        %3246 = vmatprep.subr.mxu0 0.0
        %3247 = vmatpush1.msra.mxu0 0.0
        %3248 = vmatprep.subr.mxu0 0.0
        %3249 = vmatpush1.msra.mxu0 0.0
        %3250 = vmatprep.subr.mxu0 0.0
        %3251 = vmatpush1.msra.mxu0 0.0
        %3252 = vmatprep.subr.mxu0 0.0
        %3253 = vmatpush1.msra.mxu0 0.0
        %3254 = vmatprep.mubr.f32.mxu0 0.0
        %3255 = vmatmul.mubr.f32.gmra.mrb[0].mxu0 %v3188
        %v3256 = vpop.f32.mrb[0].mxu0
        %v3257 = vadd.f32 0.0, %v3256
        %v3258 = vpop.f32.mrb[0].mxu0
        %3259 = vdwg.mxu0
        %v3261 = vsel %vm3113, %v3094, 0
        %3263 = vmatprep.subr.mxu0 0.0
        %3264 = vmatpush1.msra.mxu0 %v3107
        %3265 = vmatprep.subr.mxu0 0.0
        %3266 = vmatpush1.msra.mxu0 0.0
        %3267 = vmatprep.subr.mxu0 0.0
        %3268 = vmatpush1.msra.mxu0 0.0
        %3269 = vmatprep.subr.mxu0 0.0
        %3270 = vmatpush1.msra.mxu0 0.0
        %3271 = vmatprep.subr.mxu0 0.0
        %3272 = vmatpush1.msra.mxu0 0.0
        %3273 = vmatprep.subr.mxu0 0.0
        %3274 = vmatpush1.msra.mxu0 0.0
        %3275 = vmatprep.subr.mxu0 0.0
        %3276 = vmatpush1.msra.mxu0 0.0
        %3277 = vmatprep.subr.mxu0 0.0
        %3278 = vmatpush1.msra.mxu0 0.0
        %3279 = vmatprep.subr.mxu0 0.0
        %3280 = vmatpush1.msra.mxu0 0.0
        %3281 = vmatprep.subr.mxu0 0.0
        %3282 = vmatpush1.msra.mxu0 0.0
        %3283 = vmatprep.subr.mxu0 0.0
        %3284 = vmatpush1.msra.mxu0 0.0
        %3285 = vmatprep.subr.mxu0 0.0
        %3286 = vmatpush1.msra.mxu0 0.0
        %3287 = vmatprep.subr.mxu0 0.0
        %3288 = vmatpush1.msra.mxu0 0.0
        %3289 = vmatprep.subr.mxu0 0.0
        %3290 = vmatpush1.msra.mxu0 0.0
        %3291 = vmatprep.subr.mxu0 0.0
        %3292 = vmatpush1.msra.mxu0 0.0
        %3293 = vmatprep.subr.mxu0 0.0
        %3294 = vmatpush1.msra.mxu0 0.0
        %3295 = vmatprep.subr.mxu0 0.0
        %3296 = vmatpush1.msra.mxu0 0.0
        %3297 = vmatprep.subr.mxu0 0.0
        %3298 = vmatpush1.msra.mxu0 0.0
        %3299 = vmatprep.subr.mxu0 0.0
        %3300 = vmatpush1.msra.mxu0 0.0
        %3301 = vmatprep.subr.mxu0 0.0
        %3302 = vmatpush1.msra.mxu0 0.0
        %3303 = vmatprep.subr.mxu0 0.0
        %3304 = vmatpush1.msra.mxu0 0.0
        %3305 = vmatprep.subr.mxu0 0.0
        %3306 = vmatpush1.msra.mxu0 0.0
        %3307 = vmatprep.subr.mxu0 0.0
        %3308 = vmatpush1.msra.mxu0 0.0
        %3309 = vmatprep.subr.mxu0 0.0
        %3310 = vmatpush1.msra.mxu0 0.0
        %3311 = vmatprep.subr.mxu0 0.0
        %3312 = vmatpush1.msra.mxu0 0.0
        %3313 = vmatprep.subr.mxu0 0.0
        %3314 = vmatpush1.msra.mxu0 0.0
        %3315 = vmatprep.subr.mxu0 0.0
        %3316 = vmatpush1.msra.mxu0 0.0
        %3317 = vmatprep.subr.mxu0 0.0
        %3318 = vmatpush1.msra.mxu0 0.0
        %3319 = vmatprep.subr.mxu0 0.0
        %3320 = vmatpush1.msra.mxu0 0.0
        %3321 = vmatprep.subr.mxu0 0.0
        %3322 = vmatpush1.msra.mxu0 0.0
        %3323 = vmatprep.subr.mxu0 0.0
        %3324 = vmatpush1.msra.mxu0 0.0
        %3325 = vmatprep.subr.mxu0 0.0
        %3326 = vmatpush1.msra.mxu0 0.0
        %3327 = vmatprep.mubr.f32.mxu0 0.0
        %3328 = vmatmul.mubr.f32.gmra.mrb[0].mxu0 %v3261
        %v3329 = vpop.f32.mrb[0].mxu0
        %v3330 = vadd.f32 0.0, %v3329
        %v3331 = vpop.f32.mrb[0].mxu0
        %3332 = vdwg.mxu0
        %v3334 = vsel %vm3113, %v3096, 0
        %3336 = vmatprep.subr.mxu0 0.0
        %3337 = vmatpush1.msra.mxu0 %v3108
        %3338 = vmatprep.subr.mxu0 0.0
        %3339 = vmatpush1.msra.mxu0 0.0
        %3340 = vmatprep.subr.mxu0 0.0
        %3341 = vmatpush1.msra.mxu0 0.0
        %3342 = vmatprep.subr.mxu0 0.0
        %3343 = vmatpush1.msra.mxu0 0.0
        %3344 = vmatprep.subr.mxu0 0.0
        %3345 = vmatpush1.msra.mxu0 0.0
        %3346 = vmatprep.subr.mxu0 0.0
        %3347 = vmatpush1.msra.mxu0 0.0
        %3348 = vmatprep.subr.mxu0 0.0
        %3349 = vmatpush1.msra.mxu0 0.0
        %3350 = vmatprep.subr.mxu0 0.0
        %3351 = vmatpush1.msra.mxu0 0.0
        %3352 = vmatprep.subr.mxu0 0.0
        %3353 = vmatpush1.msra.mxu0 0.0
        %3354 = vmatprep.subr.mxu0 0.0
        %3355 = vmatpush1.msra.mxu0 0.0
        %3356 = vmatprep.subr.mxu0 0.0
        %3357 = vmatpush1.msra.mxu0 0.0
        %3358 = vmatprep.subr.mxu0 0.0
        %3359 = vmatpush1.msra.mxu0 0.0
        %3360 = vmatprep.subr.mxu0 0.0
        %3361 = vmatpush1.msra.mxu0 0.0
        %3362 = vmatprep.subr.mxu0 0.0
        %3363 = vmatpush1.msra.mxu0 0.0
        %3364 = vmatprep.subr.mxu0 0.0
        %3365 = vmatpush1.msra.mxu0 0.0
        %3366 = vmatprep.subr.mxu0 0.0
        %3367 = vmatpush1.msra.mxu0 0.0
        %3368 = vmatprep.subr.mxu0 0.0
        %3369 = vmatpush1.msra.mxu0 0.0
        %3370 = vmatprep.subr.mxu0 0.0
        %3371 = vmatpush1.msra.mxu0 0.0
        %3372 = vmatprep.subr.mxu0 0.0
        %3373 = vmatpush1.msra.mxu0 0.0
        %3374 = vmatprep.subr.mxu0 0.0
        %3375 = vmatpush1.msra.mxu0 0.0
        %3376 = vmatprep.subr.mxu0 0.0
        %3377 = vmatpush1.msra.mxu0 0.0
        %3378 = vmatprep.subr.mxu0 0.0
        %3379 = vmatpush1.msra.mxu0 0.0
        %3380 = vmatprep.subr.mxu0 0.0
        %3381 = vmatpush1.msra.mxu0 0.0
        %3382 = vmatprep.subr.mxu0 0.0
        %3383 = vmatpush1.msra.mxu0 0.0
        %3384 = vmatprep.subr.mxu0 0.0
        %3385 = vmatpush1.msra.mxu0 0.0
        %3386 = vmatprep.subr.mxu0 0.0
        %3387 = vmatpush1.msra.mxu0 0.0
        %3388 = vmatprep.subr.mxu0 0.0
        %3389 = vmatpush1.msra.mxu0 0.0
        %3390 = vmatprep.subr.mxu0 0.0
        %3391 = vmatpush1.msra.mxu0 0.0
        %3392 = vmatprep.subr.mxu0 0.0
        %3393 = vmatpush1.msra.mxu0 0.0
        %3394 = vmatprep.subr.mxu0 0.0
        %3395 = vmatpush1.msra.mxu0 0.0
        %3396 = vmatprep.subr.mxu0 0.0
        %3397 = vmatpush1.msra.mxu0 0.0
        %3398 = vmatprep.subr.mxu0 0.0
        %3399 = vmatpush1.msra.mxu0 0.0
        %3400 = vmatprep.mubr.f32.mxu0 0.0
        %3401 = vmatmul.mubr.f32.gmra.mrb[0].mxu0 %v3334
        %v3402 = vpop.f32.mrb[0].mxu0
        %v3403 = vadd.f32 0.0, %v3402
        %v3404 = vpop.f32.mrb[0].mxu0
        %3405 = vdwg.mxu0
        %v3407 = vsel %vm3113, %v3098, 0
        %3409 = vmatprep.subr.mxu0 0.0
        %3410 = vmatpush1.msra.mxu0 %v3109
        %3411 = vmatprep.subr.mxu0 0.0
        %3412 = vmatpush1.msra.mxu0 0.0
        %3413 = vmatprep.subr.mxu0 0.0
        %3414 = vmatpush1.msra.mxu0 0.0
        %3415 = vmatprep.subr.mxu0 0.0
        %3416 = vmatpush1.msra.mxu0 0.0
        %3417 = vmatprep.subr.mxu0 0.0
        %3418 = vmatpush1.msra.mxu0 0.0
        %3419 = vmatprep.subr.mxu0 0.0
        %3420 = vmatpush1.msra.mxu0 0.0
        %3421 = vmatprep.subr.mxu0 0.0
        %3422 = vmatpush1.msra.mxu0 0.0
        %3423 = vmatprep.subr.mxu0 0.0
        %3424 = vmatpush1.msra.mxu0 0.0
        %3425 = vmatprep.subr.mxu0 0.0
        %3426 = vmatpush1.msra.mxu0 0.0
        %3427 = vmatprep.subr.mxu0 0.0
        %3428 = vmatpush1.msra.mxu0 0.0
        %3429 = vmatprep.subr.mxu0 0.0
        %3430 = vmatpush1.msra.mxu0 0.0
        %3431 = vmatprep.subr.mxu0 0.0
        %3432 = vmatpush1.msra.mxu0 0.0
        %3433 = vmatprep.subr.mxu0 0.0
        %3434 = vmatpush1.msra.mxu0 0.0
        %3435 = vmatprep.subr.mxu0 0.0
        %3436 = vmatpush1.msra.mxu0 0.0
        %3437 = vmatprep.subr.mxu0 0.0
        %3438 = vmatpush1.msra.mxu0 0.0
        %3439 = vmatprep.subr.mxu0 0.0
        %3440 = vmatpush1.msra.mxu0 0.0
        %3441 = vmatprep.subr.mxu0 0.0
        %3442 = vmatpush1.msra.mxu0 0.0
        %3443 = vmatprep.subr.mxu0 0.0
        %3444 = vmatpush1.msra.mxu0 0.0
        %3445 = vmatprep.subr.mxu0 0.0
        %3446 = vmatpush1.msra.mxu0 0.0
        %3447 = vmatprep.subr.mxu0 0.0
        %3448 = vmatpush1.msra.mxu0 0.0
        %3449 = vmatprep.subr.mxu0 0.0
        %3450 = vmatpush1.msra.mxu0 0.0
        %3451 = vmatprep.subr.mxu0 0.0
        %3452 = vmatpush1.msra.mxu0 0.0
        %3453 = vmatprep.subr.mxu0 0.0
        %3454 = vmatpush1.msra.mxu0 0.0
        %3455 = vmatprep.subr.mxu0 0.0
        %3456 = vmatpush1.msra.mxu0 0.0
        %3457 = vmatprep.subr.mxu0 0.0
        %3458 = vmatpush1.msra.mxu0 0.0
        %3459 = vmatprep.subr.mxu0 0.0
        %3460 = vmatpush1.msra.mxu0 0.0
        %3461 = vmatprep.subr.mxu0 0.0
        %3462 = vmatpush1.msra.mxu0 0.0
        %3463 = vmatprep.subr.mxu0 0.0
        %3464 = vmatpush1.msra.mxu0 0.0
        %3465 = vmatprep.subr.mxu0 0.0
        %3466 = vmatpush1.msra.mxu0 0.0
        %3467 = vmatprep.subr.mxu0 0.0
        %3468 = vmatpush1.msra.mxu0 0.0
        %3469 = vmatprep.subr.mxu0 0.0
        %3470 = vmatpush1.msra.mxu0 0.0
        %3471 = vmatprep.subr.mxu0 0.0
        %3472 = vmatpush1.msra.mxu0 0.0
        %3473 = vmatprep.mubr.f32.mxu0 0.0
        %3474 = vmatmul.mubr.f32.gmra.mrb[0].mxu0 %v3407
        %v3475 = vpop.f32.mrb[0].mxu0
        %v3476 = vadd.f32 0.0, %v3475
        %v3477 = vpop.f32.mrb[0].mxu0
        %3478 = vdwg.mxu0
        %v3480 = vsel %vm3113, %v3100, 0
        %3482 = vmatprep.subr.mxu0 0.0
        %3483 = vmatpush1.msra.mxu0 %v3110
        %3484 = vmatprep.subr.mxu0 0.0
        %3485 = vmatpush1.msra.mxu0 0.0
        %3486 = vmatprep.subr.mxu0 0.0
        %3487 = vmatpush1.msra.mxu0 0.0
        %3488 = vmatprep.subr.mxu0 0.0
        %3489 = vmatpush1.msra.mxu0 0.0
        %3490 = vmatprep.subr.mxu0 0.0
        %3491 = vmatpush1.msra.mxu0 0.0
        %3492 = vmatprep.subr.mxu0 0.0
        %3493 = vmatpush1.msra.mxu0 0.0
        %3494 = vmatprep.subr.mxu0 0.0
        %3495 = vmatpush1.msra.mxu0 0.0
        %3496 = vmatprep.subr.mxu0 0.0
        %3497 = vmatpush1.msra.mxu0 0.0
        %3498 = vmatprep.subr.mxu0 0.0
        %3499 = vmatpush1.msra.mxu0 0.0
        %3500 = vmatprep.subr.mxu0 0.0
        %3501 = vmatpush1.msra.mxu0 0.0
        %3502 = vmatprep.subr.mxu0 0.0
        %3503 = vmatpush1.msra.mxu0 0.0
        %3504 = vmatprep.subr.mxu0 0.0
        %3505 = vmatpush1.msra.mxu0 0.0
        %3506 = vmatprep.subr.mxu0 0.0
        %3507 = vmatpush1.msra.mxu0 0.0
        %3508 = vmatprep.subr.mxu0 0.0
        %3509 = vmatpush1.msra.mxu0 0.0
        %3510 = vmatprep.subr.mxu0 0.0
        %3511 = vmatpush1.msra.mxu0 0.0
        %3512 = vmatprep.subr.mxu0 0.0
        %3513 = vmatpush1.msra.mxu0 0.0
        %3514 = vmatprep.subr.mxu0 0.0
        %3515 = vmatpush1.msra.mxu0 0.0
        %3516 = vmatprep.subr.mxu0 0.0
        %3517 = vmatpush1.msra.mxu0 0.0
        %3518 = vmatprep.subr.mxu0 0.0
        %3519 = vmatpush1.msra.mxu0 0.0
        %3520 = vmatprep.subr.mxu0 0.0
        %3521 = vmatpush1.msra.mxu0 0.0
        %3522 = vmatprep.subr.mxu0 0.0
        %3523 = vmatpush1.msra.mxu0 0.0
        %3524 = vmatprep.subr.mxu0 0.0
        %3525 = vmatpush1.msra.mxu0 0.0
        %3526 = vmatprep.subr.mxu0 0.0
        %3527 = vmatpush1.msra.mxu0 0.0
        %3528 = vmatprep.subr.mxu0 0.0
        %3529 = vmatpush1.msra.mxu0 0.0
        %3530 = vmatprep.subr.mxu0 0.0
        %3531 = vmatpush1.msra.mxu0 0.0
        %3532 = vmatprep.subr.mxu0 0.0
        %3533 = vmatpush1.msra.mxu0 0.0
        %3534 = vmatprep.subr.mxu0 0.0
        %3535 = vmatpush1.msra.mxu0 0.0
        %3536 = vmatprep.subr.mxu0 0.0
        %3537 = vmatpush1.msra.mxu0 0.0
        %3538 = vmatprep.subr.mxu0 0.0
        %3539 = vmatpush1.msra.mxu0 0.0
        %3540 = vmatprep.subr.mxu0 0.0
        %3541 = vmatpush1.msra.mxu0 0.0
        %3542 = vmatprep.subr.mxu0 0.0
        %3543 = vmatpush1.msra.mxu0 0.0
        %3544 = vmatprep.subr.mxu0 0.0
        %3545 = vmatpush1.msra.mxu0 0.0
        %3546 = vmatprep.mubr.f32.mxu0 0.0
        %3547 = vmatmul.mubr.f32.gmra.mrb[0].mxu0 %v3480
        %v3548 = vpop.f32.mrb[0].mxu0
        %v3549 = vadd.f32 0.0, %v3548
        %v3550 = vpop.f32.mrb[0].mxu0
        %3551 = vdwg.mxu0
        %v3553 = vsel %vm3113, %v3102, 0
        %3555 = vmatprep.subr.mxu0 0.0
        %3556 = vmatpush1.msra.mxu0 %v3111
        %3557 = vmatprep.subr.mxu0 0.0
        %3558 = vmatpush1.msra.mxu0 0.0
        %3559 = vmatprep.subr.mxu0 0.0
        %3560 = vmatpush1.msra.mxu0 0.0
        %3561 = vmatprep.subr.mxu0 0.0
        %3562 = vmatpush1.msra.mxu0 0.0
        %3563 = vmatprep.subr.mxu0 0.0
        %3564 = vmatpush1.msra.mxu0 0.0
        %3565 = vmatprep.subr.mxu0 0.0
        %3566 = vmatpush1.msra.mxu0 0.0
        %3567 = vmatprep.subr.mxu0 0.0
        %3568 = vmatpush1.msra.mxu0 0.0
        %3569 = vmatprep.subr.mxu0 0.0
        %3570 = vmatpush1.msra.mxu0 0.0
        %3571 = vmatprep.subr.mxu0 0.0
        %3572 = vmatpush1.msra.mxu0 0.0
        %3573 = vmatprep.subr.mxu0 0.0
        %3574 = vmatpush1.msra.mxu0 0.0
        %3575 = vmatprep.subr.mxu0 0.0
        %3576 = vmatpush1.msra.mxu0 0.0
        %3577 = vmatprep.subr.mxu0 0.0
        %3578 = vmatpush1.msra.mxu0 0.0
        %3579 = vmatprep.subr.mxu0 0.0
        %3580 = vmatpush1.msra.mxu0 0.0
        %3581 = vmatprep.subr.mxu0 0.0
        %3582 = vmatpush1.msra.mxu0 0.0
        %3583 = vmatprep.subr.mxu0 0.0
        %3584 = vmatpush1.msra.mxu0 0.0
        %3585 = vmatprep.subr.mxu0 0.0
        %3586 = vmatpush1.msra.mxu0 0.0
        %3587 = vmatprep.subr.mxu0 0.0
        %3588 = vmatpush1.msra.mxu0 0.0
        %3589 = vmatprep.subr.mxu0 0.0
        %3590 = vmatpush1.msra.mxu0 0.0
        %3591 = vmatprep.subr.mxu0 0.0
        %3592 = vmatpush1.msra.mxu0 0.0
        %3593 = vmatprep.subr.mxu0 0.0
        %3594 = vmatpush1.msra.mxu0 0.0
        %3595 = vmatprep.subr.mxu0 0.0
        %3596 = vmatpush1.msra.mxu0 0.0
        %3597 = vmatprep.subr.mxu0 0.0
        %3598 = vmatpush1.msra.mxu0 0.0
        %3599 = vmatprep.subr.mxu0 0.0
        %3600 = vmatpush1.msra.mxu0 0.0
        %3601 = vmatprep.subr.mxu0 0.0
        %3602 = vmatpush1.msra.mxu0 0.0
        %3603 = vmatprep.subr.mxu0 0.0
        %3604 = vmatpush1.msra.mxu0 0.0
        %3605 = vmatprep.subr.mxu0 0.0
        %3606 = vmatpush1.msra.mxu0 0.0
        %3607 = vmatprep.subr.mxu0 0.0
        %3608 = vmatpush1.msra.mxu0 0.0
        %3609 = vmatprep.subr.mxu0 0.0
        %3610 = vmatpush1.msra.mxu0 0.0
        %3611 = vmatprep.subr.mxu0 0.0
        %3612 = vmatpush1.msra.mxu0 0.0
        %3613 = vmatprep.subr.mxu0 0.0
        %3614 = vmatpush1.msra.mxu0 0.0
        %3615 = vmatprep.subr.mxu0 0.0
        %3616 = vmatpush1.msra.mxu0 0.0
        %3617 = vmatprep.subr.mxu0 0.0
        %3618 = vmatpush1.msra.mxu0 0.0
        %3619 = vmatprep.mubr.f32.mxu0 0.0
        %3620 = vmatmul.mubr.f32.gmra.mrb[0].mxu0 %v3553
        %v3621 = vpop.f32.mrb[0].mxu0
        %v3622 = vadd.f32 0.0, %v3621
        %v3623 = vpop.f32.mrb[0].mxu0
        %3624 = vdwg.mxu0
        %v3626 = vsel %vm3113, %v3104, 0
        %3628 = vmatprep.subr.mxu0 0.0
        %3629 = vmatpush1.msra.mxu0 %v3112
        %3630 = vmatprep.subr.mxu0 0.0
        %3631 = vmatpush1.msra.mxu0 0.0
        %3632 = vmatprep.subr.mxu0 0.0
        %3633 = vmatpush1.msra.mxu0 0.0
        %3634 = vmatprep.subr.mxu0 0.0
        %3635 = vmatpush1.msra.mxu0 0.0
        %3636 = vmatprep.subr.mxu0 0.0
        %3637 = vmatpush1.msra.mxu0 0.0
        %3638 = vmatprep.subr.mxu0 0.0
        %3639 = vmatpush1.msra.mxu0 0.0
        %3640 = vmatprep.subr.mxu0 0.0
        %3641 = vmatpush1.msra.mxu0 0.0
        %3642 = vmatprep.subr.mxu0 0.0
        %3643 = vmatpush1.msra.mxu0 0.0
        %3644 = vmatprep.subr.mxu0 0.0
        %3645 = vmatpush1.msra.mxu0 0.0
        %3646 = vmatprep.subr.mxu0 0.0
        %3647 = vmatpush1.msra.mxu0 0.0
        %3648 = vmatprep.subr.mxu0 0.0
        %3649 = vmatpush1.msra.mxu0 0.0
        %3650 = vmatprep.subr.mxu0 0.0
        %3651 = vmatpush1.msra.mxu0 0.0
        %3652 = vmatprep.subr.mxu0 0.0
        %3653 = vmatpush1.msra.mxu0 0.0
        %3654 = vmatprep.subr.mxu0 0.0
        %3655 = vmatpush1.msra.mxu0 0.0
        %3656 = vmatprep.subr.mxu0 0.0
        %3657 = vmatpush1.msra.mxu0 0.0
        %3658 = vmatprep.subr.mxu0 0.0
        %3659 = vmatpush1.msra.mxu0 0.0
        %3660 = vmatprep.subr.mxu0 0.0
        %3661 = vmatpush1.msra.mxu0 0.0
        %3662 = vmatprep.subr.mxu0 0.0
        %3663 = vmatpush1.msra.mxu0 0.0
        %3664 = vmatprep.subr.mxu0 0.0
        %3665 = vmatpush1.msra.mxu0 0.0
        %3666 = vmatprep.subr.mxu0 0.0
        %3667 = vmatpush1.msra.mxu0 0.0
        %3668 = vmatprep.subr.mxu0 0.0
        %3669 = vmatpush1.msra.mxu0 0.0
        %3670 = vmatprep.subr.mxu0 0.0
        %3671 = vmatpush1.msra.mxu0 0.0
        %3672 = vmatprep.subr.mxu0 0.0
        %3673 = vmatpush1.msra.mxu0 0.0
        %3674 = vmatprep.subr.mxu0 0.0
        %3675 = vmatpush1.msra.mxu0 0.0
        %3676 = vmatprep.subr.mxu0 0.0
        %3677 = vmatpush1.msra.mxu0 0.0
        %3678 = vmatprep.subr.mxu0 0.0
        %3679 = vmatpush1.msra.mxu0 0.0
        %3680 = vmatprep.subr.mxu0 0.0
        %3681 = vmatpush1.msra.mxu0 0.0
        %3682 = vmatprep.subr.mxu0 0.0
        %3683 = vmatpush1.msra.mxu0 0.0
        %3684 = vmatprep.subr.mxu0 0.0
        %3685 = vmatpush1.msra.mxu0 0.0
        %3686 = vmatprep.subr.mxu0 0.0
        %3687 = vmatpush1.msra.mxu0 0.0
        %3688 = vmatprep.subr.mxu0 0.0
        %3689 = vmatpush1.msra.mxu0 0.0
        %3690 = vmatprep.subr.mxu0 0.0
        %3691 = vmatpush1.msra.mxu0 0.0
        %3692 = vmatprep.mubr.f32.mxu0 0.0
        %3693 = vmatmul.mubr.f32.gmra.mrb[0].mxu0 %v3626
        %v3694 = vpop.f32.mrb[0].mxu0
        %v3695 = vadd.f32 0.0, %v3694
        %v3696 = vpop.f32.mrb[0].mxu0
        %3697 = vdwg.mxu0
        %v3698 = vld [vmem:[%s11] sm:$0xff]
        %v3699 = vld [vmem:[%s11 + $0x8] sm:$0xff]
        %v3700 = vld [vmem:[%s11 + $0x10] sm:$0xff]
        %v3701 = vld [vmem:[%s11 + $0x18] sm:$0xff]
        %v3702 = vld [vmem:[#allocation13] sm:$0xff]
        %v3703 = vld [vmem:[#allocation13 + $0x8] sm:$0xff]
        %v3704 = vld [vmem:[#allocation13 + $0x10] sm:$0xff]
        %v3705 = vld [vmem:[#allocation13 + $0x18] sm:$0xff]
        %v3714 = vrot.slane %v3257, 7
        %vm3715 = vcmask 1041409
        %v3716 = vsel %vm3715, %v3714, %v3184
        %v3717 = vrot.slane %v3330, 6
        %vm3718 = vcmask 1042434
        %v3719 = vsel %vm3718, %v3717, %v3716
        %v3720 = vrot.slane %v3403, 5
        %vm3721 = vcmask 1043459
        %v3722 = vsel %vm3721, %v3720, %v3719
        %v3723 = vrot.slane %v3476, 4
        %vm3724 = vcmask 1044484
        %v3725 = vsel %vm3724, %v3723, %v3722
        %v3726 = vrot.slane %v3549, 3
        %vm3727 = vcmask 1045509
        %v3728 = vsel %vm3727, %v3726, %v3725
        %v3729 = vrot.slane %v3622, 2
        %vm3730 = vcmask 1046534
        %v3731 = vsel %vm3730, %v3729, %v3728
        %v3732 = vrot.slane %v3695, 1
        %vm3733 = vcmask 1047559
        %v3734 = vsel %vm3733, %v3732, %v3731
        %v3735 = vsel %vm678, %v3734, 0
        %3737 = vmatprep.subr.mxu0 0.0
        %3738 = vmatpush1.msra.mxu0 %v3702
        %3739 = vmatprep.subr.mxu0 0.0
        %3740 = vmatpush1.msra.mxu0 %v3703
        %3741 = vmatprep.subr.mxu0 0.0
        %3742 = vmatpush1.msra.mxu0 %v3704
        %3743 = vmatprep.subr.mxu0 0.0
        %3744 = vmatpush1.msra.mxu0 %v3705
        %3745 = vmatprep.subr.mxu0 0.0
        %3746 = vmatpush1.msra.mxu0 0.0
        %3747 = vmatprep.subr.mxu0 0.0
        %3748 = vmatpush1.msra.mxu0 0.0
        %3749 = vmatprep.subr.mxu0 0.0
        %3750 = vmatpush1.msra.mxu0 0.0
        %3751 = vmatprep.subr.mxu0 0.0
        %3752 = vmatpush1.msra.mxu0 0.0
        %3753 = vmatprep.subr.mxu0 0.0
        %3754 = vmatpush1.msra.mxu0 0.0
        %3755 = vmatprep.subr.mxu0 0.0
        %3756 = vmatpush1.msra.mxu0 0.0
        %3757 = vmatprep.subr.mxu0 0.0
        %3758 = vmatpush1.msra.mxu0 0.0
        %3759 = vmatprep.subr.mxu0 0.0
        %3760 = vmatpush1.msra.mxu0 0.0
        %3761 = vmatprep.subr.mxu0 0.0
        %3762 = vmatpush1.msra.mxu0 0.0
        %3763 = vmatprep.subr.mxu0 0.0
        %3764 = vmatpush1.msra.mxu0 0.0
        %3765 = vmatprep.subr.mxu0 0.0
        %3766 = vmatpush1.msra.mxu0 0.0
        %3767 = vmatprep.subr.mxu0 0.0
        %3768 = vmatpush1.msra.mxu0 0.0
        %3769 = vmatprep.subr.mxu0 0.0
        %3770 = vmatpush1.msra.mxu0 0.0
        %3771 = vmatprep.subr.mxu0 0.0
        %3772 = vmatpush1.msra.mxu0 0.0
        %3773 = vmatprep.subr.mxu0 0.0
        %3774 = vmatpush1.msra.mxu0 0.0
        %3775 = vmatprep.subr.mxu0 0.0
        %3776 = vmatpush1.msra.mxu0 0.0
        %3777 = vmatprep.subr.mxu0 0.0
        %3778 = vmatpush1.msra.mxu0 0.0
        %3779 = vmatprep.subr.mxu0 0.0
        %3780 = vmatpush1.msra.mxu0 0.0
        %3781 = vmatprep.subr.mxu0 0.0
        %3782 = vmatpush1.msra.mxu0 0.0
        %3783 = vmatprep.subr.mxu0 0.0
        %3784 = vmatpush1.msra.mxu0 0.0
        %3785 = vmatprep.subr.mxu0 0.0
        %3786 = vmatpush1.msra.mxu0 0.0
        %3787 = vmatprep.subr.mxu0 0.0
        %3788 = vmatpush1.msra.mxu0 0.0
        %3789 = vmatprep.subr.mxu0 0.0
        %3790 = vmatpush1.msra.mxu0 0.0
        %3791 = vmatprep.subr.mxu0 0.0
        %3792 = vmatpush1.msra.mxu0 0.0
        %3793 = vmatprep.subr.mxu0 0.0
        %3794 = vmatpush1.msra.mxu0 0.0
        %3795 = vmatprep.subr.mxu0 0.0
        %3796 = vmatpush1.msra.mxu0 0.0
        %3797 = vmatprep.subr.mxu0 0.0
        %3798 = vmatpush1.msra.mxu0 0.0
        %3799 = vmatprep.subr.mxu0 0.0
        %3800 = vmatpush1.msra.mxu0 0.0
        %3801 = vmatprep.mubr.f32.mxu0 0.0
        %3802 = vmatmul.mubr.f32.gmra.mrb[0].mxu0 %v3735
        %v3803 = vpop.f32.mrb[0].mxu0
        %v3804 = vadd.f32 0.0, %v3803
        %v3805 = vpop.f32.mrb[0].mxu0
        %3806 = vdwg.mxu0
        %v3807 = vsel %vm678, %v2349, 0
        %3809 = vmatprep.subr.mxu0 0.0
        %3810 = vmatpush1.msra.mxu0 %v3698
        %3811 = vmatprep.subr.mxu0 0.0
        %3812 = vmatpush1.msra.mxu0 %v3699
        %3813 = vmatprep.subr.mxu0 0.0
        %3814 = vmatpush1.msra.mxu0 %v3700
        %3815 = vmatprep.subr.mxu0 0.0
        %3816 = vmatpush1.msra.mxu0 %v3701
        %3817 = vmatprep.subr.mxu0 0.0
        %3818 = vmatpush1.msra.mxu0 0.0
        %3819 = vmatprep.subr.mxu0 0.0
        %3820 = vmatpush1.msra.mxu0 0.0
        %3821 = vmatprep.subr.mxu0 0.0
        %3822 = vmatpush1.msra.mxu0 0.0
        %3823 = vmatprep.subr.mxu0 0.0
        %3824 = vmatpush1.msra.mxu0 0.0
        %3825 = vmatprep.subr.mxu0 0.0
        %3826 = vmatpush1.msra.mxu0 0.0
        %3827 = vmatprep.subr.mxu0 0.0
        %3828 = vmatpush1.msra.mxu0 0.0
        %3829 = vmatprep.subr.mxu0 0.0
        %3830 = vmatpush1.msra.mxu0 0.0
        %3831 = vmatprep.subr.mxu0 0.0
        %3832 = vmatpush1.msra.mxu0 0.0
        %3833 = vmatprep.subr.mxu0 0.0
        %3834 = vmatpush1.msra.mxu0 0.0
        %3835 = vmatprep.subr.mxu0 0.0
        %3836 = vmatpush1.msra.mxu0 0.0
        %3837 = vmatprep.subr.mxu0 0.0
        %3838 = vmatpush1.msra.mxu0 0.0
        %3839 = vmatprep.subr.mxu0 0.0
        %3840 = vmatpush1.msra.mxu0 0.0
        %3841 = vmatprep.subr.mxu0 0.0
        %3842 = vmatpush1.msra.mxu0 0.0
        %3843 = vmatprep.subr.mxu0 0.0
        %3844 = vmatpush1.msra.mxu0 0.0
        %3845 = vmatprep.subr.mxu0 0.0
        %3846 = vmatpush1.msra.mxu0 0.0
        %3847 = vmatprep.subr.mxu0 0.0
        %3848 = vmatpush1.msra.mxu0 0.0
        %3849 = vmatprep.subr.mxu0 0.0
        %3850 = vmatpush1.msra.mxu0 0.0
        %3851 = vmatprep.subr.mxu0 0.0
        %3852 = vmatpush1.msra.mxu0 0.0
        %3853 = vmatprep.subr.mxu0 0.0
        %3854 = vmatpush1.msra.mxu0 0.0
        %3855 = vmatprep.subr.mxu0 0.0
        %3856 = vmatpush1.msra.mxu0 0.0
        %3857 = vmatprep.subr.mxu0 0.0
        %3858 = vmatpush1.msra.mxu0 0.0
        %3859 = vmatprep.subr.mxu0 0.0
        %3860 = vmatpush1.msra.mxu0 0.0
        %3861 = vmatprep.subr.mxu0 0.0
        %3862 = vmatpush1.msra.mxu0 0.0
        %3863 = vmatprep.subr.mxu0 0.0
        %3864 = vmatpush1.msra.mxu0 0.0
        %3865 = vmatprep.subr.mxu0 0.0
        %3866 = vmatpush1.msra.mxu0 0.0
        %3867 = vmatprep.subr.mxu0 0.0
        %3868 = vmatpush1.msra.mxu0 0.0
        %3869 = vmatprep.subr.mxu0 0.0
        %3870 = vmatpush1.msra.mxu0 0.0
        %3871 = vmatprep.subr.mxu0 0.0
        %3872 = vmatpush1.msra.mxu0 0.0
        %3873 = vmatprep.mubr.f32.mxu0 0.0
        %3874 = vmatmul.mubr.f32.gmra.mrb[0].mxu0 %v3807
        %v3875 = vpop.f32.mrb[0].mxu0
        %v3876 = vadd.f32 %v3804, %v3875
        %v3877 = vpop.f32.mrb[0].mxu0
        %3878 = vdwg.mxu0
        %v3879 = vld [vmem:[%s13] sm:$0x1]
        %v3881 = vlaneseq
        %v3882 = vshrl.u32 %v3881, 7
        %v3883 = vsub.s32 0, %v3882
        %v3884 = vrot.slane %v3879, %v3883
        %v3886 = vadd.f32 %v3876, %v3884
        %3887 = vst [vmem:[%s537] sm:$0xff] %v3886
        %3888 = vst.msk [vmem:[%s540] sm:$0x1] %vm3016, %v3090
        %3889 = vst.msk [vmem:[#allocation2] sm:$0xff] %vm752, %v1668
        %3890 = vst.msk [vmem:[#allocation3] sm:$0xff] %vm752, %v1666
        %3891 = vst.msk [vmem:[#allocation4] sm:$0xff] %vm678, %v2349
        %3892 = vst.msk [vmem:[#allocation5] sm:$0xff] %vm678, %v2347
        %3894 = vst.msk [vmem:[#allocation6] sm:$0xff] %vm678, %v3734
        %3895 = vst [vmem:[#allocation7] sm:$0xff] %v3886
        %p3896 = scmp.lt.s32.totalorder %s30, 15
        %s3897 = scalar_select %p3896, %s30, 15
        %s3898 = smul.addr %s3897, 8
        %s3899 = scalar_lea.vmem %s14, %s3898
        %p3900 = scmp.lt.s32.totalorder %s30, 15
        %s3901 = scalar_select %p3900, %s30, 15
        %s3902 = scalar_lea.vmem %s15, %s3901
        // Predicated region
        $region97: #{decoder_forward.1} parent=75 // pred_check
          %p3903 = pneg %p342
        $region98: #{decoder_forward.1} parent=75 // pred_check_branch
          %3905 = sbr.rel (%p3903) target = $region100
        $region99: #{decoder_forward.1} parent=75 // pred_region
          _
        $region100: #{decoder_forward.1} parent=75 // pred_fallthru
          _
        // Predicated region
        $region101: #{decoder_forward.1} parent=75 // pred_check
          %p3906 = pneg %p368
        $region102: #{decoder_forward.1} parent=75 // pred_check_branch
          %3908 = sbr.rel (%p3906) target = $region104
        $region103: #{decoder_forward.1} parent=75 // pred_region
          _
        $region104: #{decoder_forward.1} parent=75 // pred_fallthru
          _
      $region76: #{decoder_forward.1} parent=5 // pred_fallthru
        _
      %p3909 = scmp.le.s32.totalorder 2, %s25
      // Predicated region
      $region105: #{decoder_forward.1} parent=5 // pred_check
        %p3910 = pneg %p3909
      $region106: #{decoder_forward.1} parent=5 // pred_check_branch
        %3912 = sbr.rel (%p3910) target = $region108
      $region107: #{decoder_forward.1} parent=5 // pred_region
        %s3913 = ssub.s32 %s25, 2
        // Predicated region
        $region109: #{decoder_forward.1} parent=107 // pred_check
          %p3914 = pneg %p348
        $region110: #{decoder_forward.1} parent=107 // pred_check_branch
          %3916 = sbr.rel (%p3914) target = $region112
        $region111: #{decoder_forward.1} parent=107 // pred_region
          %p3917 = scmp.lt.s32.totalorder %s31, 15
          %s3918 = scalar_select %p3917, %s31, 15
          %s3919 = smul.addr %s3918, 8
          %s3920 = scalar_lea.vmem %s14, %s3919
        $region112: #{decoder_forward.1} parent=107 // pred_fallthru
          _
        // Predicated region
        $region113: #{decoder_forward.1} parent=107 // pred_check
          %p3921 = pneg %p374
        $region114: #{decoder_forward.1} parent=107 // pred_check_branch
          %3923 = sbr.rel (%p3921) target = $region116
        $region115: #{decoder_forward.1} parent=107 // pred_region
          %p3924 = scmp.lt.s32.totalorder %s31, 15
          %s3925 = scalar_select %p3924, %s31, 15
          %s3926 = scalar_lea.vmem %s15, %s3925
        $region116: #{decoder_forward.1} parent=107 // pred_fallthru
          _
      $region108: #{decoder_forward.1} parent=5 // pred_fallthru
        _
    $region6: #{decoder_forward.1} parent=1 // loop_footer
      %s29 = sadd.s32 1, %s25
    $region7: #{decoder_forward.1} parent=1 // loop_footer_branch
      %24 = sbr.rel target = $region3
    $region8: #{decoder_forward.1} parent=1 // loop_exit
      _
    %3927 = vsyncpa [#allocation9], 1
    %s3928 = scalar_lea.sflag [#allocation9], 1
    %3929 = vsyncpa %s3928, 1
    %3930 = vsyncpa [#allocation11], 1
    %3931 = vsyncpa [#allocation14], 1

</llo_original>
